<compile_context>
chip_gen: v7x
topology: tpu7x:2x2x1
jax: 0.10.0
libtpu: 0.0.40
codegen_flags: <defaults>
</compile_context>

<pallas_src>
import functools

import numpy as np
import jax
import jax.numpy as jnp
from jax.experimental import pallas as pl
from jax.experimental.pallas import tpu as pltpu

D_FEAT = 5        # x, y, z, intensity, timestamp
D_PAD = 8         # feature rows padded to one sublane group; row D_FEAT = ones (count)
P_TILE = 512      # point columns per grid step (DMA block)
P_CHUNK = 256     # MXU contraction chunk inside one grid step (K = 256 fills v6e/v7x MXU)
V_TILE = 256      # voxel lanes per output tile (multiple of 256 for v6e/v7x MXU N dim)


def _round_up(x, m):
    return ((x + m - 1) // m) * m


# ---------------------------------------------------------------------------
# Pallas kernel: segmented scatter-mean.
# grid = (n_steps,): each step consumes one P_TILE block of (re-laid-out)
# points, all of which belong to a single V_TILE voxel tile.  The per-step
# voxel-tile id arrives via scalar prefetch and also drives the (data
# dependent) output BlockSpec.  acc_ref is a lane-dense (8, V_TILE) f32
# accumulator carried across the steps of one voxel tile.
# ---------------------------------------------------------------------------
def _scatter_mean_kernel(vt_ref, inv_ref, pts_ref, out_ref, acc_ref):
    s = pl.program_id(0)
    n_steps = pl.num_programs(0)

    vt = vt_ref[s]
    vt_prev = vt_ref[jnp.maximum(s - 1, 0)]
    vt_next = vt_ref[jnp.minimum(s + 1, n_steps - 1)]
    is_first = jnp.logical_or(s == 0, vt_prev != vt)
    is_last = jnp.logical_or(s == n_steps - 1, vt_next != vt)

    @pl.when(is_first)
    def _():
        acc_ref[...] = jnp.zeros_like(acc_ref)

    v_base = vt * V_TILE

    def chunk(c, carry):
        off = pl.multiple_of(c * P_CHUNK, P_CHUNK)
        inv_c = inv_ref[pl.ds(off, P_CHUNK), :]            # (P_CHUNK, 1) int32
        pts_c = pts_ref[:, pl.ds(off, P_CHUNK)]            # (D_PAD, P_CHUNK) f32
        vids = v_base + jax.lax.broadcasted_iota(jnp.int32, (P_CHUNK, V_TILE), 1)
        onehot = (inv_c == vids).astype(jnp.float32)       # (P_CHUNK, V_TILE)
        # Row D_FEAT of pts_c is all-ones, so the point count per voxel falls
        # out of the same matmul (no separate XLU lane reduction).
        # NOTE: Precision.HIGH is not supported by the Mosaic dot lowering
        # (only DEFAULT / HIGHEST map onto #tpu.contract_precision), and
        # DEFAULT (single bf16 pass) breaks the 1e-4 tolerance, so HIGHEST is
        # kept; the MXU (M = 8 rows only) is nowhere near the bottleneck here.
        acc_ref[...] += jnp.dot(pts_c, onehot,
                                preferred_element_type=jnp.float32,
                                precision=jax.lax.Precision.HIGHEST)
        return carry

    jax.lax.fori_loop(0, P_TILE // P_CHUNK, chunk, 0, unroll=True)

    @pl.when(is_last)
    def _():
        acc = acc_ref[...]
        cnt = acc[D_FEAT:D_FEAT + 1, :]                    # fused count row
        denom = jnp.where(cnt > 0.0, cnt, 1.0)
        out_ref[...] = (acc / denom).astype(out_ref.dtype)


def scatter_mean_pallas(points, inv, num_voxels):
    """points: (N, D) f32, inv: (N,) int32 voxel id per point in [0, num_voxels).

    Returns (num_voxels, D) per-voxel means.  Rows of voxel tiles that receive
    no points may contain garbage; the caller masks invalid voxel slots.
    """
    n, d = points.shape
    assert d < D_PAD
    assert num_voxels % V_TILE == 0
    n_vtiles = num_voxels // V_TILE

    inv = inv.astype(jnp.int32)
    vt_pt = inv // V_TILE                                       # voxel tile per point

    # --- sort by voxel id and re-lay out so that every P_TILE block of the
    #     relayout buffer belongs to exactly one voxel tile ------------------
    counts = jnp.zeros((n_vtiles,), jnp.int32).at[vt_pt].add(1)
    seg_pad = ((counts + P_TILE - 1) // P_TILE) * P_TILE        # padded segment sizes
    seg_end = jnp.cumsum(seg_pad)
    seg_start = seg_end - seg_pad
    cum_counts = jnp.cumsum(counts)
    sorted_seg_start = cum_counts - counts                      # segment start in sorted order

    order = jnp.argsort(inv)
    inv_s = inv[order]
    pts_s = points[order]
    vt_s = vt_pt[order]
    rank = jnp.arange(n, dtype=jnp.int32) - sorted_seg_start[vt_s]
    dest = seg_start[vt_s] + rank                               # unique, < n_relay

    n_relay = _round_up(n, P_TILE) + n_vtiles * P_TILE          # static worst case
    n_steps = n_relay // P_TILE

    ones = jnp.ones((n, 1), points.dtype)
    zeros = jnp.zeros((n, D_PAD - d - 1), points.dtype)
    pts_aug = jnp.concatenate([pts_s, ones, zeros], axis=1)     # (n, D_PAD)
    pts_relay = jnp.zeros((n_relay, D_PAD), points.dtype).at[dest].set(pts_aug)
    pts_t = pts_relay.T                                         # (D_PAD, n_relay), lane-dense
    inv_relay = jnp.full((n_relay, 1), num_voxels, jnp.int32).at[dest, 0].set(inv_s)

    # per-step voxel-tile schedule (scalar prefetch -> data-dependent out spec)
    step_starts = jnp.arange(n_steps, dtype=jnp.int32) * P_TILE
    vt_step = jnp.searchsorted(seg_end, step_starts, side="right").astype(jnp.int32)
    vt_step = jnp.minimum(vt_step, n_vtiles - 1)

    out_t = pl.pallas_call(
        _scatter_mean_kernel,
        out_shape=jax.ShapeDtypeStruct((D_PAD, num_voxels), points.dtype),
        grid_spec=pltpu.PrefetchScalarGridSpec(
            num_scalar_prefetch=1,
            grid=(n_steps,),
            in_specs=[
                pl.BlockSpec((P_TILE, 1), lambda s, vt: (s, 0)),       # voxel id / point
                pl.BlockSpec((D_PAD, P_TILE), lambda s, vt: (0, s)),   # transposed points
            ],
            out_specs=pl.BlockSpec((D_PAD, V_TILE), lambda s, vt: (0, vt[s])),
            scratch_shapes=[pltpu.VMEM((D_PAD, V_TILE), jnp.float32)],
        ),
        compiler_params=pltpu.CompilerParams(
            # carried accumulator across consecutive steps of one voxel tile
            dimension_semantics=("arbitrary",),
            # explicit VMEM budget with headroom (v7x has only 64 MiB per TC)
            vmem_limit_bytes=32 * 1024 * 1024,
        ),
    )(vt_step, inv_relay, pts_t)

    return out_t[:d, :].T                                        # (num_voxels, d)


# ---------------------------------------------------------------------------
# DynamicVoxelEncoder (virtual=False path)
# ---------------------------------------------------------------------------
class DynamicVoxelEncoder:
    def __init__(self, pc_range, voxel_size, virtual=False):
        self.pc_range = jnp.asarray(pc_range, jnp.float32)      # [xmin,ymin,zmin,xmax,ymax,zmax]
        self.voxel_size = jnp.asarray(voxel_size, jnp.float32)  # [vx, vy, vz]
        self.shape = jnp.round((self.pc_range[3:] - self.pc_range[:3]) / self.voxel_size)
        self.shape_np = np.asarray(self.shape).astype(np.int32)  # [nx, ny, nz]
        self.virtual = virtual
        # TODO(synk): virtual=True (voxelization_virtual) needs data-dependent point
        # compaction/reordering with dynamic sizes; no static-shape Pallas equivalent.
        assert not virtual, "virtual=True path not implemented"
        self._voxelize_jit = jax.jit(self._voxelize_one, static_argnums=(1,))

    def _voxelize_one(self, pts, max_voxels):
        pc, vs = self.pc_range, self.voxel_size
        x, y, z = pts[:, 0], pts[:, 1], pts[:, 2]
        keep = ((x >= pc[0]) & (x <= pc[3]) &
                (y >= pc[1]) & (y <= pc[4]) &
                (z >= pc[2]) & (z <= pc[5]))
        # torch: coords = ((pts[:, [2,1,0]] - pc[[2,1,0]]) / vs[[2,1,0]]).to(int64)
        cz = ((z - pc[2]) / vs[2]).astype(jnp.int32)
        cy = ((y - pc[1]) / vs[1]).astype(jnp.int32)
        cx = ((x - pc[0]) / vs[0]).astype(jnp.int32)

        nx, ny, nz = (int(self.shape_np[0]), int(self.shape_np[1]), int(self.shape_np[2]))
        mx, my = nx + 2, ny + 2  # strides preserving (z, y, x) lexicographic order
        lin = cz * (my * mx) + cy * mx + cx
        sentinel = (nz + 2) * my * mx
        lin = jnp.where(keep, lin, sentinel)  # out-of-range / padding -> sentinel slot

        uniq, inv = jnp.unique(lin, size=max_voxels, fill_value=sentinel,
                               return_inverse=True)
        inv = inv.ravel().astype(jnp.int32)

        voxels = scatter_mean_pallas(pts, inv, max_voxels)   # Pallas hot path

        valid = uniq < sentinel
        uz = uniq // (my * mx)
        rem = uniq % (my * mx)
        uy = rem // mx
        ux = rem % mx
        coords = jnp.stack([uz, uy, ux], axis=-1).astype(jnp.int32)
        coords = jnp.where(valid[:, None], coords, -1)
        voxels = jnp.where(valid[:, None], voxels, 0.0)
        return voxels, coords, valid

    def __call__(self, points_list):
        # Pad every sample to a COMMON static (n_pad, max_voxels) so the jitted
        # voxelizer / pallas_call is traced & compiled exactly once per batch.
        n_max = max(int(p.shape[0]) for p in points_list)
        n_pad = _round_up(max(n_max, P_TILE), P_TILE)
        max_voxels = _round_up(n_pad, V_TILE)

        oob = self.pc_range[3:6] + 1.0   # padding rows land outside the range filter
        voxels_all, coors_all = [], []
        for i, pts in enumerate(points_list):
            n, d = pts.shape
            if n_pad > n:
                pad_row = jnp.concatenate([oob, jnp.zeros((d - 3,), pts.dtype)])
                pts_p = jnp.concatenate(
                    [pts, jnp.broadcast_to(pad_row, (n_pad - n, d))], axis=0)
            else:
                pts_p = pts
            voxels, coords, valid = self._voxelize_jit(pts_p, max_voxels)
            batch_col = jnp.where(valid, jnp.int32(i), jnp.int32(-1))[:, None]
            coors_all.append(jnp.concatenate([batch_col, coords], axis=-1))
            voxels_all.append(voxels)
        voxels_batch = jnp.concatenate(voxels_all, axis=0)
        coors_batch = jnp.concatenate(coors_all, axis=0)
        return voxels_batch, coors_batch, self.shape_np


# ---------------------------------------------------------------------------
# Demo / self-check
# ---------------------------------------------------------------------------
if __name__ == "__main__":
    key = jax.random.PRNGKey(0)
    B, N = 2, 256
    pc_range = [-2.0, -2.0, -1.0, 2.0, 2.0, 1.0]   # -> grid shape [8, 8, 4]
    voxel_size = [0.5, 0.5, 0.5]

    encoder = DynamicVoxelEncoder(pc_range, voxel_size, virtual=False)

    keys = jax.random.split(key, B)
    points = []
    for b in range(B):
        kxy, kz, kf = jax.random.split(keys[b], 3)
        xy = jax.random.uniform(kxy, (N, 2), minval=-2.5, maxval=2.5)
        zz = jax.random.uniform(kz, (N, 1), minval=-1.2, maxval=1.2)
        feats = jax.random.uniform(kf, (N, D_FEAT - 3))
        points.append(jnp.concatenate([xy, zz, feats], axis=-1).astype(jnp.float32))

    voxels_batch, coors_batch, shape_np = encoder(points)
    jax.block_until_ready(voxels_batch)
    jax.block_until_ready(coors_batch)

    # numpy reference for sample 0 (mirrors the torch voxelization() semantics)
    p = np.asarray(points[0])
    pc = np.asarray(pc_range, np.float32)
    vs = np.asarray(voxel_size, np.float32)
    keep = ((p[:, 0] >= pc[0]) & (p[:, 0] <= pc[3]) &
            (p[:, 1] >= pc[1]) & (p[:, 1] <= pc[4]) &
            (p[:, 2] >= pc[2]) & (p[:, 2] <= pc[5]))
    pk = p[keep]
    coords = ((pk[:, [2, 1, 0]] - pc[[2, 1, 0]]) / vs[[2, 1, 0]]).astype(np.int64)
    uniq, inv = np.unique(coords, axis=0, return_inverse=True)
    ref = np.zeros((len(uniq), D_FEAT), np.float64)
    cnt = np.zeros((len(uniq),), np.float64)
    np.add.at(ref, inv, pk)
    np.add.at(cnt, inv, 1.0)
    ref /= cnt[:, None]

    got_v = np.asarray(voxels_batch[:len(uniq)])
    got_c = np.asarray(coors_batch[:len(uniq)])
    assert np.allclose(got_v, ref, rtol=1e-4, atol=1e-4), "voxel feature mismatch"
    assert np.array_equal(got_c[:, 1:].astype(np.int64), uniq), "voxel coord mismatch"
    assert np.all(got_c[:, 0] == 0), "batch index mismatch"
    assert np.array_equal(shape_np, np.array([8, 8, 4], np.int32))

    print("KERNEL_OK")
</pallas_src>

<mosaic_0001>
module attributes {stable_mosaic.version = 11 : i64} {
  func.func private @main(%arg0: i32) attributes {dimension_semantics = [#tpu.dimension_semantics<core_parallel>], iteration_bounds = array<i64: 2>, tpu.core_type = #tpu.core_type<sc_scalar_subcore>, window_params = []} {
    return
  }
}

module attributes {stable_mosaic.version = 11 : i64} {
  func.func private @main(%arg0: i32) attributes {dimension_semantics = [#tpu.dimension_semantics<core_parallel>], iteration_bounds = array<i64: 2>, tpu.core_type = #tpu.core_type<sc_scalar_subcore>, window_params = []} {
    return
  }
}

module attributes {stable_mosaic.version = 11 : i64} {
  func.func @_scatter_mean_kernel(%arg0: i32, %arg1: memref<3xi32, #tpu.memory_space<smem>>, %arg2: memref<512x1xi32, #tpu.memory_space<vmem>>, %arg3: memref<8x512xf32, #tpu.memory_space<vmem>>, %arg4: memref<8x256xf32, #tpu.memory_space<vmem>>, %arg5: memref<8x256xf32, #tpu.memory_space<vmem>>) attributes {dimension_semantics = [#tpu.dimension_semantics<arbitrary>], iteration_bounds = array<i64: 3>, scalar_prefetch = 1 : i64, scratch_operands = 1 : i64, tpu.core_type = #tpu.core_type<tc>, window_params = [{transform_indices = @transform_0, window_bounds = array<i64: 512, 1>}, {transform_indices = @transform_1, window_bounds = array<i64: 8, 512>}, {transform_indices = @transform_2, window_bounds = array<i64: 8, 256>}]} {
    %0 = arith.index_cast %arg0 : i32 to index
    %1 = memref.load %arg1[%0] : memref<3xi32, #tpu.memory_space<smem>>
    %c1_i32 = arith.constant 1 : i32
    %2 = arith.subi %arg0, %c1_i32 : i32
    %c0_i32 = arith.constant 0 : i32
    %3 = arith.maxsi %2, %c0_i32 : i32
    %4 = arith.index_cast %3 : i32 to index
    %5 = memref.load %arg1[%4] : memref<3xi32, #tpu.memory_space<smem>>
    %c1_i32_0 = arith.constant 1 : i32
    %6 = arith.addi %arg0, %c1_i32_0 : i32
    %c2_i32 = arith.constant 2 : i32
    %7 = arith.minsi %6, %c2_i32 : i32
    %8 = arith.index_cast %7 : i32 to index
    %9 = memref.load %arg1[%8] : memref<3xi32, #tpu.memory_space<smem>>
    %c0_i32_1 = arith.constant 0 : i32
    %10 = arith.cmpi eq, %arg0, %c0_i32_1 : i32
    %11 = arith.cmpi ne, %5, %1 : i32
    %12 = arith.ori %10, %11 : i1
    %c2_i32_2 = arith.constant 2 : i32
    %13 = arith.cmpi eq, %arg0, %c2_i32_2 : i32
    %14 = arith.cmpi ne, %9, %1 : i32
    %15 = arith.ori %13, %14 : i1
    %16 = arith.extui %12 : i1 to i32
    %c0_i32_3 = arith.constant 0 : i32
    %17 = arith.cmpi ne, %16, %c0_i32_3 : i32
    scf.if %17 {
      %cst_22 = arith.constant 0.000000e+00 : f32
      %55 = vector.broadcast %cst_22 : f32 to vector<8x256xf32>
      %c0_23 = arith.constant 0 : index
      %c0_24 = arith.constant 0 : index
      %56 = vector.load %arg5[%c0_23, %c0_24] : memref<8x256xf32, #tpu.memory_space<vmem>>, vector<8x256xf32>
      tpu.vector_store %arg5[%c0_23, %c0_24], %55 {strides = array<i32>} : memref<8x256xf32, #tpu.memory_space<vmem>>, vector<8x256xf32>,
    } else {
    }
    %c256_i32 = arith.constant 256 : i32
    %18 = arith.muli %1, %c256_i32 : i32
    %c0_i32_4 = arith.constant 0 : i32
    %c256_i32_5 = arith.constant 256 : i32
    %19 = arith.muli %c0_i32_4, %c256_i32_5 : i32
    %20 = tpu.assume_multiple %19, 256 : i32
    %21 = arith.index_cast %20 : i32 to index
    %c0 = arith.constant 0 : index
    %22 = vector.load %arg2[%21, %c0] : memref<512x1xi32, #tpu.memory_space<vmem>>, vector<256x1xi32>
    %c0_6 = arith.constant 0 : index
    %23 = arith.index_cast %20 : i32 to index
    %24 = vector.load %arg3[%c0_6, %23] : memref<8x512xf32, #tpu.memory_space<vmem>>, vector<8x256xf32>
    %25 = tpu.iota {dimensions = array<i32: 1>} : vector<256x256xi32>
    %26 = vector.broadcast %18 : i32 to vector<256x256xi32>
    %27 = arith.addi %26, %25 : vector<256x256xi32>
    %28 = vector.broadcast %22 : vector<256x1xi32> to vector<256x256xi32>
    %29 = arith.cmpi eq, %28, %27 : vector<256x256xi32>
    %30 = arith.extui %29 : vector<256x256xi1> to vector<256x256xi32>
    %31 = arith.sitofp %30 : vector<256x256xi32> to vector<256x256xf32>
    %c0_7 = arith.constant 0 : index
    %c0_8 = arith.constant 0 : index
    %32 = vector.load %arg5[%c0_7, %c0_8] : memref<8x256xf32, #tpu.memory_space<vmem>>, vector<8x256xf32>
    %cst = arith.constant dense<0.000000e+00> : vector<8x256xf32>
    %33 = tpu.matmul %24, %31, %cst {dimension_numbers = #tpu.dot_dimension_numbers<[1], [0], [0], [1], [0, 0, 1, 1], [], []>, precision = #tpu.contract_precision<fp32>} : vector<8x256xf32>, vector<256x256xf32>, vector<8x256xf32> -> vector<8x256xf32>
    %34 = arith.addf %32, %33 : vector<8x256xf32>
    %c0_9 = arith.constant 0 : index
    %c0_10 = arith.constant 0 : index
    %35 = vector.load %arg5[%c0_9, %c0_10] : memref<8x256xf32, #tpu.memory_space<vmem>>, vector<8x256xf32>
    tpu.vector_store %arg5[%c0_9, %c0_10], %34 {strides = array<i32>} : memref<8x256xf32, #tpu.memory_space<vmem>>, vector<8x256xf32>,
    %c1_i32_11 = arith.constant 1 : i32
    %c256_i32_12 = arith.constant 256 : i32
    %36 = arith.muli %c1_i32_11, %c256_i32_12 : i32
    %37 = tpu.assume_multiple %36, 256 : i32
    %38 = arith.index_cast %37 : i32 to index
    %c0_13 = arith.constant 0 : index
    %39 = vector.load %arg2[%38, %c0_13] : memref<512x1xi32, #tpu.memory_space<vmem>>, vector<256x1xi32>
    %c0_14 = arith.constant 0 : index
    %40 = arith.index_cast %37 : i32 to index
    %41 = vector.load %arg3[%c0_14, %40] : memref<8x512xf32, #tpu.memory_space<vmem>>, vector<8x256xf32>
    %42 = tpu.iota {dimensions = array<i32: 1>} : vector<256x256xi32>
    %43 = vector.broadcast %18 : i32 to vector<256x256xi32>
    %44 = arith.addi %43, %42 : vector<256x256xi32>
    %45 = vector.broadcast %39 : vector<256x1xi32> to vector<256x256xi32>
    %46 = arith.cmpi eq, %45, %44 : vector<256x256xi32>
    %47 = arith.extui %46 : vector<256x256xi1> to vector<256x256xi32>
    %48 = arith.sitofp %47 : vector<256x256xi32> to vector<256x256xf32>
    %c0_15 = arith.constant 0 : index
    %c0_16 = arith.constant 0 : index
    %49 = vector.load %arg5[%c0_15, %c0_16] : memref<8x256xf32, #tpu.memory_space<vmem>>, vector<8x256xf32>
    %cst_17 = arith.constant dense<0.000000e+00> : vector<8x256xf32>
    %50 = tpu.matmul %41, %48, %cst_17 {dimension_numbers = #tpu.dot_dimension_numbers<[1], [0], [0], [1], [0, 0, 1, 1], [], []>, precision = #tpu.contract_precision<fp32>} : vector<8x256xf32>, vector<256x256xf32>, vector<8x256xf32> -> vector<8x256xf32>
    %51 = arith.addf %49, %50 : vector<8x256xf32>
    %c0_18 = arith.constant 0 : index
    %c0_19 = arith.constant 0 : index
    %52 = vector.load %arg5[%c0_18, %c0_19] : memref<8x256xf32, #tpu.memory_space<vmem>>, vector<8x256xf32>
    tpu.vector_store %arg5[%c0_18, %c0_19], %51 {strides = array<i32>} : memref<8x256xf32, #tpu.memory_space<vmem>>, vector<8x256xf32>,
    %c2_i32_20 = arith.constant 2 : i32
    %53 = arith.extui %15 : i1 to i32
    %c0_i32_21 = arith.constant 0 : i32
    %54 = arith.cmpi ne, %53, %c0_i32_21 : i32
    scf.if %54 {
      %c0_22 = arith.constant 0 : index
      %c0_23 = arith.constant 0 : index
      %55 = vector.load %arg5[%c0_22, %c0_23] : memref<8x256xf32, #tpu.memory_space<vmem>>, vector<8x256xf32>
      %56 = vector.extract_strided_slice %55 {offsets = [5, 0], sizes = [1, 256], strides = [1, 1]} : vector<8x256xf32> to vector<1x256xf32>
      %cst_24 = arith.constant 0.000000e+00 : f32
      %57 = vector.broadcast %cst_24 : f32 to vector<1x256xf32>
      %58 = arith.cmpf ogt, %56, %57 : vector<1x256xf32>
      %cst_25 = arith.constant 1.000000e+00 : f32
      %59 = vector.broadcast %cst_25 : f32 to vector<1x256xf32>
      %60 = arith.select %58, %56, %59 : vector<1x256xi1>, vector<1x256xf32>
      %61 = vector.broadcast %60 : vector<1x256xf32> to vector<8x256xf32>
      %62 = arith.divf %55, %61 : vector<8x256xf32>
      %c0_26 = arith.constant 0 : index
      %c0_27 = arith.constant 0 : index
      %63 = vector.load %arg4[%c0_26, %c0_27] : memref<8x256xf32, #tpu.memory_space<vmem>>, vector<8x256xf32>
      tpu.vector_store %arg4[%c0_26, %c0_27], %62 {strides = array<i32>} : memref<8x256xf32, #tpu.memory_space<vmem>>, vector<8x256xf32>,
    } else {
    }
    return
  }
  func.func @transform_0(%arg0: i32, %arg1: memref<3xi32, #tpu.memory_space<smem>>) -> (i32, i32) {
    %c0_i32 = arith.constant 0 : i32
    %c0_i32_0 = arith.constant 0 : i32
    return %arg0, %c0_i32 : i32, i32
  }
  func.func @transform_1(%arg0: i32, %arg1: memref<3xi32, #tpu.memory_space<smem>>) -> (i32, i32) {
    %c0_i32 = arith.constant 0 : i32
    %c0_i32_0 = arith.constant 0 : i32
    return %c0_i32, %arg0 : i32, i32
  }
  func.func @transform_2(%arg0: i32, %arg1: memref<3xi32, #tpu.memory_space<smem>>) -> (i32, i32) {
    %0 = arith.index_cast %arg0 : i32 to index
    %1 = memref.load %arg1[%0] : memref<3xi32, #tpu.memory_space<smem>>
    %c0_i32 = arith.constant 0 : i32
    %c0_i32_0 = arith.constant 0 : i32
    return %c0_i32, %1 : i32, i32
  }
}

</mosaic_0001>

<llo_original>
// kernel: custom-call
$region0: #{custom-call}
  %s0 = inlined_call_operand.vmem [shape: u32[3], index: 0, kind: output, shape index: {}]

// kernel: _voxelize_one.1
$region0: #{_voxelize_one.1}
  #allocation0 [shape = 'u32[]', space=smem, size = 0x4, offset = 0x4, fixed_abs, tag = 'smem constant byte address 0x4 - core index']
  #allocation1 [shape = 'u32[144,128]{1,0:T(1,128)}', space=vmem, size = 0x12000, scoped, tag = 'internal scratch']
  #allocation2 [shape = 'f32[8,256]{1,0:T(8,128)}', space=vmem, size = 0x2000, scoped, tag = 'scratch operand']
  #allocation3 [shape = 's32[1]{0}', space=sflag, size = 0x4, scoped, tag = 'scoped memory for _voxelize_one.1']
  #allocation4 [shape = 'u8[512]{0}', space=smem, size = 0x200, scoped, tag = 'prefetched SMEM operand 0']
  %s0 = inlined_call_operand.vmem [shape: s32[3], index: 0, kind: input, shape index: {}]
  %s1 = inlined_call_operand.vmem [shape: s32[1536,1], index: 1, kind: input, shape index: {}]
  %s2 = inlined_call_operand.vmem [shape: f32[8,1536], index: 2, kind: input, shape index: {}]
  %s3 = inlined_call_operand.vmem [shape: f32[8,512], index: 3, kind: output, shape index: {}]
  %s4 = sld [smem:[#allocation0]]
  $region49: #{_voxelize_one.1} parent=0
    _
  %s6 = ssub.s32 1, %s4
  %s7 = scalar_select 0, %s6, %s4
  %s8 = sshll.u32 %s0, 4
  %s9 = int_to_ptr.vmem [resolvable:$true] %s8
  %11 = dma.vmem_to_smem %s9, 16, [#allocation4], [#allocation3]
  %12 = dma.done [#allocation3], 16
  %13 = sfence
  loop: start=0, step=1, limit=5
  $region2: #{_voxelize_one.1} parent=0 // loop_pre_header
    _
  $region3: #{_voxelize_one.1} parent=0 // loop_header
    %s15 = sphi 0, %s19
    %p16 = scmp.ge.s32.totalorder %s15, 5
    %s25 = sphi 0, %s27
    %s28 = sphi 0, %s25
    %s29 = sphi 0, %s28
    %s45 = sphi 0, %s29
    %s51 = sphi 0, %s53
    %s54 = sphi 0, %s51
    %s55 = sphi 0, %s54
    %s71 = sphi 0, %s55
    %s79 = sphi 0, %s81
    %s82 = sphi 0, %s79
    %s83 = sphi 0, %s82
    %s99 = sphi 0, %s83
  $region4: #{_voxelize_one.1} parent=0 // loop_header_branch
    %18 = sbr.rel (%p16) target = $region8
  $region5: #{_voxelize_one.1} parent=0 // loop_body
    %s20 = ssub.s32 %s15, 1
    %s21 = ssub.s32 %s15, 2
    %s22 = sadd.s32 %s15, 1
    %s23 = ssub.s32 %s15, %s22
    %p24 = scmp.eq.s32.totalorder %s23, 0
    %s26 = sadd.s32 %s25, 1
    %s27 = scalar_select %p24, %s25, %s26
    %p30 = pneg %p24
    %p31 = scmp.eq.s32.totalorder %s15, 2
    %p32 = por %p30, %p31
    %p33 = scmp.ne.s32.totalorder %s25, %s28
    %p34 = scmp.eq.s32.totalorder %s15, 0
    %p35 = por %p33, %p34
    %p36 = scmp.ne.s32.totalorder %s25, %s28
    %p37 = scmp.eq.s32.totalorder %s20, 2
    %p38 = por %p36, %p37
    %p39 = scmp.ne.s32.totalorder %s28, %s29
    %p40 = scmp.eq.s32.totalorder %s20, 0
    %p41 = por %p39, %p40
    %p42 = scmp.ne.s32.totalorder %s28, %s29
    %p43 = scmp.eq.s32.totalorder %s21, 2
    %p44 = por %p42, %p43
    %p46 = scmp.ne.s32.totalorder %s29, %s45
    %p47 = scmp.eq.s32.totalorder %s21, 0
    %p48 = por %p46, %p47
    %s49 = ssub.s32 %s15, %s22
    %p50 = scmp.eq.s32.totalorder %s49, 0
    %s52 = sadd.s32 %s51, 1
    %s53 = scalar_select %p50, %s51, %s52
    %p56 = pneg %p50
    %p57 = scmp.eq.s32.totalorder %s15, 2
    %p58 = por %p56, %p57
    %p59 = scmp.ne.s32.totalorder %s51, %s54
    %p60 = scmp.eq.s32.totalorder %s15, 0
    %p61 = por %p59, %p60
    %p62 = scmp.ne.s32.totalorder %s51, %s54
    %p63 = scmp.eq.s32.totalorder %s20, 2
    %p64 = por %p62, %p63
    %p65 = scmp.ne.s32.totalorder %s54, %s55
    %p66 = scmp.eq.s32.totalorder %s20, 0
    %p67 = por %p65, %p66
    %p68 = scmp.ne.s32.totalorder %s54, %s55
    %p69 = scmp.eq.s32.totalorder %s21, 2
    %p70 = por %p68, %p69
    %p72 = scmp.ne.s32.totalorder %s55, %s71
    %p73 = scmp.eq.s32.totalorder %s21, 0
    %p74 = por %p72, %p73
    %s75 = sld [smem:[#allocation4 + %s15]]
    %s76 = sld [smem:[#allocation4 + %s22]]
    %s77 = ssub.s32 %s75, %s76
    %p78 = scmp.eq.s32.totalorder %s77, 0
    %s80 = sadd.s32 %s79, 1
    %s81 = scalar_select %p78, %s79, %s80
    %p84 = pneg %p78
    %p85 = scmp.eq.s32.totalorder %s15, 2
    %p86 = por %p84, %p85
    %p87 = scmp.ne.s32.totalorder %s79, %s82
    %p88 = scmp.eq.s32.totalorder %s15, 0
    %p89 = por %p87, %p88
    %p90 = scmp.ne.s32.totalorder %s79, %s82
    %p91 = scmp.eq.s32.totalorder %s20, 2
    %p92 = por %p90, %p91
    %p93 = scmp.ne.s32.totalorder %s82, %s83
    %p94 = scmp.eq.s32.totalorder %s20, 0
    %p95 = por %p93, %p94
    %p96 = scmp.ne.s32.totalorder %s82, %s83
    %p97 = scmp.eq.s32.totalorder %s21, 2
    %p98 = por %p96, %p97
    %p100 = scmp.ne.s32.totalorder %s83, %s99
    %p101 = scmp.eq.s32.totalorder %s21, 0
    %p102 = por %p100, %p101
    %p103 = scmp.le.s32.totalorder 1, %s15
    %p104 = scmp.lt.s32.totalorder %s15, 4
    %p105 = pnand %p103, %p104
    %p106 = pneg %p105
    // Predicated region
    $region9: #{_voxelize_one.1} parent=5 // pred_check
      _
    $region10: #{_voxelize_one.1} parent=5 // pred_check_branch
      %108 = sbr.rel (%p105) target = $region12
    $region11: #{_voxelize_one.1} parent=5 // pred_region
      %s109 = ssub.s32 %s15, 1
    $region12: #{_voxelize_one.1} parent=5 // pred_fallthru
      _
    %p110 = scmp.lt.s32.totalorder %s15, 3
    // Predicated region
    $region13: #{_voxelize_one.1} parent=5 // pred_check
      %p111 = pneg %p110
    $region14: #{_voxelize_one.1} parent=5 // pred_check_branch
      %113 = sbr.rel (%p111) target = $region16
    $region15: #{_voxelize_one.1} parent=5 // pred_region
      // Predicated region
      $region17: #{_voxelize_one.1} parent=15 // pred_check
        %p114 = pneg %p35
      $region18: #{_voxelize_one.1} parent=15 // pred_check_branch
        %116 = sbr.rel (%p114) target = $region20
      $region19: #{_voxelize_one.1} parent=15 // pred_region
        %s117 = smul.u32 64, %s15
        %p118 = scmp.lt.s32.totalorder %s117, 191
        %s119 = scalar_select %p118, %s117, 191
        %s120 = smul.addr %s119, 8
        %s121 = scalar_lea.vmem %s1, %s120
        %s122 = smul.u32 64, %s15
      $region20: #{_voxelize_one.1} parent=15 // pred_fallthru
        _
      // Predicated region
      $region21: #{_voxelize_one.1} parent=15 // pred_check
        %p123 = pneg %p61
      $region22: #{_voxelize_one.1} parent=15 // pred_check_branch
        %125 = sbr.rel (%p123) target = $region24
      $region23: #{_voxelize_one.1} parent=15 // pred_region
        %s126 = smul.u32 4, %s15
        %p127 = scmp.lt.s32.totalorder %s126, 11
        %s128 = scalar_select %p127, %s126, 11
        %s129 = smul.addr %s128, 8
        %s130 = scalar_lea.vmem %s2, %s129
        %s131 = smul.u32 4, %s15
      $region24: #{_voxelize_one.1} parent=15 // pred_fallthru
        _
    $region16: #{_voxelize_one.1} parent=5 // pred_fallthru
      _
    %p132 = scmp.le.s32.totalorder 1, %s15
    %p133 = scmp.lt.s32.totalorder %s15, 4
    %p134 = pnand %p132, %p133
    %p135 = pneg %p134
    // Predicated region
    $region25: #{_voxelize_one.1} parent=5 // pred_check
      _
    $region26: #{_voxelize_one.1} parent=5 // pred_check_branch
      %137 = sbr.rel (%p134) target = $region28
    $region27: #{_voxelize_one.1} parent=5 // pred_region
      %s138 = ssub.s32 %s15, 1
      %s139 = smul.u32 64, %s20
      %p140 = scmp.lt.s32.totalorder %s139, 191
      %s141 = scalar_select %p140, %s139, 191
      %s142 = smul.addr %s141, 8
      %s143 = scalar_lea.vmem %s1, %s142
      %p144 = pneg %p41
      %p145 = pneg %p38
      %s146 = smul.u32 4, %s20
      %p147 = scmp.lt.s32.totalorder %s146, 11
      %s148 = scalar_select %p147, %s146, 11
      %s149 = smul.addr %s148, 8
      %s150 = scalar_lea.vmem %s2, %s149
      %p151 = pneg %p67
      %p152 = pneg %p64
      %p153 = pneg %p95
      %p154 = pneg %p92
      %s155 = sld [smem:[#allocation4 + %s20]]
      %s156 = smul.u32 2, %s155
      %p157 = scmp.lt.s32.totalorder %s156, 3
      %s158 = scalar_select %p157, %s156, 3
      %s159 = smul.addr %s158, 8
      %s160 = scalar_lea.vmem %s3, %s159
      %s161 = smul.u32 64, %s20
      %p162 = scmp.lt.s32.totalorder %s161, 191
      %s163 = scalar_select %p162, %s161, 191
      %s164 = smul.addr %s163, 8
      %s165 = scalar_lea.vmem %s1, %s164
      %s166 = smul.u32 64, %s20
      %s167 = smul.u32 4, %s20
      %p168 = scmp.lt.s32.totalorder %s167, 11
      %s169 = scalar_select %p168, %s167, 11
      %s170 = smul.addr %s169, 8
      %s171 = scalar_lea.vmem %s2, %s170
      %s172 = smul.u32 4, %s20
      %s173 = sld [smem:[#allocation4 + %s20]]
      %s174 = smul.u32 2, %s173
      %p175 = scmp.lt.s32.totalorder %s174, 3
      %s176 = scalar_select %p175, %s174, 3
      %s177 = smul.addr %s176, 8
      %s178 = scalar_lea.vmem %s3, %s177
      %s179 = sld [smem:[#allocation4 + %s20]]
      %s180 = smul.u32 2, %s179
      %s181 = sld [smem:[#allocation4 + %s20]]
      %s182 = ssub.s32 %s20, 1
      %p183 = scmp.gt.s32.totalorder %s182, 0
      %s184 = scalar_select %p183, %s182, 0
      %s185 = sld [smem:[#allocation4 + %s184]]
      %s186 = sadd.s32 %s20, 1
      %p187 = scmp.lt.s32.totalorder %s186, 2
      %s188 = scalar_select %p187, %s186, 2
      %s189 = sld [smem:[#allocation4 + %s188]]
      %p190 = scmp.eq.s32.totalorder %s20, 0
      %p191 = scmp.ne.s32.totalorder %s185, %s181
      %p192 = por %p190, %p191
      %p193 = scmp.eq.s32.totalorder %s20, 2
      %p194 = scmp.ne.s32.totalorder %s189, %s181
      %p195 = por %p193, %p194
      // Predicated region
      $region29: #{_voxelize_one.1} parent=27 // pred_check
        %p196 = pneg %p192
      $region30: #{_voxelize_one.1} parent=27 // pred_check_branch
        %198 = sbr.rel (%p196) target = $region32
      $region31: #{_voxelize_one.1} parent=27 // pred_region
        %199 = vst [vmem:[#allocation2] sm:$0xff] 0.0
        %200 = vst [vmem:[#allocation2 + $0x8] sm:$0xff] 0.0
      $region32: #{_voxelize_one.1} parent=27 // pred_fallthru
        _
      %s201 = smul.u32 %s181, 256
      %v202 = vld [vmem:[%s165] sm:$0xff]
      %v203 = vld [vmem:[%s165 + $0x8] sm:$0xff]
      %v204 = vld [vmem:[%s165 + $0x10] sm:$0xff]
      %v205 = vld [vmem:[%s165 + $0x18] sm:$0xff]
      %v206 = vld [vmem:[%s165 + $0x20] sm:$0xff]
      %v207 = vld [vmem:[%s165 + $0x28] sm:$0xff]
      %v208 = vld [vmem:[%s165 + $0x30] sm:$0xff]
      %v209 = vld [vmem:[%s165 + $0x38] sm:$0xff]
      %v210 = vld [vmem:[%s165 + $0x40] sm:$0xff]
      %v211 = vld [vmem:[%s165 + $0x48] sm:$0xff]
      %v212 = vld [vmem:[%s165 + $0x50] sm:$0xff]
      %v213 = vld [vmem:[%s165 + $0x58] sm:$0xff]
      %v214 = vld [vmem:[%s165 + $0x60] sm:$0xff]
      %v215 = vld [vmem:[%s165 + $0x68] sm:$0xff]
      %v216 = vld [vmem:[%s165 + $0x70] sm:$0xff]
      %v217 = vld [vmem:[%s165 + $0x78] sm:$0xff]
      %v218 = vld [vmem:[%s165 + $0x80] sm:$0xff]
      %v219 = vld [vmem:[%s165 + $0x88] sm:$0xff]
      %v220 = vld [vmem:[%s165 + $0x90] sm:$0xff]
      %v221 = vld [vmem:[%s165 + $0x98] sm:$0xff]
      %v222 = vld [vmem:[%s165 + $0xa0] sm:$0xff]
      %v223 = vld [vmem:[%s165 + $0xa8] sm:$0xff]
      %v224 = vld [vmem:[%s165 + $0xb0] sm:$0xff]
      %v225 = vld [vmem:[%s165 + $0xb8] sm:$0xff]
      %v226 = vld [vmem:[%s165 + $0xc0] sm:$0xff]
      %v227 = vld [vmem:[%s165 + $0xc8] sm:$0xff]
      %v228 = vld [vmem:[%s165 + $0xd0] sm:$0xff]
      %v229 = vld [vmem:[%s165 + $0xd8] sm:$0xff]
      %v230 = vld [vmem:[%s165 + $0xe0] sm:$0xff]
      %v231 = vld [vmem:[%s165 + $0xe8] sm:$0xff]
      %v232 = vld [vmem:[%s165 + $0xf0] sm:$0xff]
      %v233 = vld [vmem:[%s165 + $0xf8] sm:$0xff]
      %v234 = vld [vmem:[%s171] sm:$0xff]
      %v235 = vld [vmem:[%s171 + $0x8] sm:$0xff]
      %v236 = vlaneseq
      %v237 = vand.u32 %v236, 127
      %v238 = vadd.s32 %v237, 128
      %v239 = vstv %s201
      %v240 = vadd.s32 %v239, %v237
      %v241 = vadd.s32 %v239, %v238
      %242 = vset.pattern.permute.xlu0 0
      %243 = vperm.xlu0 %242, %v202
      %v244 = vpop.permute.xlu0 %243
      %245 = vset.pattern.permute.xlu0 0
      %246 = vperm.xlu0 %245, %v203
      %v247 = vpop.permute.xlu0 %246
      %248 = vset.pattern.permute.xlu0 0
      %249 = vperm.xlu0 %248, %v204
      %v250 = vpop.permute.xlu0 %249
      %251 = vset.pattern.permute.xlu0 0
      %252 = vperm.xlu0 %251, %v205
      %v253 = vpop.permute.xlu0 %252
      %254 = vset.pattern.permute.xlu0 0
      %255 = vperm.xlu0 %254, %v206
      %v256 = vpop.permute.xlu0 %255
      %257 = vset.pattern.permute.xlu0 0
      %258 = vperm.xlu0 %257, %v207
      %v259 = vpop.permute.xlu0 %258
      %260 = vset.pattern.permute.xlu0 0
      %261 = vperm.xlu0 %260, %v208
      %v262 = vpop.permute.xlu0 %261
      %263 = vset.pattern.permute.xlu0 0
      %264 = vperm.xlu0 %263, %v209
      %v265 = vpop.permute.xlu0 %264
      %266 = vset.pattern.permute.xlu0 0
      %267 = vperm.xlu0 %266, %v210
      %v268 = vpop.permute.xlu0 %267
      %269 = vset.pattern.permute.xlu0 0
      %270 = vperm.xlu0 %269, %v211
      %v271 = vpop.permute.xlu0 %270
      %272 = vset.pattern.permute.xlu0 0
      %273 = vperm.xlu0 %272, %v212
      %v274 = vpop.permute.xlu0 %273
      %275 = vset.pattern.permute.xlu0 0
      %276 = vperm.xlu0 %275, %v213
      %v277 = vpop.permute.xlu0 %276
      %278 = vset.pattern.permute.xlu0 0
      %279 = vperm.xlu0 %278, %v214
      %v280 = vpop.permute.xlu0 %279
      %281 = vset.pattern.permute.xlu0 0
      %282 = vperm.xlu0 %281, %v215
      %v283 = vpop.permute.xlu0 %282
      %284 = vset.pattern.permute.xlu0 0
      %285 = vperm.xlu0 %284, %v216
      %v286 = vpop.permute.xlu0 %285
      %287 = vset.pattern.permute.xlu0 0
      %288 = vperm.xlu0 %287, %v217
      %v289 = vpop.permute.xlu0 %288
      %290 = vset.pattern.permute.xlu0 0
      %291 = vperm.xlu0 %290, %v218
      %v292 = vpop.permute.xlu0 %291
      %293 = vset.pattern.permute.xlu0 0
      %294 = vperm.xlu0 %293, %v219
      %v295 = vpop.permute.xlu0 %294
      %296 = vset.pattern.permute.xlu0 0
      %297 = vperm.xlu0 %296, %v220
      %v298 = vpop.permute.xlu0 %297
      %299 = vset.pattern.permute.xlu0 0
      %300 = vperm.xlu0 %299, %v221
      %v301 = vpop.permute.xlu0 %300
      %302 = vset.pattern.permute.xlu0 0
      %303 = vperm.xlu0 %302, %v222
      %v304 = vpop.permute.xlu0 %303
      %305 = vset.pattern.permute.xlu0 0
      %306 = vperm.xlu0 %305, %v223
      %v307 = vpop.permute.xlu0 %306
      %308 = vset.pattern.permute.xlu0 0
      %309 = vperm.xlu0 %308, %v224
      %v310 = vpop.permute.xlu0 %309
      %311 = vset.pattern.permute.xlu0 0
      %312 = vperm.xlu0 %311, %v225
      %v313 = vpop.permute.xlu0 %312
      %314 = vset.pattern.permute.xlu0 0
      %315 = vperm.xlu0 %314, %v226
      %v316 = vpop.permute.xlu0 %315
      %317 = vset.pattern.permute.xlu0 0
      %318 = vperm.xlu0 %317, %v227
      %v319 = vpop.permute.xlu0 %318
      %320 = vset.pattern.permute.xlu0 0
      %321 = vperm.xlu0 %320, %v228
      %v322 = vpop.permute.xlu0 %321
      %323 = vset.pattern.permute.xlu0 0
      %324 = vperm.xlu0 %323, %v229
      %v325 = vpop.permute.xlu0 %324
      %326 = vset.pattern.permute.xlu0 0
      %327 = vperm.xlu0 %326, %v230
      %v328 = vpop.permute.xlu0 %327
      %329 = vset.pattern.permute.xlu0 0
      %330 = vperm.xlu0 %329, %v231
      %v331 = vpop.permute.xlu0 %330
      %332 = vset.pattern.permute.xlu0 0
      %333 = vperm.xlu0 %332, %v232
      %v334 = vpop.permute.xlu0 %333
      %335 = vset.pattern.permute.xlu0 0
      %336 = vperm.xlu0 %335, %v233
      %v337 = vpop.permute.xlu0 %336
      %vm338 = vcmp.eq.s32.totalorder %v244, %v240
      %vm339 = vcmp.eq.s32.totalorder %v244, %v241
      %vm340 = vcmp.eq.s32.totalorder %v247, %v240
      %vm341 = vcmp.eq.s32.totalorder %v247, %v241
      %vm342 = vcmp.eq.s32.totalorder %v250, %v240
      %vm343 = vcmp.eq.s32.totalorder %v250, %v241
      %vm344 = vcmp.eq.s32.totalorder %v253, %v240
      %vm345 = vcmp.eq.s32.totalorder %v253, %v241
      %vm346 = vcmp.eq.s32.totalorder %v256, %v240
      %vm347 = vcmp.eq.s32.totalorder %v256, %v241
      %vm348 = vcmp.eq.s32.totalorder %v259, %v240
      %vm349 = vcmp.eq.s32.totalorder %v259, %v241
      %vm350 = vcmp.eq.s32.totalorder %v262, %v240
      %vm351 = vcmp.eq.s32.totalorder %v262, %v241
      %vm352 = vcmp.eq.s32.totalorder %v265, %v240
      %vm353 = vcmp.eq.s32.totalorder %v265, %v241
      %vm354 = vcmp.eq.s32.totalorder %v268, %v240
      %vm355 = vcmp.eq.s32.totalorder %v268, %v241
      %vm356 = vcmp.eq.s32.totalorder %v271, %v240
      %vm357 = vcmp.eq.s32.totalorder %v271, %v241
      %vm358 = vcmp.eq.s32.totalorder %v274, %v240
      %vm359 = vcmp.eq.s32.totalorder %v274, %v241
      %vm360 = vcmp.eq.s32.totalorder %v277, %v240
      %vm361 = vcmp.eq.s32.totalorder %v277, %v241
      %vm362 = vcmp.eq.s32.totalorder %v280, %v240
      %vm363 = vcmp.eq.s32.totalorder %v280, %v241
      %vm364 = vcmp.eq.s32.totalorder %v283, %v240
      %vm365 = vcmp.eq.s32.totalorder %v283, %v241
      %vm366 = vcmp.eq.s32.totalorder %v286, %v240
      %vm367 = vcmp.eq.s32.totalorder %v286, %v241
      %vm368 = vcmp.eq.s32.totalorder %v289, %v240
      %vm369 = vcmp.eq.s32.totalorder %v289, %v241
      %vm370 = vcmp.eq.s32.totalorder %v292, %v240
      %vm371 = vcmp.eq.s32.totalorder %v292, %v241
      %vm372 = vcmp.eq.s32.totalorder %v295, %v240
      %vm373 = vcmp.eq.s32.totalorder %v295, %v241
      %vm374 = vcmp.eq.s32.totalorder %v298, %v240
      %vm375 = vcmp.eq.s32.totalorder %v298, %v241
      %vm376 = vcmp.eq.s32.totalorder %v301, %v240
      %vm377 = vcmp.eq.s32.totalorder %v301, %v241
      %vm378 = vcmp.eq.s32.totalorder %v304, %v240
      %vm379 = vcmp.eq.s32.totalorder %v304, %v241
      %vm380 = vcmp.eq.s32.totalorder %v307, %v240
      %vm381 = vcmp.eq.s32.totalorder %v307, %v241
      %vm382 = vcmp.eq.s32.totalorder %v310, %v240
      %vm383 = vcmp.eq.s32.totalorder %v310, %v241
      %vm384 = vcmp.eq.s32.totalorder %v313, %v240
      %vm385 = vcmp.eq.s32.totalorder %v313, %v241
      %vm386 = vcmp.eq.s32.totalorder %v316, %v240
      %vm387 = vcmp.eq.s32.totalorder %v316, %v241
      %vm388 = vcmp.eq.s32.totalorder %v319, %v240
      %vm389 = vcmp.eq.s32.totalorder %v319, %v241
      %vm390 = vcmp.eq.s32.totalorder %v322, %v240
      %vm391 = vcmp.eq.s32.totalorder %v322, %v241
      %vm392 = vcmp.eq.s32.totalorder %v325, %v240
      %vm393 = vcmp.eq.s32.totalorder %v325, %v241
      %vm394 = vcmp.eq.s32.totalorder %v328, %v240
      %vm395 = vcmp.eq.s32.totalorder %v328, %v241
      %vm396 = vcmp.eq.s32.totalorder %v331, %v240
      %vm397 = vcmp.eq.s32.totalorder %v331, %v241
      %vm398 = vcmp.eq.s32.totalorder %v334, %v240
      %vm399 = vcmp.eq.s32.totalorder %v334, %v241
      %vm400 = vcmp.eq.s32.totalorder %v337, %v240
      %vm401 = vcmp.eq.s32.totalorder %v337, %v241
      %v402 = vsel %vm338, 1, 0
      %v403 = vsel %vm339, 1, 0
      %v404 = vsel %vm340, 1, 0
      %v405 = vsel %vm341, 1, 0
      %v406 = vsel %vm342, 1, 0
      %v407 = vsel %vm343, 1, 0
      %v408 = vsel %vm344, 1, 0
      %v409 = vsel %vm345, 1, 0
      %v410 = vsel %vm346, 1, 0
      %v411 = vsel %vm347, 1, 0
      %v412 = vsel %vm348, 1, 0
      %v413 = vsel %vm349, 1, 0
      %v414 = vsel %vm350, 1, 0
      %v415 = vsel %vm351, 1, 0
      %v416 = vsel %vm352, 1, 0
      %v417 = vsel %vm353, 1, 0
      %v418 = vsel %vm354, 1, 0
      %v419 = vsel %vm355, 1, 0
      %v420 = vsel %vm356, 1, 0
      %v421 = vsel %vm357, 1, 0
      %v422 = vsel %vm358, 1, 0
      %v423 = vsel %vm359, 1, 0
      %v424 = vsel %vm360, 1, 0
      %v425 = vsel %vm361, 1, 0
      %v426 = vsel %vm362, 1, 0
      %v427 = vsel %vm363, 1, 0
      %v428 = vsel %vm364, 1, 0
      %v429 = vsel %vm365, 1, 0
      %v430 = vsel %vm366, 1, 0
      %v431 = vsel %vm367, 1, 0
      %v432 = vsel %vm368, 1, 0
      %v433 = vsel %vm369, 1, 0
      %v434 = vsel %vm370, 1, 0
      %v435 = vsel %vm371, 1, 0
      %v436 = vsel %vm372, 1, 0
      %v437 = vsel %vm373, 1, 0
      %v438 = vsel %vm374, 1, 0
      %v439 = vsel %vm375, 1, 0
      %v440 = vsel %vm376, 1, 0
      %v441 = vsel %vm377, 1, 0
      %v442 = vsel %vm378, 1, 0
      %v443 = vsel %vm379, 1, 0
      %v444 = vsel %vm380, 1, 0
      %v445 = vsel %vm381, 1, 0
      %v446 = vsel %vm382, 1, 0
      %v447 = vsel %vm383, 1, 0
      %v448 = vsel %vm384, 1, 0
      %v449 = vsel %vm385, 1, 0
      %v450 = vsel %vm386, 1, 0
      %v451 = vsel %vm387, 1, 0
      %v452 = vsel %vm388, 1, 0
      %v453 = vsel %vm389, 1, 0
      %v454 = vsel %vm390, 1, 0
      %v455 = vsel %vm391, 1, 0
      %v456 = vsel %vm392, 1, 0
      %v457 = vsel %vm393, 1, 0
      %v458 = vsel %vm394, 1, 0
      %v459 = vsel %vm395, 1, 0
      %v460 = vsel %vm396, 1, 0
      %v461 = vsel %vm397, 1, 0
      %v462 = vsel %vm398, 1, 0
      %v463 = vsel %vm399, 1, 0
      %v464 = vsel %vm400, 1, 0
      %v465 = vsel %vm401, 1, 0
      %v466 = vcvt.s32.f32 %v402
      %v467 = vcvt.s32.f32 %v403
      %v468 = vcvt.s32.f32 %v404
      %v469 = vcvt.s32.f32 %v405
      %v470 = vcvt.s32.f32 %v406
      %v471 = vcvt.s32.f32 %v407
      %v472 = vcvt.s32.f32 %v408
      %v473 = vcvt.s32.f32 %v409
      %v474 = vcvt.s32.f32 %v410
      %v475 = vcvt.s32.f32 %v411
      %v476 = vcvt.s32.f32 %v412
      %v477 = vcvt.s32.f32 %v413
      %v478 = vcvt.s32.f32 %v414
      %v479 = vcvt.s32.f32 %v415
      %v480 = vcvt.s32.f32 %v416
      %v481 = vcvt.s32.f32 %v417
      %v482 = vcvt.s32.f32 %v418
      %v483 = vcvt.s32.f32 %v419
      %v484 = vcvt.s32.f32 %v420
      %v485 = vcvt.s32.f32 %v421
      %v486 = vcvt.s32.f32 %v422
      %v487 = vcvt.s32.f32 %v423
      %v488 = vcvt.s32.f32 %v424
      %v489 = vcvt.s32.f32 %v425
      %v490 = vcvt.s32.f32 %v426
      %v491 = vcvt.s32.f32 %v427
      %v492 = vcvt.s32.f32 %v428
      %v493 = vcvt.s32.f32 %v429
      %v494 = vcvt.s32.f32 %v430
      %v495 = vcvt.s32.f32 %v431
      %v496 = vcvt.s32.f32 %v432
      %v497 = vcvt.s32.f32 %v433
      %v498 = vcvt.s32.f32 %v434
      %v499 = vcvt.s32.f32 %v435
      %v500 = vcvt.s32.f32 %v436
      %v501 = vcvt.s32.f32 %v437
      %v502 = vcvt.s32.f32 %v438
      %v503 = vcvt.s32.f32 %v439
      %v504 = vcvt.s32.f32 %v440
      %v505 = vcvt.s32.f32 %v441
      %v506 = vcvt.s32.f32 %v442
      %v507 = vcvt.s32.f32 %v443
      %v508 = vcvt.s32.f32 %v444
      %v509 = vcvt.s32.f32 %v445
      %v510 = vcvt.s32.f32 %v446
      %v511 = vcvt.s32.f32 %v447
      %v512 = vcvt.s32.f32 %v448
      %v513 = vcvt.s32.f32 %v449
      %v514 = vcvt.s32.f32 %v450
      %v515 = vcvt.s32.f32 %v451
      %v516 = vcvt.s32.f32 %v452
      %v517 = vcvt.s32.f32 %v453
      %v518 = vcvt.s32.f32 %v454
      %v519 = vcvt.s32.f32 %v455
      %v520 = vcvt.s32.f32 %v456
      %v521 = vcvt.s32.f32 %v457
      %v522 = vcvt.s32.f32 %v458
      %v523 = vcvt.s32.f32 %v459
      %v524 = vcvt.s32.f32 %v460
      %v525 = vcvt.s32.f32 %v461
      %v526 = vcvt.s32.f32 %v462
      %v527 = vcvt.s32.f32 %v463
      %v528 = vcvt.s32.f32 %v464
      %v529 = vcvt.s32.f32 %v465
      %v530 = vld [vmem:[#allocation2] sm:$0xff]
      %v531 = vld [vmem:[#allocation2 + $0x8] sm:$0xff]
      %v532 = vand.u32 %v467, 4294901760
      %533 = vmatprep.subr.mxu0 %v532
      %v534 = vand.u32 %v466, 4294901760
      %535 = vmatpush1.msra.mxu0 %v534
      %v536 = vand.u32 %v469, 4294901760
      %537 = vmatprep.subr.mxu0 %v536
      %v538 = vand.u32 %v468, 4294901760
      %539 = vmatpush1.msra.mxu0 %v538
      %v540 = vand.u32 %v471, 4294901760
      %541 = vmatprep.subr.mxu0 %v540
      %v542 = vand.u32 %v470, 4294901760
      %543 = vmatpush1.msra.mxu0 %v542
      %v544 = vand.u32 %v473, 4294901760
      %545 = vmatprep.subr.mxu0 %v544
      %v546 = vand.u32 %v472, 4294901760
      %547 = vmatpush1.msra.mxu0 %v546
      %v548 = vand.u32 %v475, 4294901760
      %549 = vmatprep.subr.mxu0 %v548
      %v550 = vand.u32 %v474, 4294901760
      %551 = vmatpush1.msra.mxu0 %v550
      %v552 = vand.u32 %v477, 4294901760
      %553 = vmatprep.subr.mxu0 %v552
      %v554 = vand.u32 %v476, 4294901760
      %555 = vmatpush1.msra.mxu0 %v554
      %v556 = vand.u32 %v479, 4294901760
      %557 = vmatprep.subr.mxu0 %v556
      %v558 = vand.u32 %v478, 4294901760
      %559 = vmatpush1.msra.mxu0 %v558
      %v560 = vand.u32 %v481, 4294901760
      %561 = vmatprep.subr.mxu0 %v560
      %v562 = vand.u32 %v480, 4294901760
      %563 = vmatpush1.msra.mxu0 %v562
      %v564 = vand.u32 %v483, 4294901760
      %565 = vmatprep.subr.mxu0 %v564
      %v566 = vand.u32 %v482, 4294901760
      %567 = vmatpush1.msra.mxu0 %v566
      %v568 = vand.u32 %v485, 4294901760
      %569 = vmatprep.subr.mxu0 %v568
      %v570 = vand.u32 %v484, 4294901760
      %571 = vmatpush1.msra.mxu0 %v570
      %v572 = vand.u32 %v487, 4294901760
      %573 = vmatprep.subr.mxu0 %v572
      %v574 = vand.u32 %v486, 4294901760
      %575 = vmatpush1.msra.mxu0 %v574
      %v576 = vand.u32 %v489, 4294901760
      %577 = vmatprep.subr.mxu0 %v576
      %v578 = vand.u32 %v488, 4294901760
      %579 = vmatpush1.msra.mxu0 %v578
      %v580 = vand.u32 %v491, 4294901760
      %581 = vmatprep.subr.mxu0 %v580
      %v582 = vand.u32 %v490, 4294901760
      %583 = vmatpush1.msra.mxu0 %v582
      %v584 = vand.u32 %v493, 4294901760
      %585 = vmatprep.subr.mxu0 %v584
      %v586 = vand.u32 %v492, 4294901760
      %587 = vmatpush1.msra.mxu0 %v586
      %v588 = vand.u32 %v495, 4294901760
      %589 = vmatprep.subr.mxu0 %v588
      %v590 = vand.u32 %v494, 4294901760
      %591 = vmatpush1.msra.mxu0 %v590
      %v592 = vand.u32 %v497, 4294901760
      %593 = vmatprep.subr.mxu0 %v592
      %v594 = vand.u32 %v496, 4294901760
      %595 = vmatpush1.msra.mxu0 %v594
      %v596 = vand.u32 %v499, 4294901760
      %597 = vmatprep.subr.mxu0 %v596
      %v598 = vand.u32 %v498, 4294901760
      %599 = vmatpush1.msra.mxu0 %v598
      %v600 = vand.u32 %v501, 4294901760
      %601 = vmatprep.subr.mxu0 %v600
      %v602 = vand.u32 %v500, 4294901760
      %603 = vmatpush1.msra.mxu0 %v602
      %v604 = vand.u32 %v503, 4294901760
      %605 = vmatprep.subr.mxu0 %v604
      %v606 = vand.u32 %v502, 4294901760
      %607 = vmatpush1.msra.mxu0 %v606
      %v608 = vand.u32 %v505, 4294901760
      %609 = vmatprep.subr.mxu0 %v608
      %v610 = vand.u32 %v504, 4294901760
      %611 = vmatpush1.msra.mxu0 %v610
      %v612 = vand.u32 %v507, 4294901760
      %613 = vmatprep.subr.mxu0 %v612
      %v614 = vand.u32 %v506, 4294901760
      %615 = vmatpush1.msra.mxu0 %v614
      %v616 = vand.u32 %v509, 4294901760
      %617 = vmatprep.subr.mxu0 %v616
      %v618 = vand.u32 %v508, 4294901760
      %619 = vmatpush1.msra.mxu0 %v618
      %v620 = vand.u32 %v511, 4294901760
      %621 = vmatprep.subr.mxu0 %v620
      %v622 = vand.u32 %v510, 4294901760
      %623 = vmatpush1.msra.mxu0 %v622
      %v624 = vand.u32 %v513, 4294901760
      %625 = vmatprep.subr.mxu0 %v624
      %v626 = vand.u32 %v512, 4294901760
      %627 = vmatpush1.msra.mxu0 %v626
      %v628 = vand.u32 %v515, 4294901760
      %629 = vmatprep.subr.mxu0 %v628
      %v630 = vand.u32 %v514, 4294901760
      %631 = vmatpush1.msra.mxu0 %v630
      %v632 = vand.u32 %v517, 4294901760
      %633 = vmatprep.subr.mxu0 %v632
      %v634 = vand.u32 %v516, 4294901760
      %635 = vmatpush1.msra.mxu0 %v634
      %v636 = vand.u32 %v519, 4294901760
      %637 = vmatprep.subr.mxu0 %v636
      %v638 = vand.u32 %v518, 4294901760
      %639 = vmatpush1.msra.mxu0 %v638
      %v640 = vand.u32 %v521, 4294901760
      %641 = vmatprep.subr.mxu0 %v640
      %v642 = vand.u32 %v520, 4294901760
      %643 = vmatpush1.msra.mxu0 %v642
      %v644 = vand.u32 %v523, 4294901760
      %645 = vmatprep.subr.mxu0 %v644
      %v646 = vand.u32 %v522, 4294901760
      %647 = vmatpush1.msra.mxu0 %v646
      %v648 = vand.u32 %v525, 4294901760
      %649 = vmatprep.subr.mxu0 %v648
      %v650 = vand.u32 %v524, 4294901760
      %651 = vmatpush1.msra.mxu0 %v650
      %v652 = vand.u32 %v527, 4294901760
      %653 = vmatprep.subr.mxu0 %v652
      %v654 = vand.u32 %v526, 4294901760
      %655 = vmatpush1.msra.mxu0 %v654
      %v656 = vand.u32 %v529, 4294901760
      %657 = vmatprep.subr.mxu0 %v656
      %v658 = vand.u32 %v528, 4294901760
      %659 = vmatpush1.msra.mxu0 %v658
      %v660 = vand.u32 %v235, 4294901760
      %v661 = vsub.f32 %v235, %v660
      %v662 = vand.u32 %v661, 4294901760
      %v663 = vsub.f32 %v661, %v662
      %v664 = vand.u32 %v663, 4294901760
      %665 = vmatprep.mubr.f32.mxu0 %v664
      %v666 = vand.u32 %v234, 4294901760
      %v667 = vsub.f32 %v234, %v666
      %v668 = vand.u32 %v667, 4294901760
      %v669 = vsub.f32 %v667, %v668
      %v670 = vand.u32 %v669, 4294901760
      %671 = vmatmul.mubr.f32.gmra.mrb[0].mxu0 %v670
      %v672 = vpop.f32.mrb[0].mxu0
      %v673 = vadd.f32 0.0, %v672
      %v674 = vpop.f32.mrb[0].mxu0
      %v675 = vadd.f32 0.0, %v674
      %676 = vdwg.mxu0
      %v677 = vand.u32 %v467, 4294901760
      %v678 = vsub.f32 %v467, %v677
      %v679 = vand.u32 %v678, 4294901760
      %v680 = vsub.f32 %v678, %v679
      %v681 = vand.u32 %v680, 4294901760
      %682 = vmatprep.subr.mxu0 %v681
      %v683 = vand.u32 %v466, 4294901760
      %v684 = vsub.f32 %v466, %v683
      %v685 = vand.u32 %v684, 4294901760
      %v686 = vsub.f32 %v684, %v685
      %v687 = vand.u32 %v686, 4294901760
      %688 = vmatpush1.msra.mxu0 %v687
      %v689 = vand.u32 %v469, 4294901760
      %v690 = vsub.f32 %v469, %v689
      %v691 = vand.u32 %v690, 4294901760
      %v692 = vsub.f32 %v690, %v691
      %v693 = vand.u32 %v692, 4294901760
      %694 = vmatprep.subr.mxu0 %v693
      %v695 = vand.u32 %v468, 4294901760
      %v696 = vsub.f32 %v468, %v695
      %v697 = vand.u32 %v696, 4294901760
      %v698 = vsub.f32 %v696, %v697
      %v699 = vand.u32 %v698, 4294901760
      %700 = vmatpush1.msra.mxu0 %v699
      %v701 = vand.u32 %v471, 4294901760
      %v702 = vsub.f32 %v471, %v701
      %v703 = vand.u32 %v702, 4294901760
      %v704 = vsub.f32 %v702, %v703
      %v705 = vand.u32 %v704, 4294901760
      %706 = vmatprep.subr.mxu0 %v705
      %v707 = vand.u32 %v470, 4294901760
      %v708 = vsub.f32 %v470, %v707
      %v709 = vand.u32 %v708, 4294901760
      %v710 = vsub.f32 %v708, %v709
      %v711 = vand.u32 %v710, 4294901760
      %712 = vmatpush1.msra.mxu0 %v711
      %v713 = vand.u32 %v473, 4294901760
      %v714 = vsub.f32 %v473, %v713
      %v715 = vand.u32 %v714, 4294901760
      %v716 = vsub.f32 %v714, %v715
      %v717 = vand.u32 %v716, 4294901760
      %718 = vmatprep.subr.mxu0 %v717
      %v719 = vand.u32 %v472, 4294901760
      %v720 = vsub.f32 %v472, %v719
      %v721 = vand.u32 %v720, 4294901760
      %v722 = vsub.f32 %v720, %v721
      %v723 = vand.u32 %v722, 4294901760
      %724 = vmatpush1.msra.mxu0 %v723
      %v725 = vand.u32 %v475, 4294901760
      %v726 = vsub.f32 %v475, %v725
      %v727 = vand.u32 %v726, 4294901760
      %v728 = vsub.f32 %v726, %v727
      %v729 = vand.u32 %v728, 4294901760
      %730 = vmatprep.subr.mxu0 %v729
      %v731 = vand.u32 %v474, 4294901760
      %v732 = vsub.f32 %v474, %v731
      %v733 = vand.u32 %v732, 4294901760
      %v734 = vsub.f32 %v732, %v733
      %v735 = vand.u32 %v734, 4294901760
      %736 = vmatpush1.msra.mxu0 %v735
      %v737 = vand.u32 %v477, 4294901760
      %v738 = vsub.f32 %v477, %v737
      %v739 = vand.u32 %v738, 4294901760
      %v740 = vsub.f32 %v738, %v739
      %v741 = vand.u32 %v740, 4294901760
      %742 = vmatprep.subr.mxu0 %v741
      %v743 = vand.u32 %v476, 4294901760
      %v744 = vsub.f32 %v476, %v743
      %v745 = vand.u32 %v744, 4294901760
      %v746 = vsub.f32 %v744, %v745
      %v747 = vand.u32 %v746, 4294901760
      %748 = vmatpush1.msra.mxu0 %v747
      %v749 = vand.u32 %v479, 4294901760
      %v750 = vsub.f32 %v479, %v749
      %v751 = vand.u32 %v750, 4294901760
      %v752 = vsub.f32 %v750, %v751
      %v753 = vand.u32 %v752, 4294901760
      %754 = vmatprep.subr.mxu0 %v753
      %v755 = vand.u32 %v478, 4294901760
      %v756 = vsub.f32 %v478, %v755
      %v757 = vand.u32 %v756, 4294901760
      %v758 = vsub.f32 %v756, %v757
      %v759 = vand.u32 %v758, 4294901760
      %760 = vmatpush1.msra.mxu0 %v759
      %v761 = vand.u32 %v481, 4294901760
      %v762 = vsub.f32 %v481, %v761
      %v763 = vand.u32 %v762, 4294901760
      %v764 = vsub.f32 %v762, %v763
      %v765 = vand.u32 %v764, 4294901760
      %766 = vmatprep.subr.mxu0 %v765
      %v767 = vand.u32 %v480, 4294901760
      %v768 = vsub.f32 %v480, %v767
      %v769 = vand.u32 %v768, 4294901760
      %v770 = vsub.f32 %v768, %v769
      %v771 = vand.u32 %v770, 4294901760
      %772 = vmatpush1.msra.mxu0 %v771
      %v773 = vand.u32 %v483, 4294901760
      %v774 = vsub.f32 %v483, %v773
      %v775 = vand.u32 %v774, 4294901760
      %v776 = vsub.f32 %v774, %v775
      %v777 = vand.u32 %v776, 4294901760
      %778 = vmatprep.subr.mxu0 %v777
      %v779 = vand.u32 %v482, 4294901760
      %v780 = vsub.f32 %v482, %v779
      %v781 = vand.u32 %v780, 4294901760
      %v782 = vsub.f32 %v780, %v781
      %v783 = vand.u32 %v782, 4294901760
      %784 = vmatpush1.msra.mxu0 %v783
      %v785 = vand.u32 %v485, 4294901760
      %v786 = vsub.f32 %v485, %v785
      %v787 = vand.u32 %v786, 4294901760
      %v788 = vsub.f32 %v786, %v787
      %v789 = vand.u32 %v788, 4294901760
      %790 = vmatprep.subr.mxu0 %v789
      %v791 = vand.u32 %v484, 4294901760
      %v792 = vsub.f32 %v484, %v791
      %v793 = vand.u32 %v792, 4294901760
      %v794 = vsub.f32 %v792, %v793
      %v795 = vand.u32 %v794, 4294901760
      %796 = vmatpush1.msra.mxu0 %v795
      %v797 = vand.u32 %v487, 4294901760
      %v798 = vsub.f32 %v487, %v797
      %v799 = vand.u32 %v798, 4294901760
      %v800 = vsub.f32 %v798, %v799
      %v801 = vand.u32 %v800, 4294901760
      %802 = vmatprep.subr.mxu0 %v801
      %v803 = vand.u32 %v486, 4294901760
      %v804 = vsub.f32 %v486, %v803
      %v805 = vand.u32 %v804, 4294901760
      %v806 = vsub.f32 %v804, %v805
      %v807 = vand.u32 %v806, 4294901760
      %808 = vmatpush1.msra.mxu0 %v807
      %v809 = vand.u32 %v489, 4294901760
      %v810 = vsub.f32 %v489, %v809
      %v811 = vand.u32 %v810, 4294901760
      %v812 = vsub.f32 %v810, %v811
      %v813 = vand.u32 %v812, 4294901760
      %814 = vmatprep.subr.mxu0 %v813
      %v815 = vand.u32 %v488, 4294901760
      %v816 = vsub.f32 %v488, %v815
      %v817 = vand.u32 %v816, 4294901760
      %v818 = vsub.f32 %v816, %v817
      %v819 = vand.u32 %v818, 4294901760
      %820 = vmatpush1.msra.mxu0 %v819
      %v821 = vand.u32 %v491, 4294901760
      %v822 = vsub.f32 %v491, %v821
      %v823 = vand.u32 %v822, 4294901760
      %v824 = vsub.f32 %v822, %v823
      %v825 = vand.u32 %v824, 4294901760
      %826 = vmatprep.subr.mxu0 %v825
      %v827 = vand.u32 %v490, 4294901760
      %v828 = vsub.f32 %v490, %v827
      %v829 = vand.u32 %v828, 4294901760
      %v830 = vsub.f32 %v828, %v829
      %v831 = vand.u32 %v830, 4294901760
      %832 = vmatpush1.msra.mxu0 %v831
      %v833 = vand.u32 %v493, 4294901760
      %v834 = vsub.f32 %v493, %v833
      %v835 = vand.u32 %v834, 4294901760
      %v836 = vsub.f32 %v834, %v835
      %v837 = vand.u32 %v836, 4294901760
      %838 = vmatprep.subr.mxu0 %v837
      %v839 = vand.u32 %v492, 4294901760
      %v840 = vsub.f32 %v492, %v839
      %v841 = vand.u32 %v840, 4294901760
      %v842 = vsub.f32 %v840, %v841
      %v843 = vand.u32 %v842, 4294901760
      %844 = vmatpush1.msra.mxu0 %v843
      %v845 = vand.u32 %v495, 4294901760
      %v846 = vsub.f32 %v495, %v845
      %v847 = vand.u32 %v846, 4294901760
      %v848 = vsub.f32 %v846, %v847
      %v849 = vand.u32 %v848, 4294901760
      %850 = vmatprep.subr.mxu0 %v849
      %v851 = vand.u32 %v494, 4294901760
      %v852 = vsub.f32 %v494, %v851
      %v853 = vand.u32 %v852, 4294901760
      %v854 = vsub.f32 %v852, %v853
      %v855 = vand.u32 %v854, 4294901760
      %856 = vmatpush1.msra.mxu0 %v855
      %v857 = vand.u32 %v497, 4294901760
      %v858 = vsub.f32 %v497, %v857
      %v859 = vand.u32 %v858, 4294901760
      %v860 = vsub.f32 %v858, %v859
      %v861 = vand.u32 %v860, 4294901760
      %862 = vmatprep.subr.mxu0 %v861
      %v863 = vand.u32 %v496, 4294901760
      %v864 = vsub.f32 %v496, %v863
      %v865 = vand.u32 %v864, 4294901760
      %v866 = vsub.f32 %v864, %v865
      %v867 = vand.u32 %v866, 4294901760
      %868 = vmatpush1.msra.mxu0 %v867
      %v869 = vand.u32 %v499, 4294901760
      %v870 = vsub.f32 %v499, %v869
      %v871 = vand.u32 %v870, 4294901760
      %v872 = vsub.f32 %v870, %v871
      %v873 = vand.u32 %v872, 4294901760
      %874 = vmatprep.subr.mxu0 %v873
      %v875 = vand.u32 %v498, 4294901760
      %v876 = vsub.f32 %v498, %v875
      %v877 = vand.u32 %v876, 4294901760
      %v878 = vsub.f32 %v876, %v877
      %v879 = vand.u32 %v878, 4294901760
      %880 = vmatpush1.msra.mxu0 %v879
      %v881 = vand.u32 %v501, 4294901760
      %v882 = vsub.f32 %v501, %v881
      %v883 = vand.u32 %v882, 4294901760
      %v884 = vsub.f32 %v882, %v883
      %v885 = vand.u32 %v884, 4294901760
      %886 = vmatprep.subr.mxu0 %v885
      %v887 = vand.u32 %v500, 4294901760
      %v888 = vsub.f32 %v500, %v887
      %v889 = vand.u32 %v888, 4294901760
      %v890 = vsub.f32 %v888, %v889
      %v891 = vand.u32 %v890, 4294901760
      %892 = vmatpush1.msra.mxu0 %v891
      %v893 = vand.u32 %v503, 4294901760
      %v894 = vsub.f32 %v503, %v893
      %v895 = vand.u32 %v894, 4294901760
      %v896 = vsub.f32 %v894, %v895
      %v897 = vand.u32 %v896, 4294901760
      %898 = vmatprep.subr.mxu0 %v897
      %v899 = vand.u32 %v502, 4294901760
      %v900 = vsub.f32 %v502, %v899
      %v901 = vand.u32 %v900, 4294901760
      %v902 = vsub.f32 %v900, %v901
      %v903 = vand.u32 %v902, 4294901760
      %904 = vmatpush1.msra.mxu0 %v903
      %v905 = vand.u32 %v505, 4294901760
      %v906 = vsub.f32 %v505, %v905
      %v907 = vand.u32 %v906, 4294901760
      %v908 = vsub.f32 %v906, %v907
      %v909 = vand.u32 %v908, 4294901760
      %910 = vmatprep.subr.mxu0 %v909
      %v911 = vand.u32 %v504, 4294901760
      %v912 = vsub.f32 %v504, %v911
      %v913 = vand.u32 %v912, 4294901760
      %v914 = vsub.f32 %v912, %v913
      %v915 = vand.u32 %v914, 4294901760
      %916 = vmatpush1.msra.mxu0 %v915
      %v917 = vand.u32 %v507, 4294901760
      %v918 = vsub.f32 %v507, %v917
      %v919 = vand.u32 %v918, 4294901760
      %v920 = vsub.f32 %v918, %v919
      %v921 = vand.u32 %v920, 4294901760
      %922 = vmatprep.subr.mxu0 %v921
      %v923 = vand.u32 %v506, 4294901760
      %v924 = vsub.f32 %v506, %v923
      %v925 = vand.u32 %v924, 4294901760
      %v926 = vsub.f32 %v924, %v925
      %v927 = vand.u32 %v926, 4294901760
      %928 = vmatpush1.msra.mxu0 %v927
      %v929 = vand.u32 %v509, 4294901760
      %v930 = vsub.f32 %v509, %v929
      %v931 = vand.u32 %v930, 4294901760
      %v932 = vsub.f32 %v930, %v931
      %v933 = vand.u32 %v932, 4294901760
      %934 = vmatprep.subr.mxu0 %v933
      %v935 = vand.u32 %v508, 4294901760
      %v936 = vsub.f32 %v508, %v935
      %v937 = vand.u32 %v936, 4294901760
      %v938 = vsub.f32 %v936, %v937
      %v939 = vand.u32 %v938, 4294901760
      %940 = vmatpush1.msra.mxu0 %v939
      %v941 = vand.u32 %v511, 4294901760
      %v942 = vsub.f32 %v511, %v941
      %v943 = vand.u32 %v942, 4294901760
      %v944 = vsub.f32 %v942, %v943
      %v945 = vand.u32 %v944, 4294901760
      %946 = vmatprep.subr.mxu0 %v945
      %v947 = vand.u32 %v510, 4294901760
      %v948 = vsub.f32 %v510, %v947
      %v949 = vand.u32 %v948, 4294901760
      %v950 = vsub.f32 %v948, %v949
      %v951 = vand.u32 %v950, 4294901760
      %952 = vmatpush1.msra.mxu0 %v951
      %v953 = vand.u32 %v513, 4294901760
      %v954 = vsub.f32 %v513, %v953
      %v955 = vand.u32 %v954, 4294901760
      %v956 = vsub.f32 %v954, %v955
      %v957 = vand.u32 %v956, 4294901760
      %958 = vmatprep.subr.mxu0 %v957
      %v959 = vand.u32 %v512, 4294901760
      %v960 = vsub.f32 %v512, %v959
      %v961 = vand.u32 %v960, 4294901760
      %v962 = vsub.f32 %v960, %v961
      %v963 = vand.u32 %v962, 4294901760
      %964 = vmatpush1.msra.mxu0 %v963
      %v965 = vand.u32 %v515, 4294901760
      %v966 = vsub.f32 %v515, %v965
      %v967 = vand.u32 %v966, 4294901760
      %v968 = vsub.f32 %v966, %v967
      %v969 = vand.u32 %v968, 4294901760
      %970 = vmatprep.subr.mxu0 %v969
      %v971 = vand.u32 %v514, 4294901760
      %v972 = vsub.f32 %v514, %v971
      %v973 = vand.u32 %v972, 4294901760
      %v974 = vsub.f32 %v972, %v973
      %v975 = vand.u32 %v974, 4294901760
      %976 = vmatpush1.msra.mxu0 %v975
      %v977 = vand.u32 %v517, 4294901760
      %v978 = vsub.f32 %v517, %v977
      %v979 = vand.u32 %v978, 4294901760
      %v980 = vsub.f32 %v978, %v979
      %v981 = vand.u32 %v980, 4294901760
      %982 = vmatprep.subr.mxu0 %v981
      %v983 = vand.u32 %v516, 4294901760
      %v984 = vsub.f32 %v516, %v983
      %v985 = vand.u32 %v984, 4294901760
      %v986 = vsub.f32 %v984, %v985
      %v987 = vand.u32 %v986, 4294901760
      %988 = vmatpush1.msra.mxu0 %v987
      %v989 = vand.u32 %v519, 4294901760
      %v990 = vsub.f32 %v519, %v989
      %v991 = vand.u32 %v990, 4294901760
      %v992 = vsub.f32 %v990, %v991
      %v993 = vand.u32 %v992, 4294901760
      %994 = vmatprep.subr.mxu0 %v993
      %v995 = vand.u32 %v518, 4294901760
      %v996 = vsub.f32 %v518, %v995
      %v997 = vand.u32 %v996, 4294901760
      %v998 = vsub.f32 %v996, %v997
      %v999 = vand.u32 %v998, 4294901760
      %1000 = vmatpush1.msra.mxu0 %v999
      %v1001 = vand.u32 %v521, 4294901760
      %v1002 = vsub.f32 %v521, %v1001
      %v1003 = vand.u32 %v1002, 4294901760
      %v1004 = vsub.f32 %v1002, %v1003
      %v1005 = vand.u32 %v1004, 4294901760
      %1006 = vmatprep.subr.mxu0 %v1005
      %v1007 = vand.u32 %v520, 4294901760
      %v1008 = vsub.f32 %v520, %v1007
      %v1009 = vand.u32 %v1008, 4294901760
      %v1010 = vsub.f32 %v1008, %v1009
      %v1011 = vand.u32 %v1010, 4294901760
      %1012 = vmatpush1.msra.mxu0 %v1011
      %v1013 = vand.u32 %v523, 4294901760
      %v1014 = vsub.f32 %v523, %v1013
      %v1015 = vand.u32 %v1014, 4294901760
      %v1016 = vsub.f32 %v1014, %v1015
      %v1017 = vand.u32 %v1016, 4294901760
      %1018 = vmatprep.subr.mxu0 %v1017
      %v1019 = vand.u32 %v522, 4294901760
      %v1020 = vsub.f32 %v522, %v1019
      %v1021 = vand.u32 %v1020, 4294901760
      %v1022 = vsub.f32 %v1020, %v1021
      %v1023 = vand.u32 %v1022, 4294901760
      %1024 = vmatpush1.msra.mxu0 %v1023
      %v1025 = vand.u32 %v525, 4294901760
      %v1026 = vsub.f32 %v525, %v1025
      %v1027 = vand.u32 %v1026, 4294901760
      %v1028 = vsub.f32 %v1026, %v1027
      %v1029 = vand.u32 %v1028, 4294901760
      %1030 = vmatprep.subr.mxu0 %v1029
      %v1031 = vand.u32 %v524, 4294901760
      %v1032 = vsub.f32 %v524, %v1031
      %v1033 = vand.u32 %v1032, 4294901760
      %v1034 = vsub.f32 %v1032, %v1033
      %v1035 = vand.u32 %v1034, 4294901760
      %1036 = vmatpush1.msra.mxu0 %v1035
      %v1037 = vand.u32 %v527, 4294901760
      %v1038 = vsub.f32 %v527, %v1037
      %v1039 = vand.u32 %v1038, 4294901760
      %v1040 = vsub.f32 %v1038, %v1039
      %v1041 = vand.u32 %v1040, 4294901760
      %1042 = vmatprep.subr.mxu0 %v1041
      %v1043 = vand.u32 %v526, 4294901760
      %v1044 = vsub.f32 %v526, %v1043
      %v1045 = vand.u32 %v1044, 4294901760
      %v1046 = vsub.f32 %v1044, %v1045
      %v1047 = vand.u32 %v1046, 4294901760
      %1048 = vmatpush1.msra.mxu0 %v1047
      %v1049 = vand.u32 %v529, 4294901760
      %v1050 = vsub.f32 %v529, %v1049
      %v1051 = vand.u32 %v1050, 4294901760
      %v1052 = vsub.f32 %v1050, %v1051
      %v1053 = vand.u32 %v1052, 4294901760
      %1054 = vmatprep.subr.mxu0 %v1053
      %v1055 = vand.u32 %v528, 4294901760
      %v1056 = vsub.f32 %v528, %v1055
      %v1057 = vand.u32 %v1056, 4294901760
      %v1058 = vsub.f32 %v1056, %v1057
      %v1059 = vand.u32 %v1058, 4294901760
      %1060 = vmatpush1.msra.mxu0 %v1059
      %v1061 = vand.u32 %v235, 4294901760
      %1062 = vmatprep.mubr.f32.mxu0 %v1061
      %v1063 = vand.u32 %v234, 4294901760
      %1064 = vmatmul.mubr.f32.gmra.mrb[0].mxu0 %v1063
      %v1065 = vpop.f32.mrb[0].mxu0
      %v1066 = vadd.f32 %v673, %v1065
      %v1067 = vpop.f32.mrb[0].mxu0
      %v1068 = vadd.f32 %v675, %v1067
      %1069 = vdwg.mxu0
      %v1070 = vand.u32 %v467, 4294901760
      %v1071 = vsub.f32 %v467, %v1070
      %1072 = vmatprep.subr.mxu0 %v1071
      %v1073 = vand.u32 %v466, 4294901760
      %v1074 = vsub.f32 %v466, %v1073
      %1075 = vmatpush1.msra.mxu0 %v1074
      %v1076 = vand.u32 %v469, 4294901760
      %v1077 = vsub.f32 %v469, %v1076
      %1078 = vmatprep.subr.mxu0 %v1077
      %v1079 = vand.u32 %v468, 4294901760
      %v1080 = vsub.f32 %v468, %v1079
      %1081 = vmatpush1.msra.mxu0 %v1080
      %v1082 = vand.u32 %v471, 4294901760
      %v1083 = vsub.f32 %v471, %v1082
      %1084 = vmatprep.subr.mxu0 %v1083
      %v1085 = vand.u32 %v470, 4294901760
      %v1086 = vsub.f32 %v470, %v1085
      %1087 = vmatpush1.msra.mxu0 %v1086
      %v1088 = vand.u32 %v473, 4294901760
      %v1089 = vsub.f32 %v473, %v1088
      %1090 = vmatprep.subr.mxu0 %v1089
      %v1091 = vand.u32 %v472, 4294901760
      %v1092 = vsub.f32 %v472, %v1091
      %1093 = vmatpush1.msra.mxu0 %v1092
      %v1094 = vand.u32 %v475, 4294901760
      %v1095 = vsub.f32 %v475, %v1094
      %1096 = vmatprep.subr.mxu0 %v1095
      %v1097 = vand.u32 %v474, 4294901760
      %v1098 = vsub.f32 %v474, %v1097
      %1099 = vmatpush1.msra.mxu0 %v1098
      %v1100 = vand.u32 %v477, 4294901760
      %v1101 = vsub.f32 %v477, %v1100
      %1102 = vmatprep.subr.mxu0 %v1101
      %v1103 = vand.u32 %v476, 4294901760
      %v1104 = vsub.f32 %v476, %v1103
      %1105 = vmatpush1.msra.mxu0 %v1104
      %v1106 = vand.u32 %v479, 4294901760
      %v1107 = vsub.f32 %v479, %v1106
      %1108 = vmatprep.subr.mxu0 %v1107
      %v1109 = vand.u32 %v478, 4294901760
      %v1110 = vsub.f32 %v478, %v1109
      %1111 = vmatpush1.msra.mxu0 %v1110
      %v1112 = vand.u32 %v481, 4294901760
      %v1113 = vsub.f32 %v481, %v1112
      %1114 = vmatprep.subr.mxu0 %v1113
      %v1115 = vand.u32 %v480, 4294901760
      %v1116 = vsub.f32 %v480, %v1115
      %1117 = vmatpush1.msra.mxu0 %v1116
      %v1118 = vand.u32 %v483, 4294901760
      %v1119 = vsub.f32 %v483, %v1118
      %1120 = vmatprep.subr.mxu0 %v1119
      %v1121 = vand.u32 %v482, 4294901760
      %v1122 = vsub.f32 %v482, %v1121
      %1123 = vmatpush1.msra.mxu0 %v1122
      %v1124 = vand.u32 %v485, 4294901760
      %v1125 = vsub.f32 %v485, %v1124
      %1126 = vmatprep.subr.mxu0 %v1125
      %v1127 = vand.u32 %v484, 4294901760
      %v1128 = vsub.f32 %v484, %v1127
      %1129 = vmatpush1.msra.mxu0 %v1128
      %v1130 = vand.u32 %v487, 4294901760
      %v1131 = vsub.f32 %v487, %v1130
      %1132 = vmatprep.subr.mxu0 %v1131
      %v1133 = vand.u32 %v486, 4294901760
      %v1134 = vsub.f32 %v486, %v1133
      %1135 = vmatpush1.msra.mxu0 %v1134
      %v1136 = vand.u32 %v489, 4294901760
      %v1137 = vsub.f32 %v489, %v1136
      %1138 = vmatprep.subr.mxu0 %v1137
      %v1139 = vand.u32 %v488, 4294901760
      %v1140 = vsub.f32 %v488, %v1139
      %1141 = vmatpush1.msra.mxu0 %v1140
      %v1142 = vand.u32 %v491, 4294901760
      %v1143 = vsub.f32 %v491, %v1142
      %1144 = vmatprep.subr.mxu0 %v1143
      %v1145 = vand.u32 %v490, 4294901760
      %v1146 = vsub.f32 %v490, %v1145
      %1147 = vmatpush1.msra.mxu0 %v1146
      %v1148 = vand.u32 %v493, 4294901760
      %v1149 = vsub.f32 %v493, %v1148
      %1150 = vmatprep.subr.mxu0 %v1149
      %v1151 = vand.u32 %v492, 4294901760
      %v1152 = vsub.f32 %v492, %v1151
      %1153 = vmatpush1.msra.mxu0 %v1152
      %v1154 = vand.u32 %v495, 4294901760
      %v1155 = vsub.f32 %v495, %v1154
      %1156 = vmatprep.subr.mxu0 %v1155
      %v1157 = vand.u32 %v494, 4294901760
      %v1158 = vsub.f32 %v494, %v1157
      %1159 = vmatpush1.msra.mxu0 %v1158
      %v1160 = vand.u32 %v497, 4294901760
      %v1161 = vsub.f32 %v497, %v1160
      %1162 = vmatprep.subr.mxu0 %v1161
      %v1163 = vand.u32 %v496, 4294901760
      %v1164 = vsub.f32 %v496, %v1163
      %1165 = vmatpush1.msra.mxu0 %v1164
      %v1166 = vand.u32 %v499, 4294901760
      %v1167 = vsub.f32 %v499, %v1166
      %1168 = vmatprep.subr.mxu0 %v1167
      %v1169 = vand.u32 %v498, 4294901760
      %v1170 = vsub.f32 %v498, %v1169
      %1171 = vmatpush1.msra.mxu0 %v1170
      %v1172 = vand.u32 %v501, 4294901760
      %v1173 = vsub.f32 %v501, %v1172
      %1174 = vmatprep.subr.mxu0 %v1173
      %v1175 = vand.u32 %v500, 4294901760
      %v1176 = vsub.f32 %v500, %v1175
      %1177 = vmatpush1.msra.mxu0 %v1176
      %v1178 = vand.u32 %v503, 4294901760
      %v1179 = vsub.f32 %v503, %v1178
      %1180 = vmatprep.subr.mxu0 %v1179
      %v1181 = vand.u32 %v502, 4294901760
      %v1182 = vsub.f32 %v502, %v1181
      %1183 = vmatpush1.msra.mxu0 %v1182
      %v1184 = vand.u32 %v505, 4294901760
      %v1185 = vsub.f32 %v505, %v1184
      %1186 = vmatprep.subr.mxu0 %v1185
      %v1187 = vand.u32 %v504, 4294901760
      %v1188 = vsub.f32 %v504, %v1187
      %1189 = vmatpush1.msra.mxu0 %v1188
      %v1190 = vand.u32 %v507, 4294901760
      %v1191 = vsub.f32 %v507, %v1190
      %1192 = vmatprep.subr.mxu0 %v1191
      %v1193 = vand.u32 %v506, 4294901760
      %v1194 = vsub.f32 %v506, %v1193
      %1195 = vmatpush1.msra.mxu0 %v1194
      %v1196 = vand.u32 %v509, 4294901760
      %v1197 = vsub.f32 %v509, %v1196
      %1198 = vmatprep.subr.mxu0 %v1197
      %v1199 = vand.u32 %v508, 4294901760
      %v1200 = vsub.f32 %v508, %v1199
      %1201 = vmatpush1.msra.mxu0 %v1200
      %v1202 = vand.u32 %v511, 4294901760
      %v1203 = vsub.f32 %v511, %v1202
      %1204 = vmatprep.subr.mxu0 %v1203
      %v1205 = vand.u32 %v510, 4294901760
      %v1206 = vsub.f32 %v510, %v1205
      %1207 = vmatpush1.msra.mxu0 %v1206
      %v1208 = vand.u32 %v513, 4294901760
      %v1209 = vsub.f32 %v513, %v1208
      %1210 = vmatprep.subr.mxu0 %v1209
      %v1211 = vand.u32 %v512, 4294901760
      %v1212 = vsub.f32 %v512, %v1211
      %1213 = vmatpush1.msra.mxu0 %v1212
      %v1214 = vand.u32 %v515, 4294901760
      %v1215 = vsub.f32 %v515, %v1214
      %1216 = vmatprep.subr.mxu0 %v1215
      %v1217 = vand.u32 %v514, 4294901760
      %v1218 = vsub.f32 %v514, %v1217
      %1219 = vmatpush1.msra.mxu0 %v1218
      %v1220 = vand.u32 %v517, 4294901760
      %v1221 = vsub.f32 %v517, %v1220
      %1222 = vmatprep.subr.mxu0 %v1221
      %v1223 = vand.u32 %v516, 4294901760
      %v1224 = vsub.f32 %v516, %v1223
      %1225 = vmatpush1.msra.mxu0 %v1224
      %v1226 = vand.u32 %v519, 4294901760
      %v1227 = vsub.f32 %v519, %v1226
      %1228 = vmatprep.subr.mxu0 %v1227
      %v1229 = vand.u32 %v518, 4294901760
      %v1230 = vsub.f32 %v518, %v1229
      %1231 = vmatpush1.msra.mxu0 %v1230
      %v1232 = vand.u32 %v521, 4294901760
      %v1233 = vsub.f32 %v521, %v1232
      %1234 = vmatprep.subr.mxu0 %v1233
      %v1235 = vand.u32 %v520, 4294901760
      %v1236 = vsub.f32 %v520, %v1235
      %1237 = vmatpush1.msra.mxu0 %v1236
      %v1238 = vand.u32 %v523, 4294901760
      %v1239 = vsub.f32 %v523, %v1238
      %1240 = vmatprep.subr.mxu0 %v1239
      %v1241 = vand.u32 %v522, 4294901760
      %v1242 = vsub.f32 %v522, %v1241
      %1243 = vmatpush1.msra.mxu0 %v1242
      %v1244 = vand.u32 %v525, 4294901760
      %v1245 = vsub.f32 %v525, %v1244
      %1246 = vmatprep.subr.mxu0 %v1245
      %v1247 = vand.u32 %v524, 4294901760
      %v1248 = vsub.f32 %v524, %v1247
      %1249 = vmatpush1.msra.mxu0 %v1248
      %v1250 = vand.u32 %v527, 4294901760
      %v1251 = vsub.f32 %v527, %v1250
      %1252 = vmatprep.subr.mxu0 %v1251
      %v1253 = vand.u32 %v526, 4294901760
      %v1254 = vsub.f32 %v526, %v1253
      %1255 = vmatpush1.msra.mxu0 %v1254
      %v1256 = vand.u32 %v529, 4294901760
      %v1257 = vsub.f32 %v529, %v1256
      %1258 = vmatprep.subr.mxu0 %v1257
      %v1259 = vand.u32 %v528, 4294901760
      %v1260 = vsub.f32 %v528, %v1259
      %1261 = vmatpush1.msra.mxu0 %v1260
      %v1262 = vand.u32 %v235, 4294901760
      %v1263 = vsub.f32 %v235, %v1262
      %1264 = vmatprep.mubr.f32.mxu0 %v1263
      %v1265 = vand.u32 %v234, 4294901760
      %v1266 = vsub.f32 %v234, %v1265
      %1267 = vmatmul.mubr.f32.gmra.mrb[0].mxu0 %v1266
      %v1268 = vpop.f32.mrb[0].mxu0
      %v1269 = vadd.f32 %v1066, %v1268
      %v1270 = vpop.f32.mrb[0].mxu0
      %v1271 = vadd.f32 %v1068, %v1270
      %1272 = vdwg.mxu0
      %v1273 = vand.u32 %v467, 4294901760
      %1274 = vmatprep.subr.mxu0 %v1273
      %v1275 = vand.u32 %v466, 4294901760
      %1276 = vmatpush1.msra.mxu0 %v1275
      %v1277 = vand.u32 %v469, 4294901760
      %1278 = vmatprep.subr.mxu0 %v1277
      %v1279 = vand.u32 %v468, 4294901760
      %1280 = vmatpush1.msra.mxu0 %v1279
      %v1281 = vand.u32 %v471, 4294901760
      %1282 = vmatprep.subr.mxu0 %v1281
      %v1283 = vand.u32 %v470, 4294901760
      %1284 = vmatpush1.msra.mxu0 %v1283
      %v1285 = vand.u32 %v473, 4294901760
      %1286 = vmatprep.subr.mxu0 %v1285
      %v1287 = vand.u32 %v472, 4294901760
      %1288 = vmatpush1.msra.mxu0 %v1287
      %v1289 = vand.u32 %v475, 4294901760
      %1290 = vmatprep.subr.mxu0 %v1289
      %v1291 = vand.u32 %v474, 4294901760
      %1292 = vmatpush1.msra.mxu0 %v1291
      %v1293 = vand.u32 %v477, 4294901760
      %1294 = vmatprep.subr.mxu0 %v1293
      %v1295 = vand.u32 %v476, 4294901760
      %1296 = vmatpush1.msra.mxu0 %v1295
      %v1297 = vand.u32 %v479, 4294901760
      %1298 = vmatprep.subr.mxu0 %v1297
      %v1299 = vand.u32 %v478, 4294901760
      %1300 = vmatpush1.msra.mxu0 %v1299
      %v1301 = vand.u32 %v481, 4294901760
      %1302 = vmatprep.subr.mxu0 %v1301
      %v1303 = vand.u32 %v480, 4294901760
      %1304 = vmatpush1.msra.mxu0 %v1303
      %v1305 = vand.u32 %v483, 4294901760
      %1306 = vmatprep.subr.mxu0 %v1305
      %v1307 = vand.u32 %v482, 4294901760
      %1308 = vmatpush1.msra.mxu0 %v1307
      %v1309 = vand.u32 %v485, 4294901760
      %1310 = vmatprep.subr.mxu0 %v1309
      %v1311 = vand.u32 %v484, 4294901760
      %1312 = vmatpush1.msra.mxu0 %v1311
      %v1313 = vand.u32 %v487, 4294901760
      %1314 = vmatprep.subr.mxu0 %v1313
      %v1315 = vand.u32 %v486, 4294901760
      %1316 = vmatpush1.msra.mxu0 %v1315
      %v1317 = vand.u32 %v489, 4294901760
      %1318 = vmatprep.subr.mxu0 %v1317
      %v1319 = vand.u32 %v488, 4294901760
      %1320 = vmatpush1.msra.mxu0 %v1319
      %v1321 = vand.u32 %v491, 4294901760
      %1322 = vmatprep.subr.mxu0 %v1321
      %v1323 = vand.u32 %v490, 4294901760
      %1324 = vmatpush1.msra.mxu0 %v1323
      %v1325 = vand.u32 %v493, 4294901760
      %1326 = vmatprep.subr.mxu0 %v1325
      %v1327 = vand.u32 %v492, 4294901760
      %1328 = vmatpush1.msra.mxu0 %v1327
      %v1329 = vand.u32 %v495, 4294901760
      %1330 = vmatprep.subr.mxu0 %v1329
      %v1331 = vand.u32 %v494, 4294901760
      %1332 = vmatpush1.msra.mxu0 %v1331
      %v1333 = vand.u32 %v497, 4294901760
      %1334 = vmatprep.subr.mxu0 %v1333
      %v1335 = vand.u32 %v496, 4294901760
      %1336 = vmatpush1.msra.mxu0 %v1335
      %v1337 = vand.u32 %v499, 4294901760
      %1338 = vmatprep.subr.mxu0 %v1337
      %v1339 = vand.u32 %v498, 4294901760
      %1340 = vmatpush1.msra.mxu0 %v1339
      %v1341 = vand.u32 %v501, 4294901760
      %1342 = vmatprep.subr.mxu0 %v1341
      %v1343 = vand.u32 %v500, 4294901760
      %1344 = vmatpush1.msra.mxu0 %v1343
      %v1345 = vand.u32 %v503, 4294901760
      %1346 = vmatprep.subr.mxu0 %v1345
      %v1347 = vand.u32 %v502, 4294901760
      %1348 = vmatpush1.msra.mxu0 %v1347
      %v1349 = vand.u32 %v505, 4294901760
      %1350 = vmatprep.subr.mxu0 %v1349
      %v1351 = vand.u32 %v504, 4294901760
      %1352 = vmatpush1.msra.mxu0 %v1351
      %v1353 = vand.u32 %v507, 4294901760
      %1354 = vmatprep.subr.mxu0 %v1353
      %v1355 = vand.u32 %v506, 4294901760
      %1356 = vmatpush1.msra.mxu0 %v1355
      %v1357 = vand.u32 %v509, 4294901760
      %1358 = vmatprep.subr.mxu0 %v1357
      %v1359 = vand.u32 %v508, 4294901760
      %1360 = vmatpush1.msra.mxu0 %v1359
      %v1361 = vand.u32 %v511, 4294901760
      %1362 = vmatprep.subr.mxu0 %v1361
      %v1363 = vand.u32 %v510, 4294901760
      %1364 = vmatpush1.msra.mxu0 %v1363
      %v1365 = vand.u32 %v513, 4294901760
      %1366 = vmatprep.subr.mxu0 %v1365
      %v1367 = vand.u32 %v512, 4294901760
      %1368 = vmatpush1.msra.mxu0 %v1367
      %v1369 = vand.u32 %v515, 4294901760
      %1370 = vmatprep.subr.mxu0 %v1369
      %v1371 = vand.u32 %v514, 4294901760
      %1372 = vmatpush1.msra.mxu0 %v1371
      %v1373 = vand.u32 %v517, 4294901760
      %1374 = vmatprep.subr.mxu0 %v1373
      %v1375 = vand.u32 %v516, 4294901760
      %1376 = vmatpush1.msra.mxu0 %v1375
      %v1377 = vand.u32 %v519, 4294901760
      %1378 = vmatprep.subr.mxu0 %v1377
      %v1379 = vand.u32 %v518, 4294901760
      %1380 = vmatpush1.msra.mxu0 %v1379
      %v1381 = vand.u32 %v521, 4294901760
      %1382 = vmatprep.subr.mxu0 %v1381
      %v1383 = vand.u32 %v520, 4294901760
      %1384 = vmatpush1.msra.mxu0 %v1383
      %v1385 = vand.u32 %v523, 4294901760
      %1386 = vmatprep.subr.mxu0 %v1385
      %v1387 = vand.u32 %v522, 4294901760
      %1388 = vmatpush1.msra.mxu0 %v1387
      %v1389 = vand.u32 %v525, 4294901760
      %1390 = vmatprep.subr.mxu0 %v1389
      %v1391 = vand.u32 %v524, 4294901760
      %1392 = vmatpush1.msra.mxu0 %v1391
      %v1393 = vand.u32 %v527, 4294901760
      %1394 = vmatprep.subr.mxu0 %v1393
      %v1395 = vand.u32 %v526, 4294901760
      %1396 = vmatpush1.msra.mxu0 %v1395
      %v1397 = vand.u32 %v529, 4294901760
      %1398 = vmatprep.subr.mxu0 %v1397
      %v1399 = vand.u32 %v528, 4294901760
      %1400 = vmatpush1.msra.mxu0 %v1399
      %v1401 = vand.u32 %v235, 4294901760
      %v1402 = vsub.f32 %v235, %v1401
      %v1403 = vand.u32 %v1402, 4294901760
      %1404 = vmatprep.mubr.f32.mxu0 %v1403
      %v1405 = vand.u32 %v234, 4294901760
      %v1406 = vsub.f32 %v234, %v1405
      %v1407 = vand.u32 %v1406, 4294901760
      %1408 = vmatmul.mubr.f32.gmra.mrb[0].mxu0 %v1407
      %v1409 = vpop.f32.mrb[0].mxu0
      %v1410 = vadd.f32 %v1269, %v1409
      %v1411 = vpop.f32.mrb[0].mxu0
      %v1412 = vadd.f32 %v1271, %v1411
      %1413 = vdwg.mxu0
      %v1414 = vand.u32 %v467, 4294901760
      %v1415 = vsub.f32 %v467, %v1414
      %v1416 = vand.u32 %v1415, 4294901760
      %1417 = vmatprep.subr.mxu0 %v1416
      %v1418 = vand.u32 %v466, 4294901760
      %v1419 = vsub.f32 %v466, %v1418
      %v1420 = vand.u32 %v1419, 4294901760
      %1421 = vmatpush1.msra.mxu0 %v1420
      %v1422 = vand.u32 %v469, 4294901760
      %v1423 = vsub.f32 %v469, %v1422
      %v1424 = vand.u32 %v1423, 4294901760
      %1425 = vmatprep.subr.mxu0 %v1424
      %v1426 = vand.u32 %v468, 4294901760
      %v1427 = vsub.f32 %v468, %v1426
      %v1428 = vand.u32 %v1427, 4294901760
      %1429 = vmatpush1.msra.mxu0 %v1428
      %v1430 = vand.u32 %v471, 4294901760
      %v1431 = vsub.f32 %v471, %v1430
      %v1432 = vand.u32 %v1431, 4294901760
      %1433 = vmatprep.subr.mxu0 %v1432
      %v1434 = vand.u32 %v470, 4294901760
      %v1435 = vsub.f32 %v470, %v1434
      %v1436 = vand.u32 %v1435, 4294901760
      %1437 = vmatpush1.msra.mxu0 %v1436
      %v1438 = vand.u32 %v473, 4294901760
      %v1439 = vsub.f32 %v473, %v1438
      %v1440 = vand.u32 %v1439, 4294901760
      %1441 = vmatprep.subr.mxu0 %v1440
      %v1442 = vand.u32 %v472, 4294901760
      %v1443 = vsub.f32 %v472, %v1442
      %v1444 = vand.u32 %v1443, 4294901760
      %1445 = vmatpush1.msra.mxu0 %v1444
      %v1446 = vand.u32 %v475, 4294901760
      %v1447 = vsub.f32 %v475, %v1446
      %v1448 = vand.u32 %v1447, 4294901760
      %1449 = vmatprep.subr.mxu0 %v1448
      %v1450 = vand.u32 %v474, 4294901760
      %v1451 = vsub.f32 %v474, %v1450
      %v1452 = vand.u32 %v1451, 4294901760
      %1453 = vmatpush1.msra.mxu0 %v1452
      %v1454 = vand.u32 %v477, 4294901760
      %v1455 = vsub.f32 %v477, %v1454
      %v1456 = vand.u32 %v1455, 4294901760
      %1457 = vmatprep.subr.mxu0 %v1456
      %v1458 = vand.u32 %v476, 4294901760
      %v1459 = vsub.f32 %v476, %v1458
      %v1460 = vand.u32 %v1459, 4294901760
      %1461 = vmatpush1.msra.mxu0 %v1460
      %v1462 = vand.u32 %v479, 4294901760
      %v1463 = vsub.f32 %v479, %v1462
      %v1464 = vand.u32 %v1463, 4294901760
      %1465 = vmatprep.subr.mxu0 %v1464
      %v1466 = vand.u32 %v478, 4294901760
      %v1467 = vsub.f32 %v478, %v1466
      %v1468 = vand.u32 %v1467, 4294901760
      %1469 = vmatpush1.msra.mxu0 %v1468
      %v1470 = vand.u32 %v481, 4294901760
      %v1471 = vsub.f32 %v481, %v1470
      %v1472 = vand.u32 %v1471, 4294901760
      %1473 = vmatprep.subr.mxu0 %v1472
      %v1474 = vand.u32 %v480, 4294901760
      %v1475 = vsub.f32 %v480, %v1474
      %v1476 = vand.u32 %v1475, 4294901760
      %1477 = vmatpush1.msra.mxu0 %v1476
      %v1478 = vand.u32 %v483, 4294901760
      %v1479 = vsub.f32 %v483, %v1478
      %v1480 = vand.u32 %v1479, 4294901760
      %1481 = vmatprep.subr.mxu0 %v1480
      %v1482 = vand.u32 %v482, 4294901760
      %v1483 = vsub.f32 %v482, %v1482
      %v1484 = vand.u32 %v1483, 4294901760
      %1485 = vmatpush1.msra.mxu0 %v1484
      %v1486 = vand.u32 %v485, 4294901760
      %v1487 = vsub.f32 %v485, %v1486
      %v1488 = vand.u32 %v1487, 4294901760
      %1489 = vmatprep.subr.mxu0 %v1488
      %v1490 = vand.u32 %v484, 4294901760
      %v1491 = vsub.f32 %v484, %v1490
      %v1492 = vand.u32 %v1491, 4294901760
      %1493 = vmatpush1.msra.mxu0 %v1492
      %v1494 = vand.u32 %v487, 4294901760
      %v1495 = vsub.f32 %v487, %v1494
      %v1496 = vand.u32 %v1495, 4294901760
      %1497 = vmatprep.subr.mxu0 %v1496
      %v1498 = vand.u32 %v486, 4294901760
      %v1499 = vsub.f32 %v486, %v1498
      %v1500 = vand.u32 %v1499, 4294901760
      %1501 = vmatpush1.msra.mxu0 %v1500
      %v1502 = vand.u32 %v489, 4294901760
      %v1503 = vsub.f32 %v489, %v1502
      %v1504 = vand.u32 %v1503, 4294901760
      %1505 = vmatprep.subr.mxu0 %v1504
      %v1506 = vand.u32 %v488, 4294901760
      %v1507 = vsub.f32 %v488, %v1506
      %v1508 = vand.u32 %v1507, 4294901760
      %1509 = vmatpush1.msra.mxu0 %v1508
      %v1510 = vand.u32 %v491, 4294901760
      %v1511 = vsub.f32 %v491, %v1510
      %v1512 = vand.u32 %v1511, 4294901760
      %1513 = vmatprep.subr.mxu0 %v1512
      %v1514 = vand.u32 %v490, 4294901760
      %v1515 = vsub.f32 %v490, %v1514
      %v1516 = vand.u32 %v1515, 4294901760
      %1517 = vmatpush1.msra.mxu0 %v1516
      %v1518 = vand.u32 %v493, 4294901760
      %v1519 = vsub.f32 %v493, %v1518
      %v1520 = vand.u32 %v1519, 4294901760
      %1521 = vmatprep.subr.mxu0 %v1520
      %v1522 = vand.u32 %v492, 4294901760
      %v1523 = vsub.f32 %v492, %v1522
      %v1524 = vand.u32 %v1523, 4294901760
      %1525 = vmatpush1.msra.mxu0 %v1524
      %v1526 = vand.u32 %v495, 4294901760
      %v1527 = vsub.f32 %v495, %v1526
      %v1528 = vand.u32 %v1527, 4294901760
      %1529 = vmatprep.subr.mxu0 %v1528
      %v1530 = vand.u32 %v494, 4294901760
      %v1531 = vsub.f32 %v494, %v1530
      %v1532 = vand.u32 %v1531, 4294901760
      %1533 = vmatpush1.msra.mxu0 %v1532
      %v1534 = vand.u32 %v497, 4294901760
      %v1535 = vsub.f32 %v497, %v1534
      %v1536 = vand.u32 %v1535, 4294901760
      %1537 = vmatprep.subr.mxu0 %v1536
      %v1538 = vand.u32 %v496, 4294901760
      %v1539 = vsub.f32 %v496, %v1538
      %v1540 = vand.u32 %v1539, 4294901760
      %1541 = vmatpush1.msra.mxu0 %v1540
      %v1542 = vand.u32 %v499, 4294901760
      %v1543 = vsub.f32 %v499, %v1542
      %v1544 = vand.u32 %v1543, 4294901760
      %1545 = vmatprep.subr.mxu0 %v1544
      %v1546 = vand.u32 %v498, 4294901760
      %v1547 = vsub.f32 %v498, %v1546
      %v1548 = vand.u32 %v1547, 4294901760
      %1549 = vmatpush1.msra.mxu0 %v1548
      %v1550 = vand.u32 %v501, 4294901760
      %v1551 = vsub.f32 %v501, %v1550
      %v1552 = vand.u32 %v1551, 4294901760
      %1553 = vmatprep.subr.mxu0 %v1552
      %v1554 = vand.u32 %v500, 4294901760
      %v1555 = vsub.f32 %v500, %v1554
      %v1556 = vand.u32 %v1555, 4294901760
      %1557 = vmatpush1.msra.mxu0 %v1556
      %v1558 = vand.u32 %v503, 4294901760
      %v1559 = vsub.f32 %v503, %v1558
      %v1560 = vand.u32 %v1559, 4294901760
      %1561 = vmatprep.subr.mxu0 %v1560
      %v1562 = vand.u32 %v502, 4294901760
      %v1563 = vsub.f32 %v502, %v1562
      %v1564 = vand.u32 %v1563, 4294901760
      %1565 = vmatpush1.msra.mxu0 %v1564
      %v1566 = vand.u32 %v505, 4294901760
      %v1567 = vsub.f32 %v505, %v1566
      %v1568 = vand.u32 %v1567, 4294901760
      %1569 = vmatprep.subr.mxu0 %v1568
      %v1570 = vand.u32 %v504, 4294901760
      %v1571 = vsub.f32 %v504, %v1570
      %v1572 = vand.u32 %v1571, 4294901760
      %1573 = vmatpush1.msra.mxu0 %v1572
      %v1574 = vand.u32 %v507, 4294901760
      %v1575 = vsub.f32 %v507, %v1574
      %v1576 = vand.u32 %v1575, 4294901760
      %1577 = vmatprep.subr.mxu0 %v1576
      %v1578 = vand.u32 %v506, 4294901760
      %v1579 = vsub.f32 %v506, %v1578
      %v1580 = vand.u32 %v1579, 4294901760
      %1581 = vmatpush1.msra.mxu0 %v1580
      %v1582 = vand.u32 %v509, 4294901760
      %v1583 = vsub.f32 %v509, %v1582
      %v1584 = vand.u32 %v1583, 4294901760
      %1585 = vmatprep.subr.mxu0 %v1584
      %v1586 = vand.u32 %v508, 4294901760
      %v1587 = vsub.f32 %v508, %v1586
      %v1588 = vand.u32 %v1587, 4294901760
      %1589 = vmatpush1.msra.mxu0 %v1588
      %v1590 = vand.u32 %v511, 4294901760
      %v1591 = vsub.f32 %v511, %v1590
      %v1592 = vand.u32 %v1591, 4294901760
      %1593 = vmatprep.subr.mxu0 %v1592
      %v1594 = vand.u32 %v510, 4294901760
      %v1595 = vsub.f32 %v510, %v1594
      %v1596 = vand.u32 %v1595, 4294901760
      %1597 = vmatpush1.msra.mxu0 %v1596
      %v1598 = vand.u32 %v513, 4294901760
      %v1599 = vsub.f32 %v513, %v1598
      %v1600 = vand.u32 %v1599, 4294901760
      %1601 = vmatprep.subr.mxu0 %v1600
      %v1602 = vand.u32 %v512, 4294901760
      %v1603 = vsub.f32 %v512, %v1602
      %v1604 = vand.u32 %v1603, 4294901760
      %1605 = vmatpush1.msra.mxu0 %v1604
      %v1606 = vand.u32 %v515, 4294901760
      %v1607 = vsub.f32 %v515, %v1606
      %v1608 = vand.u32 %v1607, 4294901760
      %1609 = vmatprep.subr.mxu0 %v1608
      %v1610 = vand.u32 %v514, 4294901760
      %v1611 = vsub.f32 %v514, %v1610
      %v1612 = vand.u32 %v1611, 4294901760
      %1613 = vmatpush1.msra.mxu0 %v1612
      %v1614 = vand.u32 %v517, 4294901760
      %v1615 = vsub.f32 %v517, %v1614
      %v1616 = vand.u32 %v1615, 4294901760
      %1617 = vmatprep.subr.mxu0 %v1616
      %v1618 = vand.u32 %v516, 4294901760
      %v1619 = vsub.f32 %v516, %v1618
      %v1620 = vand.u32 %v1619, 4294901760
      %1621 = vmatpush1.msra.mxu0 %v1620
      %v1622 = vand.u32 %v519, 4294901760
      %v1623 = vsub.f32 %v519, %v1622
      %v1624 = vand.u32 %v1623, 4294901760
      %1625 = vmatprep.subr.mxu0 %v1624
      %v1626 = vand.u32 %v518, 4294901760
      %v1627 = vsub.f32 %v518, %v1626
      %v1628 = vand.u32 %v1627, 4294901760
      %1629 = vmatpush1.msra.mxu0 %v1628
      %v1630 = vand.u32 %v521, 4294901760
      %v1631 = vsub.f32 %v521, %v1630
      %v1632 = vand.u32 %v1631, 4294901760
      %1633 = vmatprep.subr.mxu0 %v1632
      %v1634 = vand.u32 %v520, 4294901760
      %v1635 = vsub.f32 %v520, %v1634
      %v1636 = vand.u32 %v1635, 4294901760
      %1637 = vmatpush1.msra.mxu0 %v1636
      %v1638 = vand.u32 %v523, 4294901760
      %v1639 = vsub.f32 %v523, %v1638
      %v1640 = vand.u32 %v1639, 4294901760
      %1641 = vmatprep.subr.mxu0 %v1640
      %v1642 = vand.u32 %v522, 4294901760
      %v1643 = vsub.f32 %v522, %v1642
      %v1644 = vand.u32 %v1643, 4294901760
      %1645 = vmatpush1.msra.mxu0 %v1644
      %v1646 = vand.u32 %v525, 4294901760
      %v1647 = vsub.f32 %v525, %v1646
      %v1648 = vand.u32 %v1647, 4294901760
      %1649 = vmatprep.subr.mxu0 %v1648
      %v1650 = vand.u32 %v524, 4294901760
      %v1651 = vsub.f32 %v524, %v1650
      %v1652 = vand.u32 %v1651, 4294901760
      %1653 = vmatpush1.msra.mxu0 %v1652
      %v1654 = vand.u32 %v527, 4294901760
      %v1655 = vsub.f32 %v527, %v1654
      %v1656 = vand.u32 %v1655, 4294901760
      %1657 = vmatprep.subr.mxu0 %v1656
      %v1658 = vand.u32 %v526, 4294901760
      %v1659 = vsub.f32 %v526, %v1658
      %v1660 = vand.u32 %v1659, 4294901760
      %1661 = vmatpush1.msra.mxu0 %v1660
      %v1662 = vand.u32 %v529, 4294901760
      %v1663 = vsub.f32 %v529, %v1662
      %v1664 = vand.u32 %v1663, 4294901760
      %1665 = vmatprep.subr.mxu0 %v1664
      %v1666 = vand.u32 %v528, 4294901760
      %v1667 = vsub.f32 %v528, %v1666
      %v1668 = vand.u32 %v1667, 4294901760
      %1669 = vmatpush1.msra.mxu0 %v1668
      %v1670 = vand.u32 %v235, 4294901760
      %1671 = vmatprep.mubr.f32.mxu0 %v1670
      %v1672 = vand.u32 %v234, 4294901760
      %1673 = vmatmul.mubr.f32.gmra.mrb[0].mxu0 %v1672
      %v1674 = vpop.f32.mrb[0].mxu0
      %v1675 = vadd.f32 %v1410, %v1674
      %v1676 = vpop.f32.mrb[0].mxu0
      %v1677 = vadd.f32 %v1412, %v1676
      %1678 = vdwg.mxu0
      %v1679 = vand.u32 %v467, 4294901760
      %1680 = vmatprep.subr.mxu0 %v1679
      %v1681 = vand.u32 %v466, 4294901760
      %1682 = vmatpush1.msra.mxu0 %v1681
      %v1683 = vand.u32 %v469, 4294901760
      %1684 = vmatprep.subr.mxu0 %v1683
      %v1685 = vand.u32 %v468, 4294901760
      %1686 = vmatpush1.msra.mxu0 %v1685
      %v1687 = vand.u32 %v471, 4294901760
      %1688 = vmatprep.subr.mxu0 %v1687
      %v1689 = vand.u32 %v470, 4294901760
      %1690 = vmatpush1.msra.mxu0 %v1689
      %v1691 = vand.u32 %v473, 4294901760
      %1692 = vmatprep.subr.mxu0 %v1691
      %v1693 = vand.u32 %v472, 4294901760
      %1694 = vmatpush1.msra.mxu0 %v1693
      %v1695 = vand.u32 %v475, 4294901760
      %1696 = vmatprep.subr.mxu0 %v1695
      %v1697 = vand.u32 %v474, 4294901760
      %1698 = vmatpush1.msra.mxu0 %v1697
      %v1699 = vand.u32 %v477, 4294901760
      %1700 = vmatprep.subr.mxu0 %v1699
      %v1701 = vand.u32 %v476, 4294901760
      %1702 = vmatpush1.msra.mxu0 %v1701
      %v1703 = vand.u32 %v479, 4294901760
      %1704 = vmatprep.subr.mxu0 %v1703
      %v1705 = vand.u32 %v478, 4294901760
      %1706 = vmatpush1.msra.mxu0 %v1705
      %v1707 = vand.u32 %v481, 4294901760
      %1708 = vmatprep.subr.mxu0 %v1707
      %v1709 = vand.u32 %v480, 4294901760
      %1710 = vmatpush1.msra.mxu0 %v1709
      %v1711 = vand.u32 %v483, 4294901760
      %1712 = vmatprep.subr.mxu0 %v1711
      %v1713 = vand.u32 %v482, 4294901760
      %1714 = vmatpush1.msra.mxu0 %v1713
      %v1715 = vand.u32 %v485, 4294901760
      %1716 = vmatprep.subr.mxu0 %v1715
      %v1717 = vand.u32 %v484, 4294901760
      %1718 = vmatpush1.msra.mxu0 %v1717
      %v1719 = vand.u32 %v487, 4294901760
      %1720 = vmatprep.subr.mxu0 %v1719
      %v1721 = vand.u32 %v486, 4294901760
      %1722 = vmatpush1.msra.mxu0 %v1721
      %v1723 = vand.u32 %v489, 4294901760
      %1724 = vmatprep.subr.mxu0 %v1723
      %v1725 = vand.u32 %v488, 4294901760
      %1726 = vmatpush1.msra.mxu0 %v1725
      %v1727 = vand.u32 %v491, 4294901760
      %1728 = vmatprep.subr.mxu0 %v1727
      %v1729 = vand.u32 %v490, 4294901760
      %1730 = vmatpush1.msra.mxu0 %v1729
      %v1731 = vand.u32 %v493, 4294901760
      %1732 = vmatprep.subr.mxu0 %v1731
      %v1733 = vand.u32 %v492, 4294901760
      %1734 = vmatpush1.msra.mxu0 %v1733
      %v1735 = vand.u32 %v495, 4294901760
      %1736 = vmatprep.subr.mxu0 %v1735
      %v1737 = vand.u32 %v494, 4294901760
      %1738 = vmatpush1.msra.mxu0 %v1737
      %v1739 = vand.u32 %v497, 4294901760
      %1740 = vmatprep.subr.mxu0 %v1739
      %v1741 = vand.u32 %v496, 4294901760
      %1742 = vmatpush1.msra.mxu0 %v1741
      %v1743 = vand.u32 %v499, 4294901760
      %1744 = vmatprep.subr.mxu0 %v1743
      %v1745 = vand.u32 %v498, 4294901760
      %1746 = vmatpush1.msra.mxu0 %v1745
      %v1747 = vand.u32 %v501, 4294901760
      %1748 = vmatprep.subr.mxu0 %v1747
      %v1749 = vand.u32 %v500, 4294901760
      %1750 = vmatpush1.msra.mxu0 %v1749
      %v1751 = vand.u32 %v503, 4294901760
      %1752 = vmatprep.subr.mxu0 %v1751
      %v1753 = vand.u32 %v502, 4294901760
      %1754 = vmatpush1.msra.mxu0 %v1753
      %v1755 = vand.u32 %v505, 4294901760
      %1756 = vmatprep.subr.mxu0 %v1755
      %v1757 = vand.u32 %v504, 4294901760
      %1758 = vmatpush1.msra.mxu0 %v1757
      %v1759 = vand.u32 %v507, 4294901760
      %1760 = vmatprep.subr.mxu0 %v1759
      %v1761 = vand.u32 %v506, 4294901760
      %1762 = vmatpush1.msra.mxu0 %v1761
      %v1763 = vand.u32 %v509, 4294901760
      %1764 = vmatprep.subr.mxu0 %v1763
      %v1765 = vand.u32 %v508, 4294901760
      %1766 = vmatpush1.msra.mxu0 %v1765
      %v1767 = vand.u32 %v511, 4294901760
      %1768 = vmatprep.subr.mxu0 %v1767
      %v1769 = vand.u32 %v510, 4294901760
      %1770 = vmatpush1.msra.mxu0 %v1769
      %v1771 = vand.u32 %v513, 4294901760
      %1772 = vmatprep.subr.mxu0 %v1771
      %v1773 = vand.u32 %v512, 4294901760
      %1774 = vmatpush1.msra.mxu0 %v1773
      %v1775 = vand.u32 %v515, 4294901760
      %1776 = vmatprep.subr.mxu0 %v1775
      %v1777 = vand.u32 %v514, 4294901760
      %1778 = vmatpush1.msra.mxu0 %v1777
      %v1779 = vand.u32 %v517, 4294901760
      %1780 = vmatprep.subr.mxu0 %v1779
      %v1781 = vand.u32 %v516, 4294901760
      %1782 = vmatpush1.msra.mxu0 %v1781
      %v1783 = vand.u32 %v519, 4294901760
      %1784 = vmatprep.subr.mxu0 %v1783
      %v1785 = vand.u32 %v518, 4294901760
      %1786 = vmatpush1.msra.mxu0 %v1785
      %v1787 = vand.u32 %v521, 4294901760
      %1788 = vmatprep.subr.mxu0 %v1787
      %v1789 = vand.u32 %v520, 4294901760
      %1790 = vmatpush1.msra.mxu0 %v1789
      %v1791 = vand.u32 %v523, 4294901760
      %1792 = vmatprep.subr.mxu0 %v1791
      %v1793 = vand.u32 %v522, 4294901760
      %1794 = vmatpush1.msra.mxu0 %v1793
      %v1795 = vand.u32 %v525, 4294901760
      %1796 = vmatprep.subr.mxu0 %v1795
      %v1797 = vand.u32 %v524, 4294901760
      %1798 = vmatpush1.msra.mxu0 %v1797
      %v1799 = vand.u32 %v527, 4294901760
      %1800 = vmatprep.subr.mxu0 %v1799
      %v1801 = vand.u32 %v526, 4294901760
      %1802 = vmatpush1.msra.mxu0 %v1801
      %v1803 = vand.u32 %v529, 4294901760
      %1804 = vmatprep.subr.mxu0 %v1803
      %v1805 = vand.u32 %v528, 4294901760
      %1806 = vmatpush1.msra.mxu0 %v1805
      %v1807 = vand.u32 %v235, 4294901760
      %1808 = vmatprep.mubr.f32.mxu0 %v1807
      %v1809 = vand.u32 %v234, 4294901760
      %1810 = vmatmul.mubr.f32.gmra.mrb[0].mxu0 %v1809
      %v1811 = vpop.f32.mrb[0].mxu0
      %v1812 = vadd.f32 %v1675, %v1811
      %v1813 = vpop.f32.mrb[0].mxu0
      %v1814 = vadd.f32 %v1677, %v1813
      %1815 = vdwg.mxu0
      %v1816 = vadd.f32 %v530, %v1812
      %v1817 = vadd.f32 %v531, %v1814
      %1818 = vst [vmem:[#allocation2] sm:$0xff] %v1816
      %1819 = vst [vmem:[#allocation2 + $0x8] sm:$0xff] %v1817
      %s1820 = scalar_lea.vmem %s165, 256
      %v1821 = vld [vmem:[%s1820] sm:$0xff]
      %v1822 = vld [vmem:[%s1820 + $0x8] sm:$0xff]
      %v1823 = vld [vmem:[%s1820 + $0x10] sm:$0xff]
      %v1824 = vld [vmem:[%s1820 + $0x18] sm:$0xff]
      %v1825 = vld [vmem:[%s1820 + $0x20] sm:$0xff]
      %v1826 = vld [vmem:[%s1820 + $0x28] sm:$0xff]
      %v1827 = vld [vmem:[%s1820 + $0x30] sm:$0xff]
      %v1828 = vld [vmem:[%s1820 + $0x38] sm:$0xff]
      %v1829 = vld [vmem:[%s1820 + $0x40] sm:$0xff]
      %v1830 = vld [vmem:[%s1820 + $0x48] sm:$0xff]
      %v1831 = vld [vmem:[%s1820 + $0x50] sm:$0xff]
      %v1832 = vld [vmem:[%s1820 + $0x58] sm:$0xff]
      %v1833 = vld [vmem:[%s1820 + $0x60] sm:$0xff]
      %v1834 = vld [vmem:[%s1820 + $0x68] sm:$0xff]
      %v1835 = vld [vmem:[%s1820 + $0x70] sm:$0xff]
      %v1836 = vld [vmem:[%s1820 + $0x78] sm:$0xff]
      %v1837 = vld [vmem:[%s1820 + $0x80] sm:$0xff]
      %v1838 = vld [vmem:[%s1820 + $0x88] sm:$0xff]
      %v1839 = vld [vmem:[%s1820 + $0x90] sm:$0xff]
      %v1840 = vld [vmem:[%s1820 + $0x98] sm:$0xff]
      %v1841 = vld [vmem:[%s1820 + $0xa0] sm:$0xff]
      %v1842 = vld [vmem:[%s1820 + $0xa8] sm:$0xff]
      %v1843 = vld [vmem:[%s1820 + $0xb0] sm:$0xff]
      %v1844 = vld [vmem:[%s1820 + $0xb8] sm:$0xff]
      %v1845 = vld [vmem:[%s1820 + $0xc0] sm:$0xff]
      %v1846 = vld [vmem:[%s1820 + $0xc8] sm:$0xff]
      %v1847 = vld [vmem:[%s1820 + $0xd0] sm:$0xff]
      %v1848 = vld [vmem:[%s1820 + $0xd8] sm:$0xff]
      %v1849 = vld [vmem:[%s1820 + $0xe0] sm:$0xff]
      %v1850 = vld [vmem:[%s1820 + $0xe8] sm:$0xff]
      %v1851 = vld [vmem:[%s1820 + $0xf0] sm:$0xff]
      %v1852 = vld [vmem:[%s1820 + $0xf8] sm:$0xff]
      %s1853 = scalar_lea.vmem %s171, 16
      %v1854 = vld [vmem:[%s1853] sm:$0xff]
      %v1855 = vld [vmem:[%s1853 + $0x8] sm:$0xff]
      %1856 = vset.pattern.permute.xlu0 0
      %1857 = vperm.xlu0 %1856, %v1821
      %v1858 = vpop.permute.xlu0 %1857
      %1859 = vset.pattern.permute.xlu0 0
      %1860 = vperm.xlu0 %1859, %v1822
      %v1861 = vpop.permute.xlu0 %1860
      %1862 = vset.pattern.permute.xlu0 0
      %1863 = vperm.xlu0 %1862, %v1823
      %v1864 = vpop.permute.xlu0 %1863
      %1865 = vset.pattern.permute.xlu0 0
      %1866 = vperm.xlu0 %1865, %v1824
      %v1867 = vpop.permute.xlu0 %1866
      %1868 = vset.pattern.permute.xlu0 0
      %1869 = vperm.xlu0 %1868, %v1825
      %v1870 = vpop.permute.xlu0 %1869
      %1871 = vset.pattern.permute.xlu0 0
      %1872 = vperm.xlu0 %1871, %v1826
      %v1873 = vpop.permute.xlu0 %1872
      %1874 = vset.pattern.permute.xlu0 0
      %1875 = vperm.xlu0 %1874, %v1827
      %v1876 = vpop.permute.xlu0 %1875
      %1877 = vset.pattern.permute.xlu0 0
      %1878 = vperm.xlu0 %1877, %v1828
      %v1879 = vpop.permute.xlu0 %1878
      %1880 = vset.pattern.permute.xlu0 0
      %1881 = vperm.xlu0 %1880, %v1829
      %v1882 = vpop.permute.xlu0 %1881
      %1883 = vset.pattern.permute.xlu0 0
      %1884 = vperm.xlu0 %1883, %v1830
      %v1885 = vpop.permute.xlu0 %1884
      %1886 = vset.pattern.permute.xlu0 0
      %1887 = vperm.xlu0 %1886, %v1831
      %v1888 = vpop.permute.xlu0 %1887
      %1889 = vset.pattern.permute.xlu0 0
      %1890 = vperm.xlu0 %1889, %v1832
      %v1891 = vpop.permute.xlu0 %1890
      %1892 = vset.pattern.permute.xlu0 0
      %1893 = vperm.xlu0 %1892, %v1833
      %v1894 = vpop.permute.xlu0 %1893
      %1895 = vset.pattern.permute.xlu0 0
      %1896 = vperm.xlu0 %1895, %v1834
      %v1897 = vpop.permute.xlu0 %1896
      %1898 = vset.pattern.permute.xlu0 0
      %1899 = vperm.xlu0 %1898, %v1835
      %v1900 = vpop.permute.xlu0 %1899
      %1901 = vset.pattern.permute.xlu0 0
      %1902 = vperm.xlu0 %1901, %v1836
      %v1903 = vpop.permute.xlu0 %1902
      %1904 = vset.pattern.permute.xlu0 0
      %1905 = vperm.xlu0 %1904, %v1837
      %v1906 = vpop.permute.xlu0 %1905
      %1907 = vset.pattern.permute.xlu0 0
      %1908 = vperm.xlu0 %1907, %v1838
      %v1909 = vpop.permute.xlu0 %1908
      %1910 = vset.pattern.permute.xlu0 0
      %1911 = vperm.xlu0 %1910, %v1839
      %v1912 = vpop.permute.xlu0 %1911
      %1913 = vset.pattern.permute.xlu0 0
      %1914 = vperm.xlu0 %1913, %v1840
      %v1915 = vpop.permute.xlu0 %1914
      %1916 = vset.pattern.permute.xlu0 0
      %1917 = vperm.xlu0 %1916, %v1841
      %v1918 = vpop.permute.xlu0 %1917
      %1919 = vset.pattern.permute.xlu0 0
      %1920 = vperm.xlu0 %1919, %v1842
      %v1921 = vpop.permute.xlu0 %1920
      %1922 = vset.pattern.permute.xlu0 0
      %1923 = vperm.xlu0 %1922, %v1843
      %v1924 = vpop.permute.xlu0 %1923
      %1925 = vset.pattern.permute.xlu0 0
      %1926 = vperm.xlu0 %1925, %v1844
      %v1927 = vpop.permute.xlu0 %1926
      %1928 = vset.pattern.permute.xlu0 0
      %1929 = vperm.xlu0 %1928, %v1845
      %v1930 = vpop.permute.xlu0 %1929
      %1931 = vset.pattern.permute.xlu0 0
      %1932 = vperm.xlu0 %1931, %v1846
      %v1933 = vpop.permute.xlu0 %1932
      %1934 = vset.pattern.permute.xlu0 0
      %1935 = vperm.xlu0 %1934, %v1847
      %v1936 = vpop.permute.xlu0 %1935
      %1937 = vset.pattern.permute.xlu0 0
      %1938 = vperm.xlu0 %1937, %v1848
      %v1939 = vpop.permute.xlu0 %1938
      %1940 = vset.pattern.permute.xlu0 0
      %1941 = vperm.xlu0 %1940, %v1849
      %v1942 = vpop.permute.xlu0 %1941
      %1943 = vset.pattern.permute.xlu0 0
      %1944 = vperm.xlu0 %1943, %v1850
      %v1945 = vpop.permute.xlu0 %1944
      %1946 = vset.pattern.permute.xlu0 0
      %1947 = vperm.xlu0 %1946, %v1851
      %v1948 = vpop.permute.xlu0 %1947
      %1949 = vset.pattern.permute.xlu0 0
      %1950 = vperm.xlu0 %1949, %v1852
      %v1951 = vpop.permute.xlu0 %1950
      %vm1952 = vcmp.eq.s32.totalorder %v1858, %v240
      %vm1953 = vcmp.eq.s32.totalorder %v1858, %v241
      %vm1954 = vcmp.eq.s32.totalorder %v1861, %v240
      %vm1955 = vcmp.eq.s32.totalorder %v1861, %v241
      %vm1956 = vcmp.eq.s32.totalorder %v1864, %v240
      %vm1957 = vcmp.eq.s32.totalorder %v1864, %v241
      %vm1958 = vcmp.eq.s32.totalorder %v1867, %v240
      %vm1959 = vcmp.eq.s32.totalorder %v1867, %v241
      %vm1960 = vcmp.eq.s32.totalorder %v1870, %v240
      %vm1961 = vcmp.eq.s32.totalorder %v1870, %v241
      %vm1962 = vcmp.eq.s32.totalorder %v1873, %v240
      %vm1963 = vcmp.eq.s32.totalorder %v1873, %v241
      %vm1964 = vcmp.eq.s32.totalorder %v1876, %v240
      %vm1965 = vcmp.eq.s32.totalorder %v1876, %v241
      %vm1966 = vcmp.eq.s32.totalorder %v1879, %v240
      %vm1967 = vcmp.eq.s32.totalorder %v1879, %v241
      %vm1968 = vcmp.eq.s32.totalorder %v1882, %v240
      %vm1969 = vcmp.eq.s32.totalorder %v1882, %v241
      %vm1970 = vcmp.eq.s32.totalorder %v1885, %v240
      %vm1971 = vcmp.eq.s32.totalorder %v1885, %v241
      %vm1972 = vcmp.eq.s32.totalorder %v1888, %v240
      %vm1973 = vcmp.eq.s32.totalorder %v1888, %v241
      %vm1974 = vcmp.eq.s32.totalorder %v1891, %v240
      %vm1975 = vcmp.eq.s32.totalorder %v1891, %v241
      %vm1976 = vcmp.eq.s32.totalorder %v1894, %v240
      %vm1977 = vcmp.eq.s32.totalorder %v1894, %v241
      %vm1978 = vcmp.eq.s32.totalorder %v1897, %v240
      %vm1979 = vcmp.eq.s32.totalorder %v1897, %v241
      %vm1980 = vcmp.eq.s32.totalorder %v1900, %v240
      %vm1981 = vcmp.eq.s32.totalorder %v1900, %v241
      %vm1982 = vcmp.eq.s32.totalorder %v1903, %v240
      %vm1983 = vcmp.eq.s32.totalorder %v1903, %v241
      %vm1984 = vcmp.eq.s32.totalorder %v1906, %v240
      %vm1985 = vcmp.eq.s32.totalorder %v1906, %v241
      %vm1986 = vcmp.eq.s32.totalorder %v1909, %v240
      %vm1987 = vcmp.eq.s32.totalorder %v1909, %v241
      %vm1988 = vcmp.eq.s32.totalorder %v1912, %v240
      %vm1989 = vcmp.eq.s32.totalorder %v1912, %v241
      %vm1990 = vcmp.eq.s32.totalorder %v1915, %v240
      %vm1991 = vcmp.eq.s32.totalorder %v1915, %v241
      %vm1992 = vcmp.eq.s32.totalorder %v1918, %v240
      %vm1993 = vcmp.eq.s32.totalorder %v1918, %v241
      %vm1994 = vcmp.eq.s32.totalorder %v1921, %v240
      %vm1995 = vcmp.eq.s32.totalorder %v1921, %v241
      %vm1996 = vcmp.eq.s32.totalorder %v1924, %v240
      %vm1997 = vcmp.eq.s32.totalorder %v1924, %v241
      %vm1998 = vcmp.eq.s32.totalorder %v1927, %v240
      %vm1999 = vcmp.eq.s32.totalorder %v1927, %v241
      %vm2000 = vcmp.eq.s32.totalorder %v1930, %v240
      %vm2001 = vcmp.eq.s32.totalorder %v1930, %v241
      %vm2002 = vcmp.eq.s32.totalorder %v1933, %v240
      %vm2003 = vcmp.eq.s32.totalorder %v1933, %v241
      %vm2004 = vcmp.eq.s32.totalorder %v1936, %v240
      %vm2005 = vcmp.eq.s32.totalorder %v1936, %v241
      %vm2006 = vcmp.eq.s32.totalorder %v1939, %v240
      %vm2007 = vcmp.eq.s32.totalorder %v1939, %v241
      %vm2008 = vcmp.eq.s32.totalorder %v1942, %v240
      %vm2009 = vcmp.eq.s32.totalorder %v1942, %v241
      %vm2010 = vcmp.eq.s32.totalorder %v1945, %v240
      %vm2011 = vcmp.eq.s32.totalorder %v1945, %v241
      %vm2012 = vcmp.eq.s32.totalorder %v1948, %v240
      %vm2013 = vcmp.eq.s32.totalorder %v1948, %v241
      %vm2014 = vcmp.eq.s32.totalorder %v1951, %v240
      %vm2015 = vcmp.eq.s32.totalorder %v1951, %v241
      %v2016 = vsel %vm1952, 1, 0
      %v2017 = vsel %vm1953, 1, 0
      %v2018 = vsel %vm1954, 1, 0
      %v2019 = vsel %vm1955, 1, 0
      %v2020 = vsel %vm1956, 1, 0
      %v2021 = vsel %vm1957, 1, 0
      %v2022 = vsel %vm1958, 1, 0
      %v2023 = vsel %vm1959, 1, 0
      %v2024 = vsel %vm1960, 1, 0
      %v2025 = vsel %vm1961, 1, 0
      %v2026 = vsel %vm1962, 1, 0
      %v2027 = vsel %vm1963, 1, 0
      %v2028 = vsel %vm1964, 1, 0
      %v2029 = vsel %vm1965, 1, 0
      %v2030 = vsel %vm1966, 1, 0
      %v2031 = vsel %vm1967, 1, 0
      %v2032 = vsel %vm1968, 1, 0
      %v2033 = vsel %vm1969, 1, 0
      %v2034 = vsel %vm1970, 1, 0
      %v2035 = vsel %vm1971, 1, 0
      %v2036 = vsel %vm1972, 1, 0
      %v2037 = vsel %vm1973, 1, 0
      %v2038 = vsel %vm1974, 1, 0
      %v2039 = vsel %vm1975, 1, 0
      %v2040 = vsel %vm1976, 1, 0
      %v2041 = vsel %vm1977, 1, 0
      %v2042 = vsel %vm1978, 1, 0
      %v2043 = vsel %vm1979, 1, 0
      %v2044 = vsel %vm1980, 1, 0
      %v2045 = vsel %vm1981, 1, 0
      %v2046 = vsel %vm1982, 1, 0
      %v2047 = vsel %vm1983, 1, 0
      %v2048 = vsel %vm1984, 1, 0
      %v2049 = vsel %vm1985, 1, 0
      %v2050 = vsel %vm1986, 1, 0
      %v2051 = vsel %vm1987, 1, 0
      %v2052 = vsel %vm1988, 1, 0
      %v2053 = vsel %vm1989, 1, 0
      %v2054 = vsel %vm1990, 1, 0
      %v2055 = vsel %vm1991, 1, 0
      %v2056 = vsel %vm1992, 1, 0
      %v2057 = vsel %vm1993, 1, 0
      %v2058 = vsel %vm1994, 1, 0
      %v2059 = vsel %vm1995, 1, 0
      %v2060 = vsel %vm1996, 1, 0
      %v2061 = vsel %vm1997, 1, 0
      %v2062 = vsel %vm1998, 1, 0
      %v2063 = vsel %vm1999, 1, 0
      %v2064 = vsel %vm2000, 1, 0
      %v2065 = vsel %vm2001, 1, 0
      %v2066 = vsel %vm2002, 1, 0
      %v2067 = vsel %vm2003, 1, 0
      %v2068 = vsel %vm2004, 1, 0
      %v2069 = vsel %vm2005, 1, 0
      %v2070 = vsel %vm2006, 1, 0
      %v2071 = vsel %vm2007, 1, 0
      %v2072 = vsel %vm2008, 1, 0
      %v2073 = vsel %vm2009, 1, 0
      %v2074 = vsel %vm2010, 1, 0
      %v2075 = vsel %vm2011, 1, 0
      %v2076 = vsel %vm2012, 1, 0
      %v2077 = vsel %vm2013, 1, 0
      %v2078 = vsel %vm2014, 1, 0
      %v2079 = vsel %vm2015, 1, 0
      %v2080 = vcvt.s32.f32 %v2016
      %v2081 = vcvt.s32.f32 %v2017
      %v2082 = vcvt.s32.f32 %v2018
      %v2083 = vcvt.s32.f32 %v2019
      %v2084 = vcvt.s32.f32 %v2020
      %v2085 = vcvt.s32.f32 %v2021
      %v2086 = vcvt.s32.f32 %v2022
      %v2087 = vcvt.s32.f32 %v2023
      %v2088 = vcvt.s32.f32 %v2024
      %v2089 = vcvt.s32.f32 %v2025
      %v2090 = vcvt.s32.f32 %v2026
      %v2091 = vcvt.s32.f32 %v2027
      %v2092 = vcvt.s32.f32 %v2028
      %v2093 = vcvt.s32.f32 %v2029
      %v2094 = vcvt.s32.f32 %v2030
      %v2095 = vcvt.s32.f32 %v2031
      %v2096 = vcvt.s32.f32 %v2032
      %v2097 = vcvt.s32.f32 %v2033
      %v2098 = vcvt.s32.f32 %v2034
      %v2099 = vcvt.s32.f32 %v2035
      %v2100 = vcvt.s32.f32 %v2036
      %v2101 = vcvt.s32.f32 %v2037
      %v2102 = vcvt.s32.f32 %v2038
      %v2103 = vcvt.s32.f32 %v2039
      %v2104 = vcvt.s32.f32 %v2040
      %v2105 = vcvt.s32.f32 %v2041
      %v2106 = vcvt.s32.f32 %v2042
      %v2107 = vcvt.s32.f32 %v2043
      %v2108 = vcvt.s32.f32 %v2044
      %v2109 = vcvt.s32.f32 %v2045
      %v2110 = vcvt.s32.f32 %v2046
      %v2111 = vcvt.s32.f32 %v2047
      %v2112 = vcvt.s32.f32 %v2048
      %v2113 = vcvt.s32.f32 %v2049
      %v2114 = vcvt.s32.f32 %v2050
      %v2115 = vcvt.s32.f32 %v2051
      %v2116 = vcvt.s32.f32 %v2052
      %v2117 = vcvt.s32.f32 %v2053
      %v2118 = vcvt.s32.f32 %v2054
      %v2119 = vcvt.s32.f32 %v2055
      %v2120 = vcvt.s32.f32 %v2056
      %v2121 = vcvt.s32.f32 %v2057
      %v2122 = vcvt.s32.f32 %v2058
      %v2123 = vcvt.s32.f32 %v2059
      %v2124 = vcvt.s32.f32 %v2060
      %v2125 = vcvt.s32.f32 %v2061
      %v2126 = vcvt.s32.f32 %v2062
      %v2127 = vcvt.s32.f32 %v2063
      %v2128 = vcvt.s32.f32 %v2064
      %v2129 = vcvt.s32.f32 %v2065
      %v2130 = vcvt.s32.f32 %v2066
      %v2131 = vcvt.s32.f32 %v2067
      %v2132 = vcvt.s32.f32 %v2068
      %v2133 = vcvt.s32.f32 %v2069
      %v2134 = vcvt.s32.f32 %v2070
      %v2135 = vcvt.s32.f32 %v2071
      %v2136 = vcvt.s32.f32 %v2072
      %v2137 = vcvt.s32.f32 %v2073
      %v2138 = vcvt.s32.f32 %v2074
      %v2139 = vcvt.s32.f32 %v2075
      %v2140 = vcvt.s32.f32 %v2076
      %v2141 = vcvt.s32.f32 %v2077
      %v2142 = vcvt.s32.f32 %v2078
      %v2143 = vcvt.s32.f32 %v2079
      %v2144 = vld [vmem:[#allocation2] sm:$0xff]
      %v2145 = vld [vmem:[#allocation2 + $0x8] sm:$0xff]
      %v2146 = vand.u32 %v2081, 4294901760
      %2147 = vmatprep.subr.mxu0 %v2146
      %v2148 = vand.u32 %v2080, 4294901760
      %2149 = vmatpush1.msra.mxu0 %v2148
      %v2150 = vand.u32 %v2083, 4294901760
      %2151 = vmatprep.subr.mxu0 %v2150
      %v2152 = vand.u32 %v2082, 4294901760
      %2153 = vmatpush1.msra.mxu0 %v2152
      %v2154 = vand.u32 %v2085, 4294901760
      %2155 = vmatprep.subr.mxu0 %v2154
      %v2156 = vand.u32 %v2084, 4294901760
      %2157 = vmatpush1.msra.mxu0 %v2156
      %v2158 = vand.u32 %v2087, 4294901760
      %2159 = vmatprep.subr.mxu0 %v2158
      %v2160 = vand.u32 %v2086, 4294901760
      %2161 = vmatpush1.msra.mxu0 %v2160
      %v2162 = vand.u32 %v2089, 4294901760
      %2163 = vmatprep.subr.mxu0 %v2162
      %v2164 = vand.u32 %v2088, 4294901760
      %2165 = vmatpush1.msra.mxu0 %v2164
      %v2166 = vand.u32 %v2091, 4294901760
      %2167 = vmatprep.subr.mxu0 %v2166
      %v2168 = vand.u32 %v2090, 4294901760
      %2169 = vmatpush1.msra.mxu0 %v2168
      %v2170 = vand.u32 %v2093, 4294901760
      %2171 = vmatprep.subr.mxu0 %v2170
      %v2172 = vand.u32 %v2092, 4294901760
      %2173 = vmatpush1.msra.mxu0 %v2172
      %v2174 = vand.u32 %v2095, 4294901760
      %2175 = vmatprep.subr.mxu0 %v2174
      %v2176 = vand.u32 %v2094, 4294901760
      %2177 = vmatpush1.msra.mxu0 %v2176
      %v2178 = vand.u32 %v2097, 4294901760
      %2179 = vmatprep.subr.mxu0 %v2178
      %v2180 = vand.u32 %v2096, 4294901760
      %2181 = vmatpush1.msra.mxu0 %v2180
      %v2182 = vand.u32 %v2099, 4294901760
      %2183 = vmatprep.subr.mxu0 %v2182
      %v2184 = vand.u32 %v2098, 4294901760
      %2185 = vmatpush1.msra.mxu0 %v2184
      %v2186 = vand.u32 %v2101, 4294901760
      %2187 = vmatprep.subr.mxu0 %v2186
      %v2188 = vand.u32 %v2100, 4294901760
      %2189 = vmatpush1.msra.mxu0 %v2188
      %v2190 = vand.u32 %v2103, 4294901760
      %2191 = vmatprep.subr.mxu0 %v2190
      %v2192 = vand.u32 %v2102, 4294901760
      %2193 = vmatpush1.msra.mxu0 %v2192
      %v2194 = vand.u32 %v2105, 4294901760
      %2195 = vmatprep.subr.mxu0 %v2194
      %v2196 = vand.u32 %v2104, 4294901760
      %2197 = vmatpush1.msra.mxu0 %v2196
      %v2198 = vand.u32 %v2107, 4294901760
      %2199 = vmatprep.subr.mxu0 %v2198
      %v2200 = vand.u32 %v2106, 4294901760
      %2201 = vmatpush1.msra.mxu0 %v2200
      %v2202 = vand.u32 %v2109, 4294901760
      %2203 = vmatprep.subr.mxu0 %v2202
      %v2204 = vand.u32 %v2108, 4294901760
      %2205 = vmatpush1.msra.mxu0 %v2204
      %v2206 = vand.u32 %v2111, 4294901760
      %2207 = vmatprep.subr.mxu0 %v2206
      %v2208 = vand.u32 %v2110, 4294901760
      %2209 = vmatpush1.msra.mxu0 %v2208
      %v2210 = vand.u32 %v2113, 4294901760
      %2211 = vmatprep.subr.mxu0 %v2210
      %v2212 = vand.u32 %v2112, 4294901760
      %2213 = vmatpush1.msra.mxu0 %v2212
      %v2214 = vand.u32 %v2115, 4294901760
      %2215 = vmatprep.subr.mxu0 %v2214
      %v2216 = vand.u32 %v2114, 4294901760
      %2217 = vmatpush1.msra.mxu0 %v2216
      %v2218 = vand.u32 %v2117, 4294901760
      %2219 = vmatprep.subr.mxu0 %v2218
      %v2220 = vand.u32 %v2116, 4294901760
      %2221 = vmatpush1.msra.mxu0 %v2220
      %v2222 = vand.u32 %v2119, 4294901760
      %2223 = vmatprep.subr.mxu0 %v2222
      %v2224 = vand.u32 %v2118, 4294901760
      %2225 = vmatpush1.msra.mxu0 %v2224
      %v2226 = vand.u32 %v2121, 4294901760
      %2227 = vmatprep.subr.mxu0 %v2226
      %v2228 = vand.u32 %v2120, 4294901760
      %2229 = vmatpush1.msra.mxu0 %v2228
      %v2230 = vand.u32 %v2123, 4294901760
      %2231 = vmatprep.subr.mxu0 %v2230
      %v2232 = vand.u32 %v2122, 4294901760
      %2233 = vmatpush1.msra.mxu0 %v2232
      %v2234 = vand.u32 %v2125, 4294901760
      %2235 = vmatprep.subr.mxu0 %v2234
      %v2236 = vand.u32 %v2124, 4294901760
      %2237 = vmatpush1.msra.mxu0 %v2236
      %v2238 = vand.u32 %v2127, 4294901760
      %2239 = vmatprep.subr.mxu0 %v2238
      %v2240 = vand.u32 %v2126, 4294901760
      %2241 = vmatpush1.msra.mxu0 %v2240
      %v2242 = vand.u32 %v2129, 4294901760
      %2243 = vmatprep.subr.mxu0 %v2242
      %v2244 = vand.u32 %v2128, 4294901760
      %2245 = vmatpush1.msra.mxu0 %v2244
      %v2246 = vand.u32 %v2131, 4294901760
      %2247 = vmatprep.subr.mxu0 %v2246
      %v2248 = vand.u32 %v2130, 4294901760
      %2249 = vmatpush1.msra.mxu0 %v2248
      %v2250 = vand.u32 %v2133, 4294901760
      %2251 = vmatprep.subr.mxu0 %v2250
      %v2252 = vand.u32 %v2132, 4294901760
      %2253 = vmatpush1.msra.mxu0 %v2252
      %v2254 = vand.u32 %v2135, 4294901760
      %2255 = vmatprep.subr.mxu0 %v2254
      %v2256 = vand.u32 %v2134, 4294901760
      %2257 = vmatpush1.msra.mxu0 %v2256
      %v2258 = vand.u32 %v2137, 4294901760
      %2259 = vmatprep.subr.mxu0 %v2258
      %v2260 = vand.u32 %v2136, 4294901760
      %2261 = vmatpush1.msra.mxu0 %v2260
      %v2262 = vand.u32 %v2139, 4294901760
      %2263 = vmatprep.subr.mxu0 %v2262
      %v2264 = vand.u32 %v2138, 4294901760
      %2265 = vmatpush1.msra.mxu0 %v2264
      %v2266 = vand.u32 %v2141, 4294901760
      %2267 = vmatprep.subr.mxu0 %v2266
      %v2268 = vand.u32 %v2140, 4294901760
      %2269 = vmatpush1.msra.mxu0 %v2268
      %v2270 = vand.u32 %v2143, 4294901760
      %2271 = vmatprep.subr.mxu0 %v2270
      %v2272 = vand.u32 %v2142, 4294901760
      %2273 = vmatpush1.msra.mxu0 %v2272
      %v2274 = vand.u32 %v1855, 4294901760
      %v2275 = vsub.f32 %v1855, %v2274
      %v2276 = vand.u32 %v2275, 4294901760
      %v2277 = vsub.f32 %v2275, %v2276
      %v2278 = vand.u32 %v2277, 4294901760
      %2279 = vmatprep.mubr.f32.mxu0 %v2278
      %v2280 = vand.u32 %v1854, 4294901760
      %v2281 = vsub.f32 %v1854, %v2280
      %v2282 = vand.u32 %v2281, 4294901760
      %v2283 = vsub.f32 %v2281, %v2282
      %v2284 = vand.u32 %v2283, 4294901760
      %2285 = vmatmul.mubr.f32.gmra.mrb[0].mxu0 %v2284
      %v2286 = vpop.f32.mrb[0].mxu0
      %v2287 = vadd.f32 0.0, %v2286
      %v2288 = vpop.f32.mrb[0].mxu0
      %v2289 = vadd.f32 0.0, %v2288
      %2290 = vdwg.mxu0
      %v2291 = vand.u32 %v2081, 4294901760
      %v2292 = vsub.f32 %v2081, %v2291
      %v2293 = vand.u32 %v2292, 4294901760
      %v2294 = vsub.f32 %v2292, %v2293
      %v2295 = vand.u32 %v2294, 4294901760
      %2296 = vmatprep.subr.mxu0 %v2295
      %v2297 = vand.u32 %v2080, 4294901760
      %v2298 = vsub.f32 %v2080, %v2297
      %v2299 = vand.u32 %v2298, 4294901760
      %v2300 = vsub.f32 %v2298, %v2299
      %v2301 = vand.u32 %v2300, 4294901760
      %2302 = vmatpush1.msra.mxu0 %v2301
      %v2303 = vand.u32 %v2083, 4294901760
      %v2304 = vsub.f32 %v2083, %v2303
      %v2305 = vand.u32 %v2304, 4294901760
      %v2306 = vsub.f32 %v2304, %v2305
      %v2307 = vand.u32 %v2306, 4294901760
      %2308 = vmatprep.subr.mxu0 %v2307
      %v2309 = vand.u32 %v2082, 4294901760
      %v2310 = vsub.f32 %v2082, %v2309
      %v2311 = vand.u32 %v2310, 4294901760
      %v2312 = vsub.f32 %v2310, %v2311
      %v2313 = vand.u32 %v2312, 4294901760
      %2314 = vmatpush1.msra.mxu0 %v2313
      %v2315 = vand.u32 %v2085, 4294901760
      %v2316 = vsub.f32 %v2085, %v2315
      %v2317 = vand.u32 %v2316, 4294901760
      %v2318 = vsub.f32 %v2316, %v2317
      %v2319 = vand.u32 %v2318, 4294901760
      %2320 = vmatprep.subr.mxu0 %v2319
      %v2321 = vand.u32 %v2084, 4294901760
      %v2322 = vsub.f32 %v2084, %v2321
      %v2323 = vand.u32 %v2322, 4294901760
      %v2324 = vsub.f32 %v2322, %v2323
      %v2325 = vand.u32 %v2324, 4294901760
      %2326 = vmatpush1.msra.mxu0 %v2325
      %v2327 = vand.u32 %v2087, 4294901760
      %v2328 = vsub.f32 %v2087, %v2327
      %v2329 = vand.u32 %v2328, 4294901760
      %v2330 = vsub.f32 %v2328, %v2329
      %v2331 = vand.u32 %v2330, 4294901760
      %2332 = vmatprep.subr.mxu0 %v2331
      %v2333 = vand.u32 %v2086, 4294901760
      %v2334 = vsub.f32 %v2086, %v2333
      %v2335 = vand.u32 %v2334, 4294901760
      %v2336 = vsub.f32 %v2334, %v2335
      %v2337 = vand.u32 %v2336, 4294901760
      %2338 = vmatpush1.msra.mxu0 %v2337
      %v2339 = vand.u32 %v2089, 4294901760
      %v2340 = vsub.f32 %v2089, %v2339
      %v2341 = vand.u32 %v2340, 4294901760
      %v2342 = vsub.f32 %v2340, %v2341
      %v2343 = vand.u32 %v2342, 4294901760
      %2344 = vmatprep.subr.mxu0 %v2343
      %v2345 = vand.u32 %v2088, 4294901760
      %v2346 = vsub.f32 %v2088, %v2345
      %v2347 = vand.u32 %v2346, 4294901760
      %v2348 = vsub.f32 %v2346, %v2347
      %v2349 = vand.u32 %v2348, 4294901760
      %2350 = vmatpush1.msra.mxu0 %v2349
      %v2351 = vand.u32 %v2091, 4294901760
      %v2352 = vsub.f32 %v2091, %v2351
      %v2353 = vand.u32 %v2352, 4294901760
      %v2354 = vsub.f32 %v2352, %v2353
      %v2355 = vand.u32 %v2354, 4294901760
      %2356 = vmatprep.subr.mxu0 %v2355
      %v2357 = vand.u32 %v2090, 4294901760
      %v2358 = vsub.f32 %v2090, %v2357
      %v2359 = vand.u32 %v2358, 4294901760
      %v2360 = vsub.f32 %v2358, %v2359
      %v2361 = vand.u32 %v2360, 4294901760
      %2362 = vmatpush1.msra.mxu0 %v2361
      %v2363 = vand.u32 %v2093, 4294901760
      %v2364 = vsub.f32 %v2093, %v2363
      %v2365 = vand.u32 %v2364, 4294901760
      %v2366 = vsub.f32 %v2364, %v2365
      %v2367 = vand.u32 %v2366, 4294901760
      %2368 = vmatprep.subr.mxu0 %v2367
      %v2369 = vand.u32 %v2092, 4294901760
      %v2370 = vsub.f32 %v2092, %v2369
      %v2371 = vand.u32 %v2370, 4294901760
      %v2372 = vsub.f32 %v2370, %v2371
      %v2373 = vand.u32 %v2372, 4294901760
      %2374 = vmatpush1.msra.mxu0 %v2373
      %v2375 = vand.u32 %v2095, 4294901760
      %v2376 = vsub.f32 %v2095, %v2375
      %v2377 = vand.u32 %v2376, 4294901760
      %v2378 = vsub.f32 %v2376, %v2377
      %v2379 = vand.u32 %v2378, 4294901760
      %2380 = vmatprep.subr.mxu0 %v2379
      %v2381 = vand.u32 %v2094, 4294901760
      %v2382 = vsub.f32 %v2094, %v2381
      %v2383 = vand.u32 %v2382, 4294901760
      %v2384 = vsub.f32 %v2382, %v2383
      %v2385 = vand.u32 %v2384, 4294901760
      %2386 = vmatpush1.msra.mxu0 %v2385
      %v2387 = vand.u32 %v2097, 4294901760
      %v2388 = vsub.f32 %v2097, %v2387
      %v2389 = vand.u32 %v2388, 4294901760
      %v2390 = vsub.f32 %v2388, %v2389
      %v2391 = vand.u32 %v2390, 4294901760
      %2392 = vmatprep.subr.mxu0 %v2391
      %v2393 = vand.u32 %v2096, 4294901760
      %v2394 = vsub.f32 %v2096, %v2393
      %v2395 = vand.u32 %v2394, 4294901760
      %v2396 = vsub.f32 %v2394, %v2395
      %v2397 = vand.u32 %v2396, 4294901760
      %2398 = vmatpush1.msra.mxu0 %v2397
      %v2399 = vand.u32 %v2099, 4294901760
      %v2400 = vsub.f32 %v2099, %v2399
      %v2401 = vand.u32 %v2400, 4294901760
      %v2402 = vsub.f32 %v2400, %v2401
      %v2403 = vand.u32 %v2402, 4294901760
      %2404 = vmatprep.subr.mxu0 %v2403
      %v2405 = vand.u32 %v2098, 4294901760
      %v2406 = vsub.f32 %v2098, %v2405
      %v2407 = vand.u32 %v2406, 4294901760
      %v2408 = vsub.f32 %v2406, %v2407
      %v2409 = vand.u32 %v2408, 4294901760
      %2410 = vmatpush1.msra.mxu0 %v2409
      %v2411 = vand.u32 %v2101, 4294901760
      %v2412 = vsub.f32 %v2101, %v2411
      %v2413 = vand.u32 %v2412, 4294901760
      %v2414 = vsub.f32 %v2412, %v2413
      %v2415 = vand.u32 %v2414, 4294901760
      %2416 = vmatprep.subr.mxu0 %v2415
      %v2417 = vand.u32 %v2100, 4294901760
      %v2418 = vsub.f32 %v2100, %v2417
      %v2419 = vand.u32 %v2418, 4294901760
      %v2420 = vsub.f32 %v2418, %v2419
      %v2421 = vand.u32 %v2420, 4294901760
      %2422 = vmatpush1.msra.mxu0 %v2421
      %v2423 = vand.u32 %v2103, 4294901760
      %v2424 = vsub.f32 %v2103, %v2423
      %v2425 = vand.u32 %v2424, 4294901760
      %v2426 = vsub.f32 %v2424, %v2425
      %v2427 = vand.u32 %v2426, 4294901760
      %2428 = vmatprep.subr.mxu0 %v2427
      %v2429 = vand.u32 %v2102, 4294901760
      %v2430 = vsub.f32 %v2102, %v2429
      %v2431 = vand.u32 %v2430, 4294901760
      %v2432 = vsub.f32 %v2430, %v2431
      %v2433 = vand.u32 %v2432, 4294901760
      %2434 = vmatpush1.msra.mxu0 %v2433
      %v2435 = vand.u32 %v2105, 4294901760
      %v2436 = vsub.f32 %v2105, %v2435
      %v2437 = vand.u32 %v2436, 4294901760
      %v2438 = vsub.f32 %v2436, %v2437
      %v2439 = vand.u32 %v2438, 4294901760
      %2440 = vmatprep.subr.mxu0 %v2439
      %v2441 = vand.u32 %v2104, 4294901760
      %v2442 = vsub.f32 %v2104, %v2441
      %v2443 = vand.u32 %v2442, 4294901760
      %v2444 = vsub.f32 %v2442, %v2443
      %v2445 = vand.u32 %v2444, 4294901760
      %2446 = vmatpush1.msra.mxu0 %v2445
      %v2447 = vand.u32 %v2107, 4294901760
      %v2448 = vsub.f32 %v2107, %v2447
      %v2449 = vand.u32 %v2448, 4294901760
      %v2450 = vsub.f32 %v2448, %v2449
      %v2451 = vand.u32 %v2450, 4294901760
      %2452 = vmatprep.subr.mxu0 %v2451
      %v2453 = vand.u32 %v2106, 4294901760
      %v2454 = vsub.f32 %v2106, %v2453
      %v2455 = vand.u32 %v2454, 4294901760
      %v2456 = vsub.f32 %v2454, %v2455
      %v2457 = vand.u32 %v2456, 4294901760
      %2458 = vmatpush1.msra.mxu0 %v2457
      %v2459 = vand.u32 %v2109, 4294901760
      %v2460 = vsub.f32 %v2109, %v2459
      %v2461 = vand.u32 %v2460, 4294901760
      %v2462 = vsub.f32 %v2460, %v2461
      %v2463 = vand.u32 %v2462, 4294901760
      %2464 = vmatprep.subr.mxu0 %v2463
      %v2465 = vand.u32 %v2108, 4294901760
      %v2466 = vsub.f32 %v2108, %v2465
      %v2467 = vand.u32 %v2466, 4294901760
      %v2468 = vsub.f32 %v2466, %v2467
      %v2469 = vand.u32 %v2468, 4294901760
      %2470 = vmatpush1.msra.mxu0 %v2469
      %v2471 = vand.u32 %v2111, 4294901760
      %v2472 = vsub.f32 %v2111, %v2471
      %v2473 = vand.u32 %v2472, 4294901760
      %v2474 = vsub.f32 %v2472, %v2473
      %v2475 = vand.u32 %v2474, 4294901760
      %2476 = vmatprep.subr.mxu0 %v2475
      %v2477 = vand.u32 %v2110, 4294901760
      %v2478 = vsub.f32 %v2110, %v2477
      %v2479 = vand.u32 %v2478, 4294901760
      %v2480 = vsub.f32 %v2478, %v2479
      %v2481 = vand.u32 %v2480, 4294901760
      %2482 = vmatpush1.msra.mxu0 %v2481
      %v2483 = vand.u32 %v2113, 4294901760
      %v2484 = vsub.f32 %v2113, %v2483
      %v2485 = vand.u32 %v2484, 4294901760
      %v2486 = vsub.f32 %v2484, %v2485
      %v2487 = vand.u32 %v2486, 4294901760
      %2488 = vmatprep.subr.mxu0 %v2487
      %v2489 = vand.u32 %v2112, 4294901760
      %v2490 = vsub.f32 %v2112, %v2489
      %v2491 = vand.u32 %v2490, 4294901760
      %v2492 = vsub.f32 %v2490, %v2491
      %v2493 = vand.u32 %v2492, 4294901760
      %2494 = vmatpush1.msra.mxu0 %v2493
      %v2495 = vand.u32 %v2115, 4294901760
      %v2496 = vsub.f32 %v2115, %v2495
      %v2497 = vand.u32 %v2496, 4294901760
      %v2498 = vsub.f32 %v2496, %v2497
      %v2499 = vand.u32 %v2498, 4294901760
      %2500 = vmatprep.subr.mxu0 %v2499
      %v2501 = vand.u32 %v2114, 4294901760
      %v2502 = vsub.f32 %v2114, %v2501
      %v2503 = vand.u32 %v2502, 4294901760
      %v2504 = vsub.f32 %v2502, %v2503
      %v2505 = vand.u32 %v2504, 4294901760
      %2506 = vmatpush1.msra.mxu0 %v2505
      %v2507 = vand.u32 %v2117, 4294901760
      %v2508 = vsub.f32 %v2117, %v2507
      %v2509 = vand.u32 %v2508, 4294901760
      %v2510 = vsub.f32 %v2508, %v2509
      %v2511 = vand.u32 %v2510, 4294901760
      %2512 = vmatprep.subr.mxu0 %v2511
      %v2513 = vand.u32 %v2116, 4294901760
      %v2514 = vsub.f32 %v2116, %v2513
      %v2515 = vand.u32 %v2514, 4294901760
      %v2516 = vsub.f32 %v2514, %v2515
      %v2517 = vand.u32 %v2516, 4294901760
      %2518 = vmatpush1.msra.mxu0 %v2517
      %v2519 = vand.u32 %v2119, 4294901760
      %v2520 = vsub.f32 %v2119, %v2519
      %v2521 = vand.u32 %v2520, 4294901760
      %v2522 = vsub.f32 %v2520, %v2521
      %v2523 = vand.u32 %v2522, 4294901760
      %2524 = vmatprep.subr.mxu0 %v2523
      %v2525 = vand.u32 %v2118, 4294901760
      %v2526 = vsub.f32 %v2118, %v2525
      %v2527 = vand.u32 %v2526, 4294901760
      %v2528 = vsub.f32 %v2526, %v2527
      %v2529 = vand.u32 %v2528, 4294901760
      %2530 = vmatpush1.msra.mxu0 %v2529
      %v2531 = vand.u32 %v2121, 4294901760
      %v2532 = vsub.f32 %v2121, %v2531
      %v2533 = vand.u32 %v2532, 4294901760
      %v2534 = vsub.f32 %v2532, %v2533
      %v2535 = vand.u32 %v2534, 4294901760
      %2536 = vmatprep.subr.mxu0 %v2535
      %v2537 = vand.u32 %v2120, 4294901760
      %v2538 = vsub.f32 %v2120, %v2537
      %v2539 = vand.u32 %v2538, 4294901760
      %v2540 = vsub.f32 %v2538, %v2539
      %v2541 = vand.u32 %v2540, 4294901760
      %2542 = vmatpush1.msra.mxu0 %v2541
      %v2543 = vand.u32 %v2123, 4294901760
      %v2544 = vsub.f32 %v2123, %v2543
      %v2545 = vand.u32 %v2544, 4294901760
      %v2546 = vsub.f32 %v2544, %v2545
      %v2547 = vand.u32 %v2546, 4294901760
      %2548 = vmatprep.subr.mxu0 %v2547
      %v2549 = vand.u32 %v2122, 4294901760
      %v2550 = vsub.f32 %v2122, %v2549
      %v2551 = vand.u32 %v2550, 4294901760
      %v2552 = vsub.f32 %v2550, %v2551
      %v2553 = vand.u32 %v2552, 4294901760
      %2554 = vmatpush1.msra.mxu0 %v2553
      %v2555 = vand.u32 %v2125, 4294901760
      %v2556 = vsub.f32 %v2125, %v2555
      %v2557 = vand.u32 %v2556, 4294901760
      %v2558 = vsub.f32 %v2556, %v2557
      %v2559 = vand.u32 %v2558, 4294901760
      %2560 = vmatprep.subr.mxu0 %v2559
      %v2561 = vand.u32 %v2124, 4294901760
      %v2562 = vsub.f32 %v2124, %v2561
      %v2563 = vand.u32 %v2562, 4294901760
      %v2564 = vsub.f32 %v2562, %v2563
      %v2565 = vand.u32 %v2564, 4294901760
      %2566 = vmatpush1.msra.mxu0 %v2565
      %v2567 = vand.u32 %v2127, 4294901760
      %v2568 = vsub.f32 %v2127, %v2567
      %v2569 = vand.u32 %v2568, 4294901760
      %v2570 = vsub.f32 %v2568, %v2569
      %v2571 = vand.u32 %v2570, 4294901760
      %2572 = vmatprep.subr.mxu0 %v2571
      %v2573 = vand.u32 %v2126, 4294901760
      %v2574 = vsub.f32 %v2126, %v2573
      %v2575 = vand.u32 %v2574, 4294901760
      %v2576 = vsub.f32 %v2574, %v2575
      %v2577 = vand.u32 %v2576, 4294901760
      %2578 = vmatpush1.msra.mxu0 %v2577
      %v2579 = vand.u32 %v2129, 4294901760
      %v2580 = vsub.f32 %v2129, %v2579
      %v2581 = vand.u32 %v2580, 4294901760
      %v2582 = vsub.f32 %v2580, %v2581
      %v2583 = vand.u32 %v2582, 4294901760
      %2584 = vmatprep.subr.mxu0 %v2583
      %v2585 = vand.u32 %v2128, 4294901760
      %v2586 = vsub.f32 %v2128, %v2585
      %v2587 = vand.u32 %v2586, 4294901760
      %v2588 = vsub.f32 %v2586, %v2587
      %v2589 = vand.u32 %v2588, 4294901760
      %2590 = vmatpush1.msra.mxu0 %v2589
      %v2591 = vand.u32 %v2131, 4294901760
      %v2592 = vsub.f32 %v2131, %v2591
      %v2593 = vand.u32 %v2592, 4294901760
      %v2594 = vsub.f32 %v2592, %v2593
      %v2595 = vand.u32 %v2594, 4294901760
      %2596 = vmatprep.subr.mxu0 %v2595
      %v2597 = vand.u32 %v2130, 4294901760
      %v2598 = vsub.f32 %v2130, %v2597
      %v2599 = vand.u32 %v2598, 4294901760
      %v2600 = vsub.f32 %v2598, %v2599
      %v2601 = vand.u32 %v2600, 4294901760
      %2602 = vmatpush1.msra.mxu0 %v2601
      %v2603 = vand.u32 %v2133, 4294901760
      %v2604 = vsub.f32 %v2133, %v2603
      %v2605 = vand.u32 %v2604, 4294901760
      %v2606 = vsub.f32 %v2604, %v2605
      %v2607 = vand.u32 %v2606, 4294901760
      %2608 = vmatprep.subr.mxu0 %v2607
      %v2609 = vand.u32 %v2132, 4294901760
      %v2610 = vsub.f32 %v2132, %v2609
      %v2611 = vand.u32 %v2610, 4294901760
      %v2612 = vsub.f32 %v2610, %v2611
      %v2613 = vand.u32 %v2612, 4294901760
      %2614 = vmatpush1.msra.mxu0 %v2613
      %v2615 = vand.u32 %v2135, 4294901760
      %v2616 = vsub.f32 %v2135, %v2615
      %v2617 = vand.u32 %v2616, 4294901760
      %v2618 = vsub.f32 %v2616, %v2617
      %v2619 = vand.u32 %v2618, 4294901760
      %2620 = vmatprep.subr.mxu0 %v2619
      %v2621 = vand.u32 %v2134, 4294901760
      %v2622 = vsub.f32 %v2134, %v2621
      %v2623 = vand.u32 %v2622, 4294901760
      %v2624 = vsub.f32 %v2622, %v2623
      %v2625 = vand.u32 %v2624, 4294901760
      %2626 = vmatpush1.msra.mxu0 %v2625
      %v2627 = vand.u32 %v2137, 4294901760
      %v2628 = vsub.f32 %v2137, %v2627
      %v2629 = vand.u32 %v2628, 4294901760
      %v2630 = vsub.f32 %v2628, %v2629
      %v2631 = vand.u32 %v2630, 4294901760
      %2632 = vmatprep.subr.mxu0 %v2631
      %v2633 = vand.u32 %v2136, 4294901760
      %v2634 = vsub.f32 %v2136, %v2633
      %v2635 = vand.u32 %v2634, 4294901760
      %v2636 = vsub.f32 %v2634, %v2635
      %v2637 = vand.u32 %v2636, 4294901760
      %2638 = vmatpush1.msra.mxu0 %v2637
      %v2639 = vand.u32 %v2139, 4294901760
      %v2640 = vsub.f32 %v2139, %v2639
      %v2641 = vand.u32 %v2640, 4294901760
      %v2642 = vsub.f32 %v2640, %v2641
      %v2643 = vand.u32 %v2642, 4294901760
      %2644 = vmatprep.subr.mxu0 %v2643
      %v2645 = vand.u32 %v2138, 4294901760
      %v2646 = vsub.f32 %v2138, %v2645
      %v2647 = vand.u32 %v2646, 4294901760
      %v2648 = vsub.f32 %v2646, %v2647
      %v2649 = vand.u32 %v2648, 4294901760
      %2650 = vmatpush1.msra.mxu0 %v2649
      %v2651 = vand.u32 %v2141, 4294901760
      %v2652 = vsub.f32 %v2141, %v2651
      %v2653 = vand.u32 %v2652, 4294901760
      %v2654 = vsub.f32 %v2652, %v2653
      %v2655 = vand.u32 %v2654, 4294901760
      %2656 = vmatprep.subr.mxu0 %v2655
      %v2657 = vand.u32 %v2140, 4294901760
      %v2658 = vsub.f32 %v2140, %v2657
      %v2659 = vand.u32 %v2658, 4294901760
      %v2660 = vsub.f32 %v2658, %v2659
      %v2661 = vand.u32 %v2660, 4294901760
      %2662 = vmatpush1.msra.mxu0 %v2661
      %v2663 = vand.u32 %v2143, 4294901760
      %v2664 = vsub.f32 %v2143, %v2663
      %v2665 = vand.u32 %v2664, 4294901760
      %v2666 = vsub.f32 %v2664, %v2665
      %v2667 = vand.u32 %v2666, 4294901760
      %2668 = vmatprep.subr.mxu0 %v2667
      %v2669 = vand.u32 %v2142, 4294901760
      %v2670 = vsub.f32 %v2142, %v2669
      %v2671 = vand.u32 %v2670, 4294901760
      %v2672 = vsub.f32 %v2670, %v2671
      %v2673 = vand.u32 %v2672, 4294901760
      %2674 = vmatpush1.msra.mxu0 %v2673
      %v2675 = vand.u32 %v1855, 4294901760
      %2676 = vmatprep.mubr.f32.mxu0 %v2675
      %v2677 = vand.u32 %v1854, 4294901760
      %2678 = vmatmul.mubr.f32.gmra.mrb[0].mxu0 %v2677
      %v2679 = vpop.f32.mrb[0].mxu0
      %v2680 = vadd.f32 %v2287, %v2679
      %v2681 = vpop.f32.mrb[0].mxu0
      %v2682 = vadd.f32 %v2289, %v2681
      %2683 = vdwg.mxu0
      %v2684 = vand.u32 %v2081, 4294901760
      %v2685 = vsub.f32 %v2081, %v2684
      %2686 = vmatprep.subr.mxu0 %v2685
      %v2687 = vand.u32 %v2080, 4294901760
      %v2688 = vsub.f32 %v2080, %v2687
      %2689 = vmatpush1.msra.mxu0 %v2688
      %v2690 = vand.u32 %v2083, 4294901760
      %v2691 = vsub.f32 %v2083, %v2690
      %2692 = vmatprep.subr.mxu0 %v2691
      %v2693 = vand.u32 %v2082, 4294901760
      %v2694 = vsub.f32 %v2082, %v2693
      %2695 = vmatpush1.msra.mxu0 %v2694
      %v2696 = vand.u32 %v2085, 4294901760
      %v2697 = vsub.f32 %v2085, %v2696
      %2698 = vmatprep.subr.mxu0 %v2697
      %v2699 = vand.u32 %v2084, 4294901760
      %v2700 = vsub.f32 %v2084, %v2699
      %2701 = vmatpush1.msra.mxu0 %v2700
      %v2702 = vand.u32 %v2087, 4294901760
      %v2703 = vsub.f32 %v2087, %v2702
      %2704 = vmatprep.subr.mxu0 %v2703
      %v2705 = vand.u32 %v2086, 4294901760
      %v2706 = vsub.f32 %v2086, %v2705
      %2707 = vmatpush1.msra.mxu0 %v2706
      %v2708 = vand.u32 %v2089, 4294901760
      %v2709 = vsub.f32 %v2089, %v2708
      %2710 = vmatprep.subr.mxu0 %v2709
      %v2711 = vand.u32 %v2088, 4294901760
      %v2712 = vsub.f32 %v2088, %v2711
      %2713 = vmatpush1.msra.mxu0 %v2712
      %v2714 = vand.u32 %v2091, 4294901760
      %v2715 = vsub.f32 %v2091, %v2714
      %2716 = vmatprep.subr.mxu0 %v2715
      %v2717 = vand.u32 %v2090, 4294901760
      %v2718 = vsub.f32 %v2090, %v2717
      %2719 = vmatpush1.msra.mxu0 %v2718
      %v2720 = vand.u32 %v2093, 4294901760
      %v2721 = vsub.f32 %v2093, %v2720
      %2722 = vmatprep.subr.mxu0 %v2721
      %v2723 = vand.u32 %v2092, 4294901760
      %v2724 = vsub.f32 %v2092, %v2723
      %2725 = vmatpush1.msra.mxu0 %v2724
      %v2726 = vand.u32 %v2095, 4294901760
      %v2727 = vsub.f32 %v2095, %v2726
      %2728 = vmatprep.subr.mxu0 %v2727
      %v2729 = vand.u32 %v2094, 4294901760
      %v2730 = vsub.f32 %v2094, %v2729
      %2731 = vmatpush1.msra.mxu0 %v2730
      %v2732 = vand.u32 %v2097, 4294901760
      %v2733 = vsub.f32 %v2097, %v2732
      %2734 = vmatprep.subr.mxu0 %v2733
      %v2735 = vand.u32 %v2096, 4294901760
      %v2736 = vsub.f32 %v2096, %v2735
      %2737 = vmatpush1.msra.mxu0 %v2736
      %v2738 = vand.u32 %v2099, 4294901760
      %v2739 = vsub.f32 %v2099, %v2738
      %2740 = vmatprep.subr.mxu0 %v2739
      %v2741 = vand.u32 %v2098, 4294901760
      %v2742 = vsub.f32 %v2098, %v2741
      %2743 = vmatpush1.msra.mxu0 %v2742
      %v2744 = vand.u32 %v2101, 4294901760
      %v2745 = vsub.f32 %v2101, %v2744
      %2746 = vmatprep.subr.mxu0 %v2745
      %v2747 = vand.u32 %v2100, 4294901760
      %v2748 = vsub.f32 %v2100, %v2747
      %2749 = vmatpush1.msra.mxu0 %v2748
      %v2750 = vand.u32 %v2103, 4294901760
      %v2751 = vsub.f32 %v2103, %v2750
      %2752 = vmatprep.subr.mxu0 %v2751
      %v2753 = vand.u32 %v2102, 4294901760
      %v2754 = vsub.f32 %v2102, %v2753
      %2755 = vmatpush1.msra.mxu0 %v2754
      %v2756 = vand.u32 %v2105, 4294901760
      %v2757 = vsub.f32 %v2105, %v2756
      %2758 = vmatprep.subr.mxu0 %v2757
      %v2759 = vand.u32 %v2104, 4294901760
      %v2760 = vsub.f32 %v2104, %v2759
      %2761 = vmatpush1.msra.mxu0 %v2760
      %v2762 = vand.u32 %v2107, 4294901760
      %v2763 = vsub.f32 %v2107, %v2762
      %2764 = vmatprep.subr.mxu0 %v2763
      %v2765 = vand.u32 %v2106, 4294901760
      %v2766 = vsub.f32 %v2106, %v2765
      %2767 = vmatpush1.msra.mxu0 %v2766
      %v2768 = vand.u32 %v2109, 4294901760
      %v2769 = vsub.f32 %v2109, %v2768
      %2770 = vmatprep.subr.mxu0 %v2769
      %v2771 = vand.u32 %v2108, 4294901760
      %v2772 = vsub.f32 %v2108, %v2771
      %2773 = vmatpush1.msra.mxu0 %v2772
      %v2774 = vand.u32 %v2111, 4294901760
      %v2775 = vsub.f32 %v2111, %v2774
      %2776 = vmatprep.subr.mxu0 %v2775
      %v2777 = vand.u32 %v2110, 4294901760
      %v2778 = vsub.f32 %v2110, %v2777
      %2779 = vmatpush1.msra.mxu0 %v2778
      %v2780 = vand.u32 %v2113, 4294901760
      %v2781 = vsub.f32 %v2113, %v2780
      %2782 = vmatprep.subr.mxu0 %v2781
      %v2783 = vand.u32 %v2112, 4294901760
      %v2784 = vsub.f32 %v2112, %v2783
      %2785 = vmatpush1.msra.mxu0 %v2784
      %v2786 = vand.u32 %v2115, 4294901760
      %v2787 = vsub.f32 %v2115, %v2786
      %2788 = vmatprep.subr.mxu0 %v2787
      %v2789 = vand.u32 %v2114, 4294901760
      %v2790 = vsub.f32 %v2114, %v2789
      %2791 = vmatpush1.msra.mxu0 %v2790
      %v2792 = vand.u32 %v2117, 4294901760
      %v2793 = vsub.f32 %v2117, %v2792
      %2794 = vmatprep.subr.mxu0 %v2793
      %v2795 = vand.u32 %v2116, 4294901760
      %v2796 = vsub.f32 %v2116, %v2795
      %2797 = vmatpush1.msra.mxu0 %v2796
      %v2798 = vand.u32 %v2119, 4294901760
      %v2799 = vsub.f32 %v2119, %v2798
      %2800 = vmatprep.subr.mxu0 %v2799
      %v2801 = vand.u32 %v2118, 4294901760
      %v2802 = vsub.f32 %v2118, %v2801
      %2803 = vmatpush1.msra.mxu0 %v2802
      %v2804 = vand.u32 %v2121, 4294901760
      %v2805 = vsub.f32 %v2121, %v2804
      %2806 = vmatprep.subr.mxu0 %v2805
      %v2807 = vand.u32 %v2120, 4294901760
      %v2808 = vsub.f32 %v2120, %v2807
      %2809 = vmatpush1.msra.mxu0 %v2808
      %v2810 = vand.u32 %v2123, 4294901760
      %v2811 = vsub.f32 %v2123, %v2810
      %2812 = vmatprep.subr.mxu0 %v2811
      %v2813 = vand.u32 %v2122, 4294901760
      %v2814 = vsub.f32 %v2122, %v2813
      %2815 = vmatpush1.msra.mxu0 %v2814
      %v2816 = vand.u32 %v2125, 4294901760
      %v2817 = vsub.f32 %v2125, %v2816
      %2818 = vmatprep.subr.mxu0 %v2817
      %v2819 = vand.u32 %v2124, 4294901760
      %v2820 = vsub.f32 %v2124, %v2819
      %2821 = vmatpush1.msra.mxu0 %v2820
      %v2822 = vand.u32 %v2127, 4294901760
      %v2823 = vsub.f32 %v2127, %v2822
      %2824 = vmatprep.subr.mxu0 %v2823
      %v2825 = vand.u32 %v2126, 4294901760
      %v2826 = vsub.f32 %v2126, %v2825
      %2827 = vmatpush1.msra.mxu0 %v2826
      %v2828 = vand.u32 %v2129, 4294901760
      %v2829 = vsub.f32 %v2129, %v2828
      %2830 = vmatprep.subr.mxu0 %v2829
      %v2831 = vand.u32 %v2128, 4294901760
      %v2832 = vsub.f32 %v2128, %v2831
      %2833 = vmatpush1.msra.mxu0 %v2832
      %v2834 = vand.u32 %v2131, 4294901760
      %v2835 = vsub.f32 %v2131, %v2834
      %2836 = vmatprep.subr.mxu0 %v2835
      %v2837 = vand.u32 %v2130, 4294901760
      %v2838 = vsub.f32 %v2130, %v2837
      %2839 = vmatpush1.msra.mxu0 %v2838
      %v2840 = vand.u32 %v2133, 4294901760
      %v2841 = vsub.f32 %v2133, %v2840
      %2842 = vmatprep.subr.mxu0 %v2841
      %v2843 = vand.u32 %v2132, 4294901760
      %v2844 = vsub.f32 %v2132, %v2843
      %2845 = vmatpush1.msra.mxu0 %v2844
      %v2846 = vand.u32 %v2135, 4294901760
      %v2847 = vsub.f32 %v2135, %v2846
      %2848 = vmatprep.subr.mxu0 %v2847
      %v2849 = vand.u32 %v2134, 4294901760
      %v2850 = vsub.f32 %v2134, %v2849
      %2851 = vmatpush1.msra.mxu0 %v2850
      %v2852 = vand.u32 %v2137, 4294901760
      %v2853 = vsub.f32 %v2137, %v2852
      %2854 = vmatprep.subr.mxu0 %v2853
      %v2855 = vand.u32 %v2136, 4294901760
      %v2856 = vsub.f32 %v2136, %v2855
      %2857 = vmatpush1.msra.mxu0 %v2856
      %v2858 = vand.u32 %v2139, 4294901760
      %v2859 = vsub.f32 %v2139, %v2858
      %2860 = vmatprep.subr.mxu0 %v2859
      %v2861 = vand.u32 %v2138, 4294901760
      %v2862 = vsub.f32 %v2138, %v2861
      %2863 = vmatpush1.msra.mxu0 %v2862
      %v2864 = vand.u32 %v2141, 4294901760
      %v2865 = vsub.f32 %v2141, %v2864
      %2866 = vmatprep.subr.mxu0 %v2865
      %v2867 = vand.u32 %v2140, 4294901760
      %v2868 = vsub.f32 %v2140, %v2867
      %2869 = vmatpush1.msra.mxu0 %v2868
      %v2870 = vand.u32 %v2143, 4294901760
      %v2871 = vsub.f32 %v2143, %v2870
      %2872 = vmatprep.subr.mxu0 %v2871
      %v2873 = vand.u32 %v2142, 4294901760
      %v2874 = vsub.f32 %v2142, %v2873
      %2875 = vmatpush1.msra.mxu0 %v2874
      %v2876 = vand.u32 %v1855, 4294901760
      %v2877 = vsub.f32 %v1855, %v2876
      %2878 = vmatprep.mubr.f32.mxu0 %v2877
      %v2879 = vand.u32 %v1854, 4294901760
      %v2880 = vsub.f32 %v1854, %v2879
      %2881 = vmatmul.mubr.f32.gmra.mrb[0].mxu0 %v2880
      %v2882 = vpop.f32.mrb[0].mxu0
      %v2883 = vadd.f32 %v2680, %v2882
      %v2884 = vpop.f32.mrb[0].mxu0
      %v2885 = vadd.f32 %v2682, %v2884
      %2886 = vdwg.mxu0
      %v2887 = vand.u32 %v2081, 4294901760
      %2888 = vmatprep.subr.mxu0 %v2887
      %v2889 = vand.u32 %v2080, 4294901760
      %2890 = vmatpush1.msra.mxu0 %v2889
      %v2891 = vand.u32 %v2083, 4294901760
      %2892 = vmatprep.subr.mxu0 %v2891
      %v2893 = vand.u32 %v2082, 4294901760
      %2894 = vmatpush1.msra.mxu0 %v2893
      %v2895 = vand.u32 %v2085, 4294901760
      %2896 = vmatprep.subr.mxu0 %v2895
      %v2897 = vand.u32 %v2084, 4294901760
      %2898 = vmatpush1.msra.mxu0 %v2897
      %v2899 = vand.u32 %v2087, 4294901760
      %2900 = vmatprep.subr.mxu0 %v2899
      %v2901 = vand.u32 %v2086, 4294901760
      %2902 = vmatpush1.msra.mxu0 %v2901
      %v2903 = vand.u32 %v2089, 4294901760
      %2904 = vmatprep.subr.mxu0 %v2903
      %v2905 = vand.u32 %v2088, 4294901760
      %2906 = vmatpush1.msra.mxu0 %v2905
      %v2907 = vand.u32 %v2091, 4294901760
      %2908 = vmatprep.subr.mxu0 %v2907
      %v2909 = vand.u32 %v2090, 4294901760
      %2910 = vmatpush1.msra.mxu0 %v2909
      %v2911 = vand.u32 %v2093, 4294901760
      %2912 = vmatprep.subr.mxu0 %v2911
      %v2913 = vand.u32 %v2092, 4294901760
      %2914 = vmatpush1.msra.mxu0 %v2913
      %v2915 = vand.u32 %v2095, 4294901760
      %2916 = vmatprep.subr.mxu0 %v2915
      %v2917 = vand.u32 %v2094, 4294901760
      %2918 = vmatpush1.msra.mxu0 %v2917
      %v2919 = vand.u32 %v2097, 4294901760
      %2920 = vmatprep.subr.mxu0 %v2919
      %v2921 = vand.u32 %v2096, 4294901760
      %2922 = vmatpush1.msra.mxu0 %v2921
      %v2923 = vand.u32 %v2099, 4294901760
      %2924 = vmatprep.subr.mxu0 %v2923
      %v2925 = vand.u32 %v2098, 4294901760
      %2926 = vmatpush1.msra.mxu0 %v2925
      %v2927 = vand.u32 %v2101, 4294901760
      %2928 = vmatprep.subr.mxu0 %v2927
      %v2929 = vand.u32 %v2100, 4294901760
      %2930 = vmatpush1.msra.mxu0 %v2929
      %v2931 = vand.u32 %v2103, 4294901760
      %2932 = vmatprep.subr.mxu0 %v2931
      %v2933 = vand.u32 %v2102, 4294901760
      %2934 = vmatpush1.msra.mxu0 %v2933
      %v2935 = vand.u32 %v2105, 4294901760
      %2936 = vmatprep.subr.mxu0 %v2935
      %v2937 = vand.u32 %v2104, 4294901760
      %2938 = vmatpush1.msra.mxu0 %v2937
      %v2939 = vand.u32 %v2107, 4294901760
      %2940 = vmatprep.subr.mxu0 %v2939
      %v2941 = vand.u32 %v2106, 4294901760
      %2942 = vmatpush1.msra.mxu0 %v2941
      %v2943 = vand.u32 %v2109, 4294901760
      %2944 = vmatprep.subr.mxu0 %v2943
      %v2945 = vand.u32 %v2108, 4294901760
      %2946 = vmatpush1.msra.mxu0 %v2945
      %v2947 = vand.u32 %v2111, 4294901760
      %2948 = vmatprep.subr.mxu0 %v2947
      %v2949 = vand.u32 %v2110, 4294901760
      %2950 = vmatpush1.msra.mxu0 %v2949
      %v2951 = vand.u32 %v2113, 4294901760
      %2952 = vmatprep.subr.mxu0 %v2951
      %v2953 = vand.u32 %v2112, 4294901760
      %2954 = vmatpush1.msra.mxu0 %v2953
      %v2955 = vand.u32 %v2115, 4294901760
      %2956 = vmatprep.subr.mxu0 %v2955
      %v2957 = vand.u32 %v2114, 4294901760
      %2958 = vmatpush1.msra.mxu0 %v2957
      %v2959 = vand.u32 %v2117, 4294901760
      %2960 = vmatprep.subr.mxu0 %v2959
      %v2961 = vand.u32 %v2116, 4294901760
      %2962 = vmatpush1.msra.mxu0 %v2961
      %v2963 = vand.u32 %v2119, 4294901760
      %2964 = vmatprep.subr.mxu0 %v2963
      %v2965 = vand.u32 %v2118, 4294901760
      %2966 = vmatpush1.msra.mxu0 %v2965
      %v2967 = vand.u32 %v2121, 4294901760
      %2968 = vmatprep.subr.mxu0 %v2967
      %v2969 = vand.u32 %v2120, 4294901760
      %2970 = vmatpush1.msra.mxu0 %v2969
      %v2971 = vand.u32 %v2123, 4294901760
      %2972 = vmatprep.subr.mxu0 %v2971
      %v2973 = vand.u32 %v2122, 4294901760
      %2974 = vmatpush1.msra.mxu0 %v2973
      %v2975 = vand.u32 %v2125, 4294901760
      %2976 = vmatprep.subr.mxu0 %v2975
      %v2977 = vand.u32 %v2124, 4294901760
      %2978 = vmatpush1.msra.mxu0 %v2977
      %v2979 = vand.u32 %v2127, 4294901760
      %2980 = vmatprep.subr.mxu0 %v2979
      %v2981 = vand.u32 %v2126, 4294901760
      %2982 = vmatpush1.msra.mxu0 %v2981
      %v2983 = vand.u32 %v2129, 4294901760
      %2984 = vmatprep.subr.mxu0 %v2983
      %v2985 = vand.u32 %v2128, 4294901760
      %2986 = vmatpush1.msra.mxu0 %v2985
      %v2987 = vand.u32 %v2131, 4294901760
      %2988 = vmatprep.subr.mxu0 %v2987
      %v2989 = vand.u32 %v2130, 4294901760
      %2990 = vmatpush1.msra.mxu0 %v2989
      %v2991 = vand.u32 %v2133, 4294901760
      %2992 = vmatprep.subr.mxu0 %v2991
      %v2993 = vand.u32 %v2132, 4294901760
      %2994 = vmatpush1.msra.mxu0 %v2993
      %v2995 = vand.u32 %v2135, 4294901760
      %2996 = vmatprep.subr.mxu0 %v2995
      %v2997 = vand.u32 %v2134, 4294901760
      %2998 = vmatpush1.msra.mxu0 %v2997
      %v2999 = vand.u32 %v2137, 4294901760
      %3000 = vmatprep.subr.mxu0 %v2999
      %v3001 = vand.u32 %v2136, 4294901760
      %3002 = vmatpush1.msra.mxu0 %v3001
      %v3003 = vand.u32 %v2139, 4294901760
      %3004 = vmatprep.subr.mxu0 %v3003
      %v3005 = vand.u32 %v2138, 4294901760
      %3006 = vmatpush1.msra.mxu0 %v3005
      %v3007 = vand.u32 %v2141, 4294901760
      %3008 = vmatprep.subr.mxu0 %v3007
      %v3009 = vand.u32 %v2140, 4294901760
      %3010 = vmatpush1.msra.mxu0 %v3009
      %v3011 = vand.u32 %v2143, 4294901760
      %3012 = vmatprep.subr.mxu0 %v3011
      %v3013 = vand.u32 %v2142, 4294901760
      %3014 = vmatpush1.msra.mxu0 %v3013
      %v3015 = vand.u32 %v1855, 4294901760
      %v3016 = vsub.f32 %v1855, %v3015
      %v3017 = vand.u32 %v3016, 4294901760
      %3018 = vmatprep.mubr.f32.mxu0 %v3017
      %v3019 = vand.u32 %v1854, 4294901760
      %v3020 = vsub.f32 %v1854, %v3019
      %v3021 = vand.u32 %v3020, 4294901760
      %3022 = vmatmul.mubr.f32.gmra.mrb[0].mxu0 %v3021
      %v3023 = vpop.f32.mrb[0].mxu0
      %v3024 = vadd.f32 %v2883, %v3023
      %v3025 = vpop.f32.mrb[0].mxu0
      %v3026 = vadd.f32 %v2885, %v3025
      %3027 = vdwg.mxu0
      %v3028 = vand.u32 %v2081, 4294901760
      %v3029 = vsub.f32 %v2081, %v3028
      %v3030 = vand.u32 %v3029, 4294901760
      %3031 = vmatprep.subr.mxu0 %v3030
      %v3032 = vand.u32 %v2080, 4294901760
      %v3033 = vsub.f32 %v2080, %v3032
      %v3034 = vand.u32 %v3033, 4294901760
      %3035 = vmatpush1.msra.mxu0 %v3034
      %v3036 = vand.u32 %v2083, 4294901760
      %v3037 = vsub.f32 %v2083, %v3036
      %v3038 = vand.u32 %v3037, 4294901760
      %3039 = vmatprep.subr.mxu0 %v3038
      %v3040 = vand.u32 %v2082, 4294901760
      %v3041 = vsub.f32 %v2082, %v3040
      %v3042 = vand.u32 %v3041, 4294901760
      %3043 = vmatpush1.msra.mxu0 %v3042
      %v3044 = vand.u32 %v2085, 4294901760
      %v3045 = vsub.f32 %v2085, %v3044
      %v3046 = vand.u32 %v3045, 4294901760
      %3047 = vmatprep.subr.mxu0 %v3046
      %v3048 = vand.u32 %v2084, 4294901760
      %v3049 = vsub.f32 %v2084, %v3048
      %v3050 = vand.u32 %v3049, 4294901760
      %3051 = vmatpush1.msra.mxu0 %v3050
      %v3052 = vand.u32 %v2087, 4294901760
      %v3053 = vsub.f32 %v2087, %v3052
      %v3054 = vand.u32 %v3053, 4294901760
      %3055 = vmatprep.subr.mxu0 %v3054
      %v3056 = vand.u32 %v2086, 4294901760
      %v3057 = vsub.f32 %v2086, %v3056
      %v3058 = vand.u32 %v3057, 4294901760
      %3059 = vmatpush1.msra.mxu0 %v3058
      %v3060 = vand.u32 %v2089, 4294901760
      %v3061 = vsub.f32 %v2089, %v3060
      %v3062 = vand.u32 %v3061, 4294901760
      %3063 = vmatprep.subr.mxu0 %v3062
      %v3064 = vand.u32 %v2088, 4294901760
      %v3065 = vsub.f32 %v2088, %v3064
      %v3066 = vand.u32 %v3065, 4294901760
      %3067 = vmatpush1.msra.mxu0 %v3066
      %v3068 = vand.u32 %v2091, 4294901760
      %v3069 = vsub.f32 %v2091, %v3068
      %v3070 = vand.u32 %v3069, 4294901760
      %3071 = vmatprep.subr.mxu0 %v3070
      %v3072 = vand.u32 %v2090, 4294901760
      %v3073 = vsub.f32 %v2090, %v3072
      %v3074 = vand.u32 %v3073, 4294901760
      %3075 = vmatpush1.msra.mxu0 %v3074
      %v3076 = vand.u32 %v2093, 4294901760
      %v3077 = vsub.f32 %v2093, %v3076
      %v3078 = vand.u32 %v3077, 4294901760
      %3079 = vmatprep.subr.mxu0 %v3078
      %v3080 = vand.u32 %v2092, 4294901760
      %v3081 = vsub.f32 %v2092, %v3080
      %v3082 = vand.u32 %v3081, 4294901760
      %3083 = vmatpush1.msra.mxu0 %v3082
      %v3084 = vand.u32 %v2095, 4294901760
      %v3085 = vsub.f32 %v2095, %v3084
      %v3086 = vand.u32 %v3085, 4294901760
      %3087 = vmatprep.subr.mxu0 %v3086
      %v3088 = vand.u32 %v2094, 4294901760
      %v3089 = vsub.f32 %v2094, %v3088
      %v3090 = vand.u32 %v3089, 4294901760
      %3091 = vmatpush1.msra.mxu0 %v3090
      %v3092 = vand.u32 %v2097, 4294901760
      %v3093 = vsub.f32 %v2097, %v3092
      %v3094 = vand.u32 %v3093, 4294901760
      %3095 = vmatprep.subr.mxu0 %v3094
      %v3096 = vand.u32 %v2096, 4294901760
      %v3097 = vsub.f32 %v2096, %v3096
      %v3098 = vand.u32 %v3097, 4294901760
      %3099 = vmatpush1.msra.mxu0 %v3098
      %v3100 = vand.u32 %v2099, 4294901760
      %v3101 = vsub.f32 %v2099, %v3100
      %v3102 = vand.u32 %v3101, 4294901760
      %3103 = vmatprep.subr.mxu0 %v3102
      %v3104 = vand.u32 %v2098, 4294901760
      %v3105 = vsub.f32 %v2098, %v3104
      %v3106 = vand.u32 %v3105, 4294901760
      %3107 = vmatpush1.msra.mxu0 %v3106
      %v3108 = vand.u32 %v2101, 4294901760
      %v3109 = vsub.f32 %v2101, %v3108
      %v3110 = vand.u32 %v3109, 4294901760
      %3111 = vmatprep.subr.mxu0 %v3110
      %v3112 = vand.u32 %v2100, 4294901760
      %v3113 = vsub.f32 %v2100, %v3112
      %v3114 = vand.u32 %v3113, 4294901760
      %3115 = vmatpush1.msra.mxu0 %v3114
      %v3116 = vand.u32 %v2103, 4294901760
      %v3117 = vsub.f32 %v2103, %v3116
      %v3118 = vand.u32 %v3117, 4294901760
      %3119 = vmatprep.subr.mxu0 %v3118
      %v3120 = vand.u32 %v2102, 4294901760
      %v3121 = vsub.f32 %v2102, %v3120
      %v3122 = vand.u32 %v3121, 4294901760
      %3123 = vmatpush1.msra.mxu0 %v3122
      %v3124 = vand.u32 %v2105, 4294901760
      %v3125 = vsub.f32 %v2105, %v3124
      %v3126 = vand.u32 %v3125, 4294901760
      %3127 = vmatprep.subr.mxu0 %v3126
      %v3128 = vand.u32 %v2104, 4294901760
      %v3129 = vsub.f32 %v2104, %v3128
      %v3130 = vand.u32 %v3129, 4294901760
      %3131 = vmatpush1.msra.mxu0 %v3130
      %v3132 = vand.u32 %v2107, 4294901760
      %v3133 = vsub.f32 %v2107, %v3132
      %v3134 = vand.u32 %v3133, 4294901760
      %3135 = vmatprep.subr.mxu0 %v3134
      %v3136 = vand.u32 %v2106, 4294901760
      %v3137 = vsub.f32 %v2106, %v3136
      %v3138 = vand.u32 %v3137, 4294901760
      %3139 = vmatpush1.msra.mxu0 %v3138
      %v3140 = vand.u32 %v2109, 4294901760
      %v3141 = vsub.f32 %v2109, %v3140
      %v3142 = vand.u32 %v3141, 4294901760
      %3143 = vmatprep.subr.mxu0 %v3142
      %v3144 = vand.u32 %v2108, 4294901760
      %v3145 = vsub.f32 %v2108, %v3144
      %v3146 = vand.u32 %v3145, 4294901760
      %3147 = vmatpush1.msra.mxu0 %v3146
      %v3148 = vand.u32 %v2111, 4294901760
      %v3149 = vsub.f32 %v2111, %v3148
      %v3150 = vand.u32 %v3149, 4294901760
      %3151 = vmatprep.subr.mxu0 %v3150
      %v3152 = vand.u32 %v2110, 4294901760
      %v3153 = vsub.f32 %v2110, %v3152
      %v3154 = vand.u32 %v3153, 4294901760
      %3155 = vmatpush1.msra.mxu0 %v3154
      %v3156 = vand.u32 %v2113, 4294901760
      %v3157 = vsub.f32 %v2113, %v3156
      %v3158 = vand.u32 %v3157, 4294901760
      %3159 = vmatprep.subr.mxu0 %v3158
      %v3160 = vand.u32 %v2112, 4294901760
      %v3161 = vsub.f32 %v2112, %v3160
      %v3162 = vand.u32 %v3161, 4294901760
      %3163 = vmatpush1.msra.mxu0 %v3162
      %v3164 = vand.u32 %v2115, 4294901760
      %v3165 = vsub.f32 %v2115, %v3164
      %v3166 = vand.u32 %v3165, 4294901760
      %3167 = vmatprep.subr.mxu0 %v3166
      %v3168 = vand.u32 %v2114, 4294901760
      %v3169 = vsub.f32 %v2114, %v3168
      %v3170 = vand.u32 %v3169, 4294901760
      %3171 = vmatpush1.msra.mxu0 %v3170
      %v3172 = vand.u32 %v2117, 4294901760
      %v3173 = vsub.f32 %v2117, %v3172
      %v3174 = vand.u32 %v3173, 4294901760
      %3175 = vmatprep.subr.mxu0 %v3174
      %v3176 = vand.u32 %v2116, 4294901760
      %v3177 = vsub.f32 %v2116, %v3176
      %v3178 = vand.u32 %v3177, 4294901760
      %3179 = vmatpush1.msra.mxu0 %v3178
      %v3180 = vand.u32 %v2119, 4294901760
      %v3181 = vsub.f32 %v2119, %v3180
      %v3182 = vand.u32 %v3181, 4294901760
      %3183 = vmatprep.subr.mxu0 %v3182
      %v3184 = vand.u32 %v2118, 4294901760
      %v3185 = vsub.f32 %v2118, %v3184
      %v3186 = vand.u32 %v3185, 4294901760
      %3187 = vmatpush1.msra.mxu0 %v3186
      %v3188 = vand.u32 %v2121, 4294901760
      %v3189 = vsub.f32 %v2121, %v3188
      %v3190 = vand.u32 %v3189, 4294901760
      %3191 = vmatprep.subr.mxu0 %v3190
      %v3192 = vand.u32 %v2120, 4294901760
      %v3193 = vsub.f32 %v2120, %v3192
      %v3194 = vand.u32 %v3193, 4294901760
      %3195 = vmatpush1.msra.mxu0 %v3194
      %v3196 = vand.u32 %v2123, 4294901760
      %v3197 = vsub.f32 %v2123, %v3196
      %v3198 = vand.u32 %v3197, 4294901760
      %3199 = vmatprep.subr.mxu0 %v3198
      %v3200 = vand.u32 %v2122, 4294901760
      %v3201 = vsub.f32 %v2122, %v3200
      %v3202 = vand.u32 %v3201, 4294901760
      %3203 = vmatpush1.msra.mxu0 %v3202
      %v3204 = vand.u32 %v2125, 4294901760
      %v3205 = vsub.f32 %v2125, %v3204
      %v3206 = vand.u32 %v3205, 4294901760
      %3207 = vmatprep.subr.mxu0 %v3206
      %v3208 = vand.u32 %v2124, 4294901760
      %v3209 = vsub.f32 %v2124, %v3208
      %v3210 = vand.u32 %v3209, 4294901760
      %3211 = vmatpush1.msra.mxu0 %v3210
      %v3212 = vand.u32 %v2127, 4294901760
      %v3213 = vsub.f32 %v2127, %v3212
      %v3214 = vand.u32 %v3213, 4294901760
      %3215 = vmatprep.subr.mxu0 %v3214
      %v3216 = vand.u32 %v2126, 4294901760
      %v3217 = vsub.f32 %v2126, %v3216
      %v3218 = vand.u32 %v3217, 4294901760
      %3219 = vmatpush1.msra.mxu0 %v3218
      %v3220 = vand.u32 %v2129, 4294901760
      %v3221 = vsub.f32 %v2129, %v3220
      %v3222 = vand.u32 %v3221, 4294901760
      %3223 = vmatprep.subr.mxu0 %v3222
      %v3224 = vand.u32 %v2128, 4294901760
      %v3225 = vsub.f32 %v2128, %v3224
      %v3226 = vand.u32 %v3225, 4294901760
      %3227 = vmatpush1.msra.mxu0 %v3226
      %v3228 = vand.u32 %v2131, 4294901760
      %v3229 = vsub.f32 %v2131, %v3228
      %v3230 = vand.u32 %v3229, 4294901760
      %3231 = vmatprep.subr.mxu0 %v3230
      %v3232 = vand.u32 %v2130, 4294901760
      %v3233 = vsub.f32 %v2130, %v3232
      %v3234 = vand.u32 %v3233, 4294901760
      %3235 = vmatpush1.msra.mxu0 %v3234
      %v3236 = vand.u32 %v2133, 4294901760
      %v3237 = vsub.f32 %v2133, %v3236
      %v3238 = vand.u32 %v3237, 4294901760
      %3239 = vmatprep.subr.mxu0 %v3238
      %v3240 = vand.u32 %v2132, 4294901760
      %v3241 = vsub.f32 %v2132, %v3240
      %v3242 = vand.u32 %v3241, 4294901760
      %3243 = vmatpush1.msra.mxu0 %v3242
      %v3244 = vand.u32 %v2135, 4294901760
      %v3245 = vsub.f32 %v2135, %v3244
      %v3246 = vand.u32 %v3245, 4294901760
      %3247 = vmatprep.subr.mxu0 %v3246
      %v3248 = vand.u32 %v2134, 4294901760
      %v3249 = vsub.f32 %v2134, %v3248
      %v3250 = vand.u32 %v3249, 4294901760
      %3251 = vmatpush1.msra.mxu0 %v3250
      %v3252 = vand.u32 %v2137, 4294901760
      %v3253 = vsub.f32 %v2137, %v3252
      %v3254 = vand.u32 %v3253, 4294901760
      %3255 = vmatprep.subr.mxu0 %v3254
      %v3256 = vand.u32 %v2136, 4294901760
      %v3257 = vsub.f32 %v2136, %v3256
      %v3258 = vand.u32 %v3257, 4294901760
      %3259 = vmatpush1.msra.mxu0 %v3258
      %v3260 = vand.u32 %v2139, 4294901760
      %v3261 = vsub.f32 %v2139, %v3260
      %v3262 = vand.u32 %v3261, 4294901760
      %3263 = vmatprep.subr.mxu0 %v3262
      %v3264 = vand.u32 %v2138, 4294901760
      %v3265 = vsub.f32 %v2138, %v3264
      %v3266 = vand.u32 %v3265, 4294901760
      %3267 = vmatpush1.msra.mxu0 %v3266
      %v3268 = vand.u32 %v2141, 4294901760
      %v3269 = vsub.f32 %v2141, %v3268
      %v3270 = vand.u32 %v3269, 4294901760
      %3271 = vmatprep.subr.mxu0 %v3270
      %v3272 = vand.u32 %v2140, 4294901760
      %v3273 = vsub.f32 %v2140, %v3272
      %v3274 = vand.u32 %v3273, 4294901760
      %3275 = vmatpush1.msra.mxu0 %v3274
      %v3276 = vand.u32 %v2143, 4294901760
      %v3277 = vsub.f32 %v2143, %v3276
      %v3278 = vand.u32 %v3277, 4294901760
      %3279 = vmatprep.subr.mxu0 %v3278
      %v3280 = vand.u32 %v2142, 4294901760
      %v3281 = vsub.f32 %v2142, %v3280
      %v3282 = vand.u32 %v3281, 4294901760
      %3283 = vmatpush1.msra.mxu0 %v3282
      %v3284 = vand.u32 %v1855, 4294901760
      %3285 = vmatprep.mubr.f32.mxu0 %v3284
      %v3286 = vand.u32 %v1854, 4294901760
      %3287 = vmatmul.mubr.f32.gmra.mrb[0].mxu0 %v3286
      %v3288 = vpop.f32.mrb[0].mxu0
      %v3289 = vadd.f32 %v3024, %v3288
      %v3290 = vpop.f32.mrb[0].mxu0
      %v3291 = vadd.f32 %v3026, %v3290
      %3292 = vdwg.mxu0
      %v3293 = vand.u32 %v2081, 4294901760
      %3294 = vmatprep.subr.mxu0 %v3293
      %v3295 = vand.u32 %v2080, 4294901760
      %3296 = vmatpush1.msra.mxu0 %v3295
      %v3297 = vand.u32 %v2083, 4294901760
      %3298 = vmatprep.subr.mxu0 %v3297
      %v3299 = vand.u32 %v2082, 4294901760
      %3300 = vmatpush1.msra.mxu0 %v3299
      %v3301 = vand.u32 %v2085, 4294901760
      %3302 = vmatprep.subr.mxu0 %v3301
      %v3303 = vand.u32 %v2084, 4294901760
      %3304 = vmatpush1.msra.mxu0 %v3303
      %v3305 = vand.u32 %v2087, 4294901760
      %3306 = vmatprep.subr.mxu0 %v3305
      %v3307 = vand.u32 %v2086, 4294901760
      %3308 = vmatpush1.msra.mxu0 %v3307
      %v3309 = vand.u32 %v2089, 4294901760
      %3310 = vmatprep.subr.mxu0 %v3309
      %v3311 = vand.u32 %v2088, 4294901760
      %3312 = vmatpush1.msra.mxu0 %v3311
      %v3313 = vand.u32 %v2091, 4294901760
      %3314 = vmatprep.subr.mxu0 %v3313
      %v3315 = vand.u32 %v2090, 4294901760
      %3316 = vmatpush1.msra.mxu0 %v3315
      %v3317 = vand.u32 %v2093, 4294901760
      %3318 = vmatprep.subr.mxu0 %v3317
      %v3319 = vand.u32 %v2092, 4294901760
      %3320 = vmatpush1.msra.mxu0 %v3319
      %v3321 = vand.u32 %v2095, 4294901760
      %3322 = vmatprep.subr.mxu0 %v3321
      %v3323 = vand.u32 %v2094, 4294901760
      %3324 = vmatpush1.msra.mxu0 %v3323
      %v3325 = vand.u32 %v2097, 4294901760
      %3326 = vmatprep.subr.mxu0 %v3325
      %v3327 = vand.u32 %v2096, 4294901760
      %3328 = vmatpush1.msra.mxu0 %v3327
      %v3329 = vand.u32 %v2099, 4294901760
      %3330 = vmatprep.subr.mxu0 %v3329
      %v3331 = vand.u32 %v2098, 4294901760
      %3332 = vmatpush1.msra.mxu0 %v3331
      %v3333 = vand.u32 %v2101, 4294901760
      %3334 = vmatprep.subr.mxu0 %v3333
      %v3335 = vand.u32 %v2100, 4294901760
      %3336 = vmatpush1.msra.mxu0 %v3335
      %v3337 = vand.u32 %v2103, 4294901760
      %3338 = vmatprep.subr.mxu0 %v3337
      %v3339 = vand.u32 %v2102, 4294901760
      %3340 = vmatpush1.msra.mxu0 %v3339
      %v3341 = vand.u32 %v2105, 4294901760
      %3342 = vmatprep.subr.mxu0 %v3341
      %v3343 = vand.u32 %v2104, 4294901760
      %3344 = vmatpush1.msra.mxu0 %v3343
      %v3345 = vand.u32 %v2107, 4294901760
      %3346 = vmatprep.subr.mxu0 %v3345
      %v3347 = vand.u32 %v2106, 4294901760
      %3348 = vmatpush1.msra.mxu0 %v3347
      %v3349 = vand.u32 %v2109, 4294901760
      %3350 = vmatprep.subr.mxu0 %v3349
      %v3351 = vand.u32 %v2108, 4294901760
      %3352 = vmatpush1.msra.mxu0 %v3351
      %v3353 = vand.u32 %v2111, 4294901760
      %3354 = vmatprep.subr.mxu0 %v3353
      %v3355 = vand.u32 %v2110, 4294901760
      %3356 = vmatpush1.msra.mxu0 %v3355
      %v3357 = vand.u32 %v2113, 4294901760
      %3358 = vmatprep.subr.mxu0 %v3357
      %v3359 = vand.u32 %v2112, 4294901760
      %3360 = vmatpush1.msra.mxu0 %v3359
      %v3361 = vand.u32 %v2115, 4294901760
      %3362 = vmatprep.subr.mxu0 %v3361
      %v3363 = vand.u32 %v2114, 4294901760
      %3364 = vmatpush1.msra.mxu0 %v3363
      %v3365 = vand.u32 %v2117, 4294901760
      %3366 = vmatprep.subr.mxu0 %v3365
      %v3367 = vand.u32 %v2116, 4294901760
      %3368 = vmatpush1.msra.mxu0 %v3367
      %v3369 = vand.u32 %v2119, 4294901760
      %3370 = vmatprep.subr.mxu0 %v3369
      %v3371 = vand.u32 %v2118, 4294901760
      %3372 = vmatpush1.msra.mxu0 %v3371
      %v3373 = vand.u32 %v2121, 4294901760
      %3374 = vmatprep.subr.mxu0 %v3373
      %v3375 = vand.u32 %v2120, 4294901760
      %3376 = vmatpush1.msra.mxu0 %v3375
      %v3377 = vand.u32 %v2123, 4294901760
      %3378 = vmatprep.subr.mxu0 %v3377
      %v3379 = vand.u32 %v2122, 4294901760
      %3380 = vmatpush1.msra.mxu0 %v3379
      %v3381 = vand.u32 %v2125, 4294901760
      %3382 = vmatprep.subr.mxu0 %v3381
      %v3383 = vand.u32 %v2124, 4294901760
      %3384 = vmatpush1.msra.mxu0 %v3383
      %v3385 = vand.u32 %v2127, 4294901760
      %3386 = vmatprep.subr.mxu0 %v3385
      %v3387 = vand.u32 %v2126, 4294901760
      %3388 = vmatpush1.msra.mxu0 %v3387
      %v3389 = vand.u32 %v2129, 4294901760
      %3390 = vmatprep.subr.mxu0 %v3389
      %v3391 = vand.u32 %v2128, 4294901760
      %3392 = vmatpush1.msra.mxu0 %v3391
      %v3393 = vand.u32 %v2131, 4294901760
      %3394 = vmatprep.subr.mxu0 %v3393
      %v3395 = vand.u32 %v2130, 4294901760
      %3396 = vmatpush1.msra.mxu0 %v3395
      %v3397 = vand.u32 %v2133, 4294901760
      %3398 = vmatprep.subr.mxu0 %v3397
      %v3399 = vand.u32 %v2132, 4294901760
      %3400 = vmatpush1.msra.mxu0 %v3399
      %v3401 = vand.u32 %v2135, 4294901760
      %3402 = vmatprep.subr.mxu0 %v3401
      %v3403 = vand.u32 %v2134, 4294901760
      %3404 = vmatpush1.msra.mxu0 %v3403
      %v3405 = vand.u32 %v2137, 4294901760
      %3406 = vmatprep.subr.mxu0 %v3405
      %v3407 = vand.u32 %v2136, 4294901760
      %3408 = vmatpush1.msra.mxu0 %v3407
      %v3409 = vand.u32 %v2139, 4294901760
      %3410 = vmatprep.subr.mxu0 %v3409
      %v3411 = vand.u32 %v2138, 4294901760
      %3412 = vmatpush1.msra.mxu0 %v3411
      %v3413 = vand.u32 %v2141, 4294901760
      %3414 = vmatprep.subr.mxu0 %v3413
      %v3415 = vand.u32 %v2140, 4294901760
      %3416 = vmatpush1.msra.mxu0 %v3415
      %v3417 = vand.u32 %v2143, 4294901760
      %3418 = vmatprep.subr.mxu0 %v3417
      %v3419 = vand.u32 %v2142, 4294901760
      %3420 = vmatpush1.msra.mxu0 %v3419
      %v3421 = vand.u32 %v1855, 4294901760
      %3422 = vmatprep.mubr.f32.mxu0 %v3421
      %v3423 = vand.u32 %v1854, 4294901760
      %3424 = vmatmul.mubr.f32.gmra.mrb[0].mxu0 %v3423
      %v3425 = vpop.f32.mrb[0].mxu0
      %v3426 = vadd.f32 %v3289, %v3425
      %v3427 = vpop.f32.mrb[0].mxu0
      %v3428 = vadd.f32 %v3291, %v3427
      %3429 = vdwg.mxu0
      %v3430 = vadd.f32 %v2144, %v3426
      %v3431 = vadd.f32 %v2145, %v3428
      %3432 = vst [vmem:[#allocation2] sm:$0xff] %v3430
      %3433 = vst [vmem:[#allocation2 + $0x8] sm:$0xff] %v3431
      // Predicated region
      $region33: #{_voxelize_one.1} parent=27 // pred_check
        %p3434 = pneg %p195
      $region34: #{_voxelize_one.1} parent=27 // pred_check_branch
        %3436 = sbr.rel (%p3434) target = $region36
      $region35: #{_voxelize_one.1} parent=27 // pred_region
        %v3437 = vld [vmem:[#allocation2] sm:$0xff]
        %v3438 = vld [vmem:[#allocation2 + $0x8] sm:$0xff]
        %vm3439 = vcmp.gt.f32.partialorder %v3437, 0.0
        %vm3440 = vcmp.gt.f32.partialorder %v3438, 0.0
        %v3441 = vsel %vm3439, %v3437, 1.0
        %v3442 = vsel %vm3440, %v3438, 1.0
        %v3443 = vlaneseq
        %v3444 = vshrl.u32 %v3443, 7
        %v3445 = vsub.s32 5, %v3444
        %v3446 = vrot.slane %v3441, %v3445
        %v3447 = vlaneseq
        %v3448 = vshrl.u32 %v3447, 7
        %v3449 = vsub.s32 5, %v3448
        %v3450 = vrot.slane %v3442, %v3449
        %v3451 = vrcp.pop %v3446
        %v3452 = vmul.f32 %v3437, %v3451
        %v3453 = vrcp.pop %v3450
        %v3454 = vmul.f32 %v3438, %v3453
        %3455 = vst [vmem:[%s178] sm:$0xff] %v3452
        %3456 = vst [vmem:[%s178 + $0x8] sm:$0xff] %v3454
      $region36: #{_voxelize_one.1} parent=27 // pred_fallthru
        _
      %s3457 = sld [smem:[#allocation4 + %s20]]
      %s3458 = smul.u32 2, %s3457
      %p3459 = scmp.lt.s32.totalorder %s3458, 3
      %s3460 = scalar_select %p3459, %s3458, 3
      %s3461 = smul.addr %s3460, 8
      %s3462 = scalar_lea.vmem %s3, %s3461
      // Predicated region
      $region37: #{_voxelize_one.1} parent=27 // pred_check
        %p3463 = pneg %p92
      $region38: #{_voxelize_one.1} parent=27 // pred_check_branch
        %3465 = sbr.rel (%p3463) target = $region40
      $region39: #{_voxelize_one.1} parent=27 // pred_region
        %s3466 = sld [smem:[#allocation4 + %s20]]
        %s3467 = smul.u32 2, %s3466
      $region40: #{_voxelize_one.1} parent=27 // pred_fallthru
        _
    $region28: #{_voxelize_one.1} parent=5 // pred_fallthru
      _
    %p3468 = scmp.le.s32.totalorder 2, %s15
    // Predicated region
    $region41: #{_voxelize_one.1} parent=5 // pred_check
      %p3469 = pneg %p3468
    $region42: #{_voxelize_one.1} parent=5 // pred_check_branch
      %3471 = sbr.rel (%p3469) target = $region44
    $region43: #{_voxelize_one.1} parent=5 // pred_region
      %s3472 = ssub.s32 %s15, 2
      // Predicated region
      $region45: #{_voxelize_one.1} parent=43 // pred_check
        %p3473 = pneg %p98
      $region46: #{_voxelize_one.1} parent=43 // pred_check_branch
        %3475 = sbr.rel (%p3473) target = $region48
      $region47: #{_voxelize_one.1} parent=43 // pred_region
        %s3476 = sld [smem:[#allocation4 + %s21]]
        %s3477 = smul.u32 2, %s3476
        %p3478 = scmp.lt.s32.totalorder %s3477, 3
        %s3479 = scalar_select %p3478, %s3477, 3
        %s3480 = smul.addr %s3479, 8
        %s3481 = scalar_lea.vmem %s3, %s3480
      $region48: #{_voxelize_one.1} parent=43 // pred_fallthru
        _
    $region44: #{_voxelize_one.1} parent=5 // pred_fallthru
      _
  $region6: #{_voxelize_one.1} parent=0 // loop_footer
    %s19 = sadd.s32 1, %s15
  $region7: #{_voxelize_one.1} parent=0 // loop_footer_branch
    %14 = sbr.rel target = $region3
  $region8: #{_voxelize_one.1} parent=0 // loop_exit
    _

</llo_original>
